<compile_context>
chip_gen: v7x
topology: tpu7x:2x2x1
jax: 0.10.0
libtpu: 0.0.40
codegen_flags: <defaults>
</compile_context>

<pallas_src>
import functools
import math

import jax
import jax.numpy as jnp
from jax.experimental import pallas as pl
from jax.experimental.pallas import tpu as pltpu

# ----------------------------- configuration -------------------------------
B = 2               # batch
IMG = 32            # input spatial size (samples: [B, 3, IMG, IMG])
D_MODEL = 32        # neck / query hidden dim
C_BACKBONE = 16     # backbone channels
NUM_CLASSES = 4     # -> logits dim = NUM_CLASSES + 1
NUM_LAYERS = 2      # decoder layers
NUM_DN = 0
USE_DN = False
NCLS1 = NUM_CLASSES + 1
HEAD = NCLS1 + 4                       # packed [cls | reg] width
OUT_ROWS = 8 * (2 + 2 * NUM_LAYERS)    # 8-row-aligned sections in the out slab


# ------------------------------- spec helpers -------------------------------
def _full_spec(shape):
    """Full-array single block."""
    return pl.BlockSpec(tuple(shape), lambda *_: (0,) * len(shape))


_ARB1 = pltpu.CompilerParams(dimension_semantics=("arbitrary",))
_PAR1 = pltpu.CompilerParams(dimension_semantics=("parallel",))


def inverse_sigmoid(x, eps=1e-5):
    x = jnp.clip(x, eps, 1.0 - eps)
    return jnp.log(x / (1.0 - x))


# ------------------------------ Pallas kernels ------------------------------
def _conv_neck_kernel(a_ref, wc_ref, bc_ref, wn_ref, bn_ref, feat_ref, src_ref):
    """Fused: im2col-matmul conv (+bias+relu) -> neck 1x1 (+bias+relu)."""
    conv = jnp.dot(a_ref[...], wc_ref[...], preferred_element_type=jnp.float32)
    conv = jnp.maximum(conv + bc_ref[...], 0.0)
    conv_bf16 = conv.astype(jnp.bfloat16)
    feat_ref[...] = conv_bf16                       # backbone feature (next conv)
    src = jnp.dot(conv_bf16, wn_ref[...], preferred_element_type=jnp.float32)
    src_ref[...] = jnp.maximum(src + bn_ref[...], 0.0)


def _rpn_decoder_kernel(src_ref, anc_t_ref,
                        wp_ref, bp_ref,
                        wrc_t_ref, brc_t_ref, wrr_t_ref, brr_t_ref,
                        wq_ref, bq_ref, w1_ref, b1_ref, w2_ref, b2_ref,
                        wc_t_ref, bc_t_ref, wr_t_ref, br_t_ref,
                        out_ref, attn_sc,
                        *, batch, nq, num_layers, ncls1):
    """Fused RPN + all decoder layers.

    Everything (query content, boxes) stays resident in VMEM / registers.
    Outputs are written transposed (heads on sublanes, B*Nq on lanes) into one
    lane-dense slab:
        rows [0:5)              RPN cls logits
        rows [8:12)             RPN proposal boxes (cxcywh)
        rows [16+16l : 21+16l)  decoder layer l cls logits
        rows [24+16l : 28+16l)  decoder layer l refined boxes
    """
    out_ref[...] = jnp.zeros_like(out_ref)

    src = src_ref[...]                        # (B*Nq, D) f32
    kv = src.astype(jnp.bfloat16)             # cross-attention keys/values

    # ---------------- RPN: proj(relu) + cls/reg heads + box math -------------
    qc = jnp.maximum(
        jnp.dot(kv, wp_ref[...], preferred_element_type=jnp.float32)
        + bp_ref[...], 0.0)                   # (B*Nq, D) f32 query content
    qcb = qc.astype(jnp.bfloat16)
    rpn_cls_t = jnp.einsum("hd,md->hm", wrc_t_ref[...], qcb,
                           preferred_element_type=jnp.float32) + brc_t_ref[...]
    rpn_reg_t = jnp.einsum("hd,md->hm", wrr_t_ref[...], qcb,
                           preferred_element_type=jnp.float32) + brr_t_ref[...]
    boxes_t = jax.nn.sigmoid(inverse_sigmoid(anc_t_ref[...]) + rpn_reg_t)
    out_ref[0:ncls1, :] = rpn_cls_t
    out_ref[8:12, :] = boxes_t

    # ---------------------------- decoder layers -----------------------------
    for l in range(num_layers):
        # q projection (1/sqrt(D) scale already folded into wq/bq)
        q = jnp.dot(qc.astype(jnp.bfloat16), wq_ref[l],
                    preferred_element_type=jnp.float32) + bq_ref[l]
        # per-batch cross attention; results written to a VMEM scratch at
        # static row offsets (no concatenate materialization)
        for b in range(batch):
            r0 = b * nq
            qb = q[r0:r0 + nq, :].astype(jnp.bfloat16)
            kb = kv[r0:r0 + nq, :]
            s = jnp.einsum("qd,kd->qk", qb, kb,
                           preferred_element_type=jnp.float32)
            m = jnp.max(s, axis=-1, keepdims=True)
            p = jnp.exp(s - m)
            p = p * pl.reciprocal(jnp.sum(p, axis=-1, keepdims=True), approx=True)
            attn_sc[r0:r0 + nq, :] = jnp.dot(p.astype(jnp.bfloat16), kb,
                                             preferred_element_type=jnp.float32)
        qc = qc + attn_sc[...]
        # FFN with residual
        hid = jnp.maximum(
            jnp.dot(qc.astype(jnp.bfloat16), w1_ref[l],
                    preferred_element_type=jnp.float32) + b1_ref[l], 0.0)
        qc = qc + jnp.dot(hid.astype(jnp.bfloat16), w2_ref[l],
                          preferred_element_type=jnp.float32) + b2_ref[l]
        # heads (transposed -> lane-dense) + box refinement
        qcb = qc.astype(jnp.bfloat16)
        cls_t = jnp.einsum("hd,md->hm", wc_t_ref[l], qcb,
                           preferred_element_type=jnp.float32) + bc_t_ref[l]
        delta_t = jnp.einsum("hd,md->hm", wr_t_ref[l], qcb,
                             preferred_element_type=jnp.float32) + br_t_ref[l]
        boxes_t = jax.nn.sigmoid(inverse_sigmoid(boxes_t) + delta_t)
        base = 16 + 16 * l
        out_ref[base:base + ncls1, :] = cls_t
        out_ref[base + 8:base + 12, :] = boxes_t


# --------------------------- Pallas call wrappers ---------------------------
def pallas_conv_neck(patches_bf16, wc_bf16, bc, wn_bf16, bn, split=1):
    M, K = patches_bf16.shape
    Cc = wc_bf16.shape[1]
    Dn = wn_bf16.shape[1]
    if M % split != 0 or (M // split) % 8 != 0:
        split = 1
    Mb = M // split
    return pl.pallas_call(
        _conv_neck_kernel,
        out_shape=(jax.ShapeDtypeStruct((M, Cc), jnp.bfloat16),
                   jax.ShapeDtypeStruct((M, Dn), jnp.float32)),
        grid=(split,),
        in_specs=[pl.BlockSpec((Mb, K), lambda i: (i, 0)),
                  pl.BlockSpec((K, Cc), lambda i: (0, 0)),
                  pl.BlockSpec((1, Cc), lambda i: (0, 0)),
                  pl.BlockSpec((Cc, Dn), lambda i: (0, 0)),
                  pl.BlockSpec((1, Dn), lambda i: (0, 0))],
        out_specs=(pl.BlockSpec((Mb, Cc), lambda i: (i, 0)),
                   pl.BlockSpec((Mb, Dn), lambda i: (i, 0))),
        compiler_params=_PAR1 if split > 1 else _ARB1,
    )(patches_bf16, wc_bf16, bc, wn_bf16, bn)


def pallas_rpn_decoder(src_flat, anchors_t, params):
    """One fused kernel for RPN + all decoder layers; lane-dense packed output."""
    M, D = src_flat.shape                       # (B*Nq, D)
    args = (src_flat, anchors_t,
            params["rpn_proj_w"], params["rpn_proj_b"],
            params["rpn_cls_w_t"], params["rpn_cls_b_t"],
            params["rpn_reg_w_t"], params["rpn_reg_b_t"],
            params["dec_wq"], params["dec_bq"],
            params["dec_w1"], params["dec_b1"],
            params["dec_w2"], params["dec_b2"],
            params["dec_wc_t"], params["dec_bc_t"],
            params["dec_wr_t"], params["dec_br_t"])
    kernel = functools.partial(_rpn_decoder_kernel, batch=B, nq=M // B,
                               num_layers=NUM_LAYERS, ncls1=NCLS1)
    return pl.pallas_call(
        kernel,
        out_shape=jax.ShapeDtypeStruct((OUT_ROWS, M), jnp.float32),
        grid=(1,),
        in_specs=[_full_spec(a.shape) for a in args],
        out_specs=_full_spec((OUT_ROWS, M)),
        scratch_shapes=[pltpu.VMEM((M, D), jnp.float32)],
        compiler_params=_ARB1,
    )(*args)


# ------------------------------ JAX glue ops --------------------------------
def conv_neck(x_bf16, conv_w, conv_b, neck_w, neck_b, stride=2, split=1):
    """3x3 stride-2 conv + neck 1x1, one fused Pallas kernel per level.

    TODO(synk): im2col patch extraction stays in XLA glue (fused under jit).
    """
    Bn, H, W, C = x_bf16.shape
    cout = conv_w.shape[1]
    pad = 1
    xp = jnp.pad(x_bf16, ((0, 0), (pad, pad), (pad, pad), (0, 0)))
    Ho = (H + 2 * pad - 3) // stride + 1
    Wo = (W + 2 * pad - 3) // stride + 1
    cols = []
    for di in range(3):
        for dj in range(3):
            cols.append(xp[:, di:di + stride * Ho:stride,
                           dj:dj + stride * Wo:stride, :])
    patches = jnp.concatenate(cols, axis=-1).reshape(Bn * Ho * Wo, 9 * C)
    feat, src = pallas_conv_neck(patches, conv_w, conv_b, neck_w, neck_b,
                                 split=split)
    return (feat.reshape(Bn, Ho, Wo, cout),
            src.reshape(Bn, Ho, Wo, neck_w.shape[1]))


# --------------------------- parameter construction -------------------------
def _linear_params(key, fan_in, fan_out):
    w = jax.random.normal(key, (fan_in, fan_out), jnp.float32) / math.sqrt(fan_in)
    b = jnp.zeros((fan_out,), jnp.float32)
    return w, b


def init_params(key):
    """All weights pre-packed / pre-cast ONCE (not inside the jitted forward)."""
    ks = jax.random.split(key, 16)
    p = {}
    # backbone: three stride-2 3x3 convs stored as (9*cin, cout) bf16 matmuls
    conv_dims = [(3, C_BACKBONE), (C_BACKBONE, C_BACKBONE),
                 (C_BACKBONE, C_BACKBONE)]
    for li, (cin, cout) in enumerate(conv_dims):
        w, b = _linear_params(ks[li], 9 * cin, cout)
        p[f"conv{li}_w"] = w.astype(jnp.bfloat16)
        p[f"conv{li}_b"] = b.reshape(1, cout)
    # neck: 1x1 convs (as linears) to D_MODEL per level
    for li in range(3):
        w, b = _linear_params(ks[3 + li], C_BACKBONE, D_MODEL)
        p[f"neck{li}_w"] = w.astype(jnp.bfloat16)
        p[f"neck{li}_b"] = b.reshape(1, D_MODEL)
    # rpn (heads stored transposed for lane-dense transposed outputs)
    w, b = _linear_params(ks[6], D_MODEL, D_MODEL)
    p["rpn_proj_w"] = w.astype(jnp.bfloat16)
    p["rpn_proj_b"] = b.reshape(1, D_MODEL)
    w, b = _linear_params(ks[7], D_MODEL, NCLS1)
    p["rpn_cls_w_t"] = w.T.astype(jnp.bfloat16)
    p["rpn_cls_b_t"] = b.reshape(NCLS1, 1)
    w, b = _linear_params(ks[8], D_MODEL, 4)
    p["rpn_reg_w_t"] = w.T.astype(jnp.bfloat16)
    p["rpn_reg_b_t"] = b.reshape(4, 1)
    # decoder layers stacked along L; attention 1/sqrt(D) folded into wq/bq
    scale = 1.0 / math.sqrt(D_MODEL)
    stacks = {k: [] for k in ("wq", "bq", "w1", "b1", "w2", "b2",
                              "wc_t", "bc_t", "wr_t", "br_t")}
    for l in range(NUM_LAYERS):
        kd = jax.random.split(ks[9 + l], 5)
        wq, bq = _linear_params(kd[0], D_MODEL, D_MODEL)
        w1, b1 = _linear_params(kd[1], D_MODEL, D_MODEL)
        w2, b2 = _linear_params(kd[2], D_MODEL, D_MODEL)
        wc, bc = _linear_params(kd[3], D_MODEL, NCLS1)
        wr, br = _linear_params(kd[4], D_MODEL, 4)
        stacks["wq"].append((wq * scale).astype(jnp.bfloat16))
        stacks["bq"].append((bq * scale).reshape(1, D_MODEL))
        stacks["w1"].append(w1.astype(jnp.bfloat16))
        stacks["b1"].append(b1.reshape(1, D_MODEL))
        stacks["w2"].append(w2.astype(jnp.bfloat16))
        stacks["b2"].append(b2.reshape(1, D_MODEL))
        stacks["wc_t"].append(wc.T.astype(jnp.bfloat16))
        stacks["bc_t"].append(bc.reshape(NCLS1, 1))
        stacks["wr_t"].append(wr.T.astype(jnp.bfloat16))
        stacks["br_t"].append(br.reshape(4, 1))
    for k, v in stacks.items():
        p[f"dec_{k}"] = jnp.stack(v)
    return p


# ------------------------------- submodules ---------------------------------
def backbone_neck(params, samples_nchw):
    """Backbone + neck: one fused Pallas kernel per pyramid level."""
    x = jnp.transpose(samples_nchw, (0, 2, 3, 1)).astype(jnp.bfloat16)  # NHWC
    srcs = []
    cur = x
    for li in range(3):
        split = B if li == 0 else 1        # level 0 split over both TCs (v7x)
        cur, src = conv_neck(cur, params[f"conv{li}_w"], params[f"conv{li}_b"],
                             params[f"neck{li}_w"], params[f"neck{li}_b"],
                             split=split)
        srcs.append(src)                   # (B, H/2^(li+1), W/2^(li+1), D) f32
    return srcs


def anchor_generator(srcs_hi):
    """Grid anchors from the first high-level feature map (normalized cxcywh)."""
    f = srcs_hi[0]
    Bn, Hf, Wf, _ = f.shape
    ys = (jnp.arange(Hf, dtype=jnp.float32) + 0.5) / Hf
    xs = (jnp.arange(Wf, dtype=jnp.float32) + 0.5) / Wf
    cy, cx = jnp.meshgrid(ys, xs, indexing="ij")
    wh = jnp.full_like(cx, 0.2)
    anchors = jnp.stack([cx, cy, wh, wh], axis=-1).reshape(-1, 4)
    output_anchors = jnp.broadcast_to(anchors[None], (Bn, anchors.shape[0], 4))
    padded_output_anchors = output_anchors
    valid_mask = jnp.ones((Bn, anchors.shape[0]), jnp.float32)
    max_len = anchors.shape[0]
    anchors_for_loss = output_anchors
    return (anchors_for_loss, padded_output_anchors, valid_mask, max_len,
            output_anchors)


def prepare_for_dn(use_dn, training, dn_args, padded_output_anchors,
                   valid_mask, imgs_whwh):
    if not use_dn or not training:
        return None, None, None, padded_output_anchors
    return None, None, None, padded_output_anchors  # TODO(synk): dn path unused (eval)


def rpn_and_decoder(params, srcs, dn_anchors):
    """Fused RPN + decoder (single pallas_call); unpack lane-dense slab."""
    p3 = srcs[1]                                   # (B, 8, 8, D) f32
    Bn, Hf, Wf, D = p3.shape
    Nq = Hf * Wf
    src_flat = p3.reshape(Bn * Nq, D)
    anchors_t = dn_anchors.reshape(Bn * Nq, 4).T   # (4, B*Nq)

    slab = pallas_rpn_decoder(src_flat, anchors_t, params)   # (OUT_ROWS, B*Nq)

    def unpack(row0, n):
        return slab[row0:row0 + n, :].T.reshape(Bn, Nq, n)

    cls_score = unpack(0, NCLS1)                   # RPN logits
    proposal = unpack(8, 4)                        # RPN proposal boxes (cxcywh)
    all_stage_results = []
    for l in range(NUM_LAYERS):
        all_stage_results.append({
            "cls_score": unpack(16 + 16 * l, NCLS1),
            "decode_bbox_pred": unpack(24 + 16 * l, 4),
        })
    return proposal, cls_score, all_stage_results


# ------------------------------ ASAG forward --------------------------------
def asag_forward(params, samples, imgs_whwh, hw, targets=None,
                 box_noise_scale=0.0, epoch=-1, training=False):
    srcs = backbone_neck(params, samples)          # [P2, P3, P4] NHWC, f32

    (anchors_for_loss, padded_output_anchors, valid_mask, max_len,
     output_anchors) = anchor_generator(srcs[1:])

    dn_args = (targets, NUM_DN, box_noise_scale)
    dn_targets_boxes, dn_targets_labels, dn_masks, dn_anchors = prepare_for_dn(
        USE_DN, training, dn_args, padded_output_anchors, valid_mask, imgs_whwh)

    proposal, cls_score, all_stage_results = rpn_and_decoder(
        params, srcs, dn_anchors)

    out = {
        "pred_logits": all_stage_results[-1]["cls_score"],
        "pred_boxes": all_stage_results[-1]["decode_bbox_pred"],
        "anchors": {
            "anchors_for_loss": anchors_for_loss,
            "padded_output_anchors": padded_output_anchors,
            "valid_mask": valid_mask,
            "output_anchors": output_anchors,
        },
        "rpn": {"pred_logits": cls_score, "pred_boxes": proposal},
        "dn": {"dn_targets_boxes": dn_targets_boxes,
               "dn_targets_labels": dn_targets_labels,
               "dn_param": (NUM_DN, max_len)},
    }
    if NUM_LAYERS > 1:
        out["aux_outputs"] = [
            {"pred_logits": a["cls_score"], "pred_boxes": a["decode_bbox_pred"]}
            for a in all_stage_results[:-1]
        ]
    return out


# ----------------------------------- main ------------------------------------
if __name__ == "__main__":
    key = jax.random.PRNGKey(0)
    k_in, k_par = jax.random.split(key)

    samples = jax.random.normal(k_in, (B, 3, IMG, IMG), jnp.float32)  # NCHW
    imgs_whwh = jnp.tile(
        jnp.array([[IMG, IMG, IMG, IMG]], jnp.float32)[:, None, :], (B, 1, 1))
    hw = ((IMG // 2, IMG // 2), (IMG // 4, IMG // 4), (IMG // 8, IMG // 8))

    params = init_params(k_par)

    forward = jax.jit(asag_forward)                # single compiled forward
    out = forward(params, samples, imgs_whwh, hw)
    jax.block_until_ready(out["pred_logits"])
    jax.block_until_ready(out["pred_boxes"])

    assert out["pred_logits"].shape == (B, 64, NUM_CLASSES + 1)
    assert out["pred_boxes"].shape == (B, 64, 4)
    assert out["rpn"]["pred_logits"].shape == (B, 64, NUM_CLASSES + 1)
    assert out["rpn"]["pred_boxes"].shape == (B, 64, 4)
    assert len(out["aux_outputs"]) == NUM_LAYERS - 1
    assert bool(jnp.all(jnp.isfinite(out["pred_logits"])))
    assert bool(jnp.all(jnp.isfinite(out["pred_boxes"])))
    print("KERNEL_OK")
</pallas_src>

<mosaic_0001>
module attributes {stable_mosaic.version = 11 : i64} {
  func.func @_conv_neck_kernel(%arg0: i32, %arg1: memref<256x27xbf16, #tpu.memory_space<vmem>>, %arg2: memref<27x16xbf16, #tpu.memory_space<vmem>>, %arg3: memref<1x16xf32, #tpu.memory_space<vmem>>, %arg4: memref<16x32xbf16, #tpu.memory_space<vmem>>, %arg5: memref<1x32xf32, #tpu.memory_space<vmem>>, %arg6: memref<256x16xbf16, #tpu.memory_space<vmem>>, %arg7: memref<256x32xf32, #tpu.memory_space<vmem>>) attributes {dimension_semantics = [#tpu.dimension_semantics<parallel>], iteration_bounds = array<i64: 2>, scalar_prefetch = 0 : i64, scratch_operands = 0 : i64, tpu.core_type = #tpu.core_type<tc>, window_params = [{transform_indices = @transform_0, window_bounds = array<i64: 256, 27>}, {pipeline_mode = #tpu.pipeline_mode<synchronous>, transform_indices = @transform_1, window_bounds = array<i64: 27, 16>}, {pipeline_mode = #tpu.pipeline_mode<synchronous>, transform_indices = @transform_2, window_bounds = array<i64: 1, 16>}, {pipeline_mode = #tpu.pipeline_mode<synchronous>, transform_indices = @transform_3, window_bounds = array<i64: 16, 32>}, {pipeline_mode = #tpu.pipeline_mode<synchronous>, transform_indices = @transform_4, window_bounds = array<i64: 1, 32>}, {transform_indices = @transform_5, window_bounds = array<i64: 256, 16>}, {transform_indices = @transform_6, window_bounds = array<i64: 256, 32>}]} {
    %c0 = arith.constant 0 : index
    %c0_0 = arith.constant 0 : index
    %0 = vector.load %arg1[%c0, %c0_0] : memref<256x27xbf16, #tpu.memory_space<vmem>>, vector<256x27xbf16>
    %c0_1 = arith.constant 0 : index
    %c0_2 = arith.constant 0 : index
    %1 = vector.load %arg2[%c0_1, %c0_2] : memref<27x16xbf16, #tpu.memory_space<vmem>>, vector<27x16xbf16>
    %cst = arith.constant dense<0.000000e+00> : vector<256x16xf32>
    %2 = tpu.matmul %0, %1, %cst {dimension_numbers = #tpu.dot_dimension_numbers<[1], [0], [0], [1], [0, 0, 1, 1], [], []>} : vector<256x27xbf16>, vector<27x16xbf16>, vector<256x16xf32> -> vector<256x16xf32>
    %c0_3 = arith.constant 0 : index
    %c0_4 = arith.constant 0 : index
    %3 = vector.load %arg3[%c0_3, %c0_4] : memref<1x16xf32, #tpu.memory_space<vmem>>, vector<1x16xf32>
    %4 = vector.broadcast %3 : vector<1x16xf32> to vector<256x16xf32>
    %5 = arith.addf %2, %4 : vector<256x16xf32>
    %cst_5 = arith.constant 0.000000e+00 : f32
    %6 = vector.broadcast %cst_5 : f32 to vector<256x16xf32>
    %7 = arith.maximumf %5, %6 : vector<256x16xf32>
    %8 = arith.truncf %7 : vector<256x16xf32> to vector<256x16xbf16>
    %c0_6 = arith.constant 0 : index
    %c0_7 = arith.constant 0 : index
    %9 = vector.load %arg6[%c0_6, %c0_7] : memref<256x16xbf16, #tpu.memory_space<vmem>>, vector<256x16xbf16>
    tpu.vector_store %arg6[%c0_6, %c0_7], %8 {strides = array<i32>} : memref<256x16xbf16, #tpu.memory_space<vmem>>, vector<256x16xbf16>,
    %c0_8 = arith.constant 0 : index
    %c0_9 = arith.constant 0 : index
    %10 = vector.load %arg4[%c0_8, %c0_9] : memref<16x32xbf16, #tpu.memory_space<vmem>>, vector<16x32xbf16>
    %cst_10 = arith.constant dense<0.000000e+00> : vector<256x32xf32>
    %11 = tpu.matmul %8, %10, %cst_10 {dimension_numbers = #tpu.dot_dimension_numbers<[1], [0], [0], [1], [0, 0, 1, 1], [], []>} : vector<256x16xbf16>, vector<16x32xbf16>, vector<256x32xf32> -> vector<256x32xf32>
    %c0_11 = arith.constant 0 : index
    %c0_12 = arith.constant 0 : index
    %12 = vector.load %arg5[%c0_11, %c0_12] : memref<1x32xf32, #tpu.memory_space<vmem>>, vector<1x32xf32>
    %13 = vector.broadcast %12 : vector<1x32xf32> to vector<256x32xf32>
    %14 = arith.addf %11, %13 : vector<256x32xf32>
    %cst_13 = arith.constant 0.000000e+00 : f32
    %15 = vector.broadcast %cst_13 : f32 to vector<256x32xf32>
    %16 = arith.maximumf %14, %15 : vector<256x32xf32>
    %c0_14 = arith.constant 0 : index
    %c0_15 = arith.constant 0 : index
    %17 = vector.load %arg7[%c0_14, %c0_15] : memref<256x32xf32, #tpu.memory_space<vmem>>, vector<256x32xf32>
    tpu.vector_store %arg7[%c0_14, %c0_15], %16 {strides = array<i32>} : memref<256x32xf32, #tpu.memory_space<vmem>>, vector<256x32xf32>,
    return
  }
  func.func @transform_0(%arg0: i32) -> (i32, i32) {
    %c0_i32 = arith.constant 0 : i32
    %c0_i32_0 = arith.constant 0 : i32
    return %arg0, %c0_i32 : i32, i32
  }
  func.func @transform_1(%arg0: i32) -> (i32, i32) {
    %c0_i32 = arith.constant 0 : i32
    %c0_i32_0 = arith.constant 0 : i32
    %c0_i32_1 = arith.constant 0 : i32
    return %c0_i32, %c0_i32_0 : i32, i32
  }
  func.func @transform_2(%arg0: i32) -> (i32, i32) {
    %c0_i32 = arith.constant 0 : i32
    %c0_i32_0 = arith.constant 0 : i32
    %c0_i32_1 = arith.constant 0 : i32
    return %c0_i32, %c0_i32_0 : i32, i32
  }
  func.func @transform_3(%arg0: i32) -> (i32, i32) {
    %c0_i32 = arith.constant 0 : i32
    %c0_i32_0 = arith.constant 0 : i32
    %c0_i32_1 = arith.constant 0 : i32
    return %c0_i32, %c0_i32_0 : i32, i32
  }
  func.func @transform_4(%arg0: i32) -> (i32, i32) {
    %c0_i32 = arith.constant 0 : i32
    %c0_i32_0 = arith.constant 0 : i32
    %c0_i32_1 = arith.constant 0 : i32
    return %c0_i32, %c0_i32_0 : i32, i32
  }
  func.func @transform_5(%arg0: i32) -> (i32, i32) {
    %c0_i32 = arith.constant 0 : i32
    %c0_i32_0 = arith.constant 0 : i32
    return %arg0, %c0_i32 : i32, i32
  }
  func.func @transform_6(%arg0: i32) -> (i32, i32) {
    %c0_i32 = arith.constant 0 : i32
    %c0_i32_0 = arith.constant 0 : i32
    return %arg0, %c0_i32 : i32, i32
  }
}

module attributes {stable_mosaic.version = 11 : i64} {
  func.func @_conv_neck_kernel(%arg0: i32, %arg1: memref<128x144xbf16, #tpu.memory_space<vmem>>, %arg2: memref<144x16xbf16, #tpu.memory_space<vmem>>, %arg3: memref<1x16xf32, #tpu.memory_space<vmem>>, %arg4: memref<16x32xbf16, #tpu.memory_space<vmem>>, %arg5: memref<1x32xf32, #tpu.memory_space<vmem>>, %arg6: memref<128x16xbf16, #tpu.memory_space<vmem>>, %arg7: memref<128x32xf32, #tpu.memory_space<vmem>>) attributes {dimension_semantics = [#tpu.dimension_semantics<arbitrary>], iteration_bounds = array<i64: 1>, scalar_prefetch = 0 : i64, scratch_operands = 0 : i64, tpu.core_type = #tpu.core_type<tc>, window_params = [{transform_indices = @transform_0, window_bounds = array<i64: 128, 144>}, {pipeline_mode = #tpu.pipeline_mode<synchronous>, transform_indices = @transform_1, window_bounds = array<i64: 144, 16>}, {pipeline_mode = #tpu.pipeline_mode<synchronous>, transform_indices = @transform_2, window_bounds = array<i64: 1, 16>}, {pipeline_mode = #tpu.pipeline_mode<synchronous>, transform_indices = @transform_3, window_bounds = array<i64: 16, 32>}, {pipeline_mode = #tpu.pipeline_mode<synchronous>, transform_indices = @transform_4, window_bounds = array<i64: 1, 32>}, {transform_indices = @transform_5, window_bounds = array<i64: 128, 16>}, {transform_indices = @transform_6, window_bounds = array<i64: 128, 32>}]} {
    %c0 = arith.constant 0 : index
    %c0_0 = arith.constant 0 : index
    %0 = vector.load %arg1[%c0, %c0_0] : memref<128x144xbf16, #tpu.memory_space<vmem>>, vector<128x144xbf16>
    %c0_1 = arith.constant 0 : index
    %c0_2 = arith.constant 0 : index
    %1 = vector.load %arg2[%c0_1, %c0_2] : memref<144x16xbf16, #tpu.memory_space<vmem>>, vector<144x16xbf16>
    %cst = arith.constant dense<0.000000e+00> : vector<128x16xf32>
    %2 = tpu.matmul %0, %1, %cst {dimension_numbers = #tpu.dot_dimension_numbers<[1], [0], [0], [1], [0, 0, 1, 1], [], []>} : vector<128x144xbf16>, vector<144x16xbf16>, vector<128x16xf32> -> vector<128x16xf32>
    %c0_3 = arith.constant 0 : index
    %c0_4 = arith.constant 0 : index
    %3 = vector.load %arg3[%c0_3, %c0_4] : memref<1x16xf32, #tpu.memory_space<vmem>>, vector<1x16xf32>
    %4 = vector.broadcast %3 : vector<1x16xf32> to vector<128x16xf32>
    %5 = arith.addf %2, %4 : vector<128x16xf32>
    %cst_5 = arith.constant 0.000000e+00 : f32
    %6 = vector.broadcast %cst_5 : f32 to vector<128x16xf32>
    %7 = arith.maximumf %5, %6 : vector<128x16xf32>
    %8 = arith.truncf %7 : vector<128x16xf32> to vector<128x16xbf16>
    %c0_6 = arith.constant 0 : index
    %c0_7 = arith.constant 0 : index
    %9 = vector.load %arg6[%c0_6, %c0_7] : memref<128x16xbf16, #tpu.memory_space<vmem>>, vector<128x16xbf16>
    tpu.vector_store %arg6[%c0_6, %c0_7], %8 {strides = array<i32>} : memref<128x16xbf16, #tpu.memory_space<vmem>>, vector<128x16xbf16>,
    %c0_8 = arith.constant 0 : index
    %c0_9 = arith.constant 0 : index
    %10 = vector.load %arg4[%c0_8, %c0_9] : memref<16x32xbf16, #tpu.memory_space<vmem>>, vector<16x32xbf16>
    %cst_10 = arith.constant dense<0.000000e+00> : vector<128x32xf32>
    %11 = tpu.matmul %8, %10, %cst_10 {dimension_numbers = #tpu.dot_dimension_numbers<[1], [0], [0], [1], [0, 0, 1, 1], [], []>} : vector<128x16xbf16>, vector<16x32xbf16>, vector<128x32xf32> -> vector<128x32xf32>
    %c0_11 = arith.constant 0 : index
    %c0_12 = arith.constant 0 : index
    %12 = vector.load %arg5[%c0_11, %c0_12] : memref<1x32xf32, #tpu.memory_space<vmem>>, vector<1x32xf32>
    %13 = vector.broadcast %12 : vector<1x32xf32> to vector<128x32xf32>
    %14 = arith.addf %11, %13 : vector<128x32xf32>
    %cst_13 = arith.constant 0.000000e+00 : f32
    %15 = vector.broadcast %cst_13 : f32 to vector<128x32xf32>
    %16 = arith.maximumf %14, %15 : vector<128x32xf32>
    %c0_14 = arith.constant 0 : index
    %c0_15 = arith.constant 0 : index
    %17 = vector.load %arg7[%c0_14, %c0_15] : memref<128x32xf32, #tpu.memory_space<vmem>>, vector<128x32xf32>
    tpu.vector_store %arg7[%c0_14, %c0_15], %16 {strides = array<i32>} : memref<128x32xf32, #tpu.memory_space<vmem>>, vector<128x32xf32>,
    return
  }
  func.func @transform_0(%arg0: i32) -> (i32, i32) {
    %c0_i32 = arith.constant 0 : i32
    %c0_i32_0 = arith.constant 0 : i32
    return %arg0, %c0_i32 : i32, i32
  }
  func.func @transform_1(%arg0: i32) -> (i32, i32) {
    %c0_i32 = arith.constant 0 : i32
    %c0_i32_0 = arith.constant 0 : i32
    %c0_i32_1 = arith.constant 0 : i32
    return %c0_i32, %c0_i32_0 : i32, i32
  }
  func.func @transform_2(%arg0: i32) -> (i32, i32) {
    %c0_i32 = arith.constant 0 : i32
    %c0_i32_0 = arith.constant 0 : i32
    %c0_i32_1 = arith.constant 0 : i32
    return %c0_i32, %c0_i32_0 : i32, i32
  }
  func.func @transform_3(%arg0: i32) -> (i32, i32) {
    %c0_i32 = arith.constant 0 : i32
    %c0_i32_0 = arith.constant 0 : i32
    %c0_i32_1 = arith.constant 0 : i32
    return %c0_i32, %c0_i32_0 : i32, i32
  }
  func.func @transform_4(%arg0: i32) -> (i32, i32) {
    %c0_i32 = arith.constant 0 : i32
    %c0_i32_0 = arith.constant 0 : i32
    %c0_i32_1 = arith.constant 0 : i32
    return %c0_i32, %c0_i32_0 : i32, i32
  }
  func.func @transform_5(%arg0: i32) -> (i32, i32) {
    %c0_i32 = arith.constant 0 : i32
    %c0_i32_0 = arith.constant 0 : i32
    return %arg0, %c0_i32 : i32, i32
  }
  func.func @transform_6(%arg0: i32) -> (i32, i32) {
    %c0_i32 = arith.constant 0 : i32
    %c0_i32_0 = arith.constant 0 : i32
    return %arg0, %c0_i32 : i32, i32
  }
}

module attributes {stable_mosaic.version = 11 : i64} {
  func.func @_rpn_decoder_kernel(%arg0: i32, %arg1: memref<128x32xf32, #tpu.memory_space<vmem>>, %arg2: memref<4x128xf32, #tpu.memory_space<vmem>>, %arg3: memref<32x32xbf16, #tpu.memory_space<vmem>>, %arg4: memref<1x32xf32, #tpu.memory_space<vmem>>, %arg5: memref<5x32xbf16, #tpu.memory_space<vmem>>, %arg6: memref<5x1xf32, #tpu.memory_space<vmem>>, %arg7: memref<4x32xbf16, #tpu.memory_space<vmem>>, %arg8: memref<4x1xf32, #tpu.memory_space<vmem>>, %arg9: memref<2x32x32xbf16, #tpu.memory_space<vmem>>, %arg10: memref<2x1x32xf32, #tpu.memory_space<vmem>>, %arg11: memref<2x32x32xbf16, #tpu.memory_space<vmem>>, %arg12: memref<2x1x32xf32, #tpu.memory_space<vmem>>, %arg13: memref<2x32x32xbf16, #tpu.memory_space<vmem>>, %arg14: memref<2x1x32xf32, #tpu.memory_space<vmem>>, %arg15: memref<2x5x32xbf16, #tpu.memory_space<vmem>>, %arg16: memref<2x5x1xf32, #tpu.memory_space<vmem>>, %arg17: memref<2x4x32xbf16, #tpu.memory_space<vmem>>, %arg18: memref<2x4x1xf32, #tpu.memory_space<vmem>>, %arg19: memref<48x128xf32, #tpu.memory_space<vmem>>, %arg20: memref<128x32xf32, #tpu.memory_space<vmem>>) attributes {dimension_semantics = [#tpu.dimension_semantics<arbitrary>], iteration_bounds = array<i64: 1>, scalar_prefetch = 0 : i64, scratch_operands = 1 : i64, tpu.core_type = #tpu.core_type<tc>, window_params = [{pipeline_mode = #tpu.pipeline_mode<synchronous>, transform_indices = @transform_0, window_bounds = array<i64: 128, 32>}, {pipeline_mode = #tpu.pipeline_mode<synchronous>, transform_indices = @transform_1, window_bounds = array<i64: 4, 128>}, {pipeline_mode = #tpu.pipeline_mode<synchronous>, transform_indices = @transform_2, window_bounds = array<i64: 32, 32>}, {pipeline_mode = #tpu.pipeline_mode<synchronous>, transform_indices = @transform_3, window_bounds = array<i64: 1, 32>}, {pipeline_mode = #tpu.pipeline_mode<synchronous>, transform_indices = @transform_4, window_bounds = array<i64: 5, 32>}, {pipeline_mode = #tpu.pipeline_mode<synchronous>, transform_indices = @transform_5, window_bounds = array<i64: 5, 1>}, {pipeline_mode = #tpu.pipeline_mode<synchronous>, transform_indices = @transform_6, window_bounds = array<i64: 4, 32>}, {pipeline_mode = #tpu.pipeline_mode<synchronous>, transform_indices = @transform_7, window_bounds = array<i64: 4, 1>}, {pipeline_mode = #tpu.pipeline_mode<synchronous>, transform_indices = @transform_8, window_bounds = array<i64: 2, 32, 32>}, {pipeline_mode = #tpu.pipeline_mode<synchronous>, transform_indices = @transform_9, window_bounds = array<i64: 2, 1, 32>}, {pipeline_mode = #tpu.pipeline_mode<synchronous>, transform_indices = @transform_10, window_bounds = array<i64: 2, 32, 32>}, {pipeline_mode = #tpu.pipeline_mode<synchronous>, transform_indices = @transform_11, window_bounds = array<i64: 2, 1, 32>}, {pipeline_mode = #tpu.pipeline_mode<synchronous>, transform_indices = @transform_12, window_bounds = array<i64: 2, 32, 32>}, {pipeline_mode = #tpu.pipeline_mode<synchronous>, transform_indices = @transform_13, window_bounds = array<i64: 2, 1, 32>}, {pipeline_mode = #tpu.pipeline_mode<synchronous>, transform_indices = @transform_14, window_bounds = array<i64: 2, 5, 32>}, {pipeline_mode = #tpu.pipeline_mode<synchronous>, transform_indices = @transform_15, window_bounds = array<i64: 2, 5, 1>}, {pipeline_mode = #tpu.pipeline_mode<synchronous>, transform_indices = @transform_16, window_bounds = array<i64: 2, 4, 32>}, {pipeline_mode = #tpu.pipeline_mode<synchronous>, transform_indices = @transform_17, window_bounds = array<i64: 2, 4, 1>}, {pipeline_mode = #tpu.pipeline_mode<synchronous>, transform_indices = @transform_18, window_bounds = array<i64: 48, 128>}]} {
    %cst = arith.constant 0.000000e+00 : f32
    %0 = vector.broadcast %cst : f32 to vector<48x128xf32>
    %c0 = arith.constant 0 : index
    %c0_0 = arith.constant 0 : index
    %1 = vector.load %arg19[%c0, %c0_0] : memref<48x128xf32, #tpu.memory_space<vmem>>, vector<48x128xf32>
    tpu.vector_store %arg19[%c0, %c0_0], %0 {strides = array<i32>} : memref<48x128xf32, #tpu.memory_space<vmem>>, vector<48x128xf32>,
    %c0_1 = arith.constant 0 : index
    %c0_2 = arith.constant 0 : index
    %2 = vector.load %arg1[%c0_1, %c0_2] : memref<128x32xf32, #tpu.memory_space<vmem>>, vector<128x32xf32>
    %3 = arith.truncf %2 : vector<128x32xf32> to vector<128x32xbf16>
    %c0_3 = arith.constant 0 : index
    %c0_4 = arith.constant 0 : index
    %4 = vector.load %arg3[%c0_3, %c0_4] : memref<32x32xbf16, #tpu.memory_space<vmem>>, vector<32x32xbf16>
    %cst_5 = arith.constant dense<0.000000e+00> : vector<128x32xf32>
    %5 = tpu.matmul %3, %4, %cst_5 {dimension_numbers = #tpu.dot_dimension_numbers<[1], [0], [0], [1], [0, 0, 1, 1], [], []>} : vector<128x32xbf16>, vector<32x32xbf16>, vector<128x32xf32> -> vector<128x32xf32>
    %c0_6 = arith.constant 0 : index
    %c0_7 = arith.constant 0 : index
    %6 = vector.load %arg4[%c0_6, %c0_7] : memref<1x32xf32, #tpu.memory_space<vmem>>, vector<1x32xf32>
    %7 = vector.broadcast %6 : vector<1x32xf32> to vector<128x32xf32>
    %8 = arith.addf %5, %7 : vector<128x32xf32>
    %cst_8 = arith.constant 0.000000e+00 : f32
    %9 = vector.broadcast %cst_8 : f32 to vector<128x32xf32>
    %10 = arith.maximumf %8, %9 : vector<128x32xf32>
    %11 = arith.truncf %10 : vector<128x32xf32> to vector<128x32xbf16>
    %c0_9 = arith.constant 0 : index
    %c0_10 = arith.constant 0 : index
    %12 = vector.load %arg5[%c0_9, %c0_10] : memref<5x32xbf16, #tpu.memory_space<vmem>>, vector<5x32xbf16>
    "tpu.trace_start"() <{level = 10 : i32, message = "hd,md->hm"}> : () -> ()
    %cst_11 = arith.constant dense<0.000000e+00> : vector<5x128xf32>
    %13 = tpu.matmul %12, %11, %cst_11 {dimension_numbers = #tpu.dot_dimension_numbers<[1], [1], [0], [0], [0, 0, 1, 0], [], []>} : vector<5x32xbf16>, vector<128x32xbf16>, vector<5x128xf32> -> vector<5x128xf32>
    "tpu.trace_stop"() : () -> ()
    %c0_12 = arith.constant 0 : index
    %c0_13 = arith.constant 0 : index
    %14 = vector.load %arg6[%c0_12, %c0_13] : memref<5x1xf32, #tpu.memory_space<vmem>>, vector<5x1xf32>
    %15 = vector.broadcast %14 : vector<5x1xf32> to vector<5x128xf32>
    %16 = arith.addf %13, %15 : vector<5x128xf32>
    %c0_14 = arith.constant 0 : index
    %c0_15 = arith.constant 0 : index
    %17 = vector.load %arg7[%c0_14, %c0_15] : memref<4x32xbf16, #tpu.memory_space<vmem>>, vector<4x32xbf16>
    "tpu.trace_start"() <{level = 10 : i32, message = "hd,md->hm"}> : () -> ()
    %cst_16 = arith.constant dense<0.000000e+00> : vector<4x128xf32>
    %18 = tpu.matmul %17, %11, %cst_16 {dimension_numbers = #tpu.dot_dimension_numbers<[1], [1], [0], [0], [0, 0, 1, 0], [], []>} : vector<4x32xbf16>, vector<128x32xbf16>, vector<4x128xf32> -> vector<4x128xf32>
    "tpu.trace_stop"() : () -> ()
    %c0_17 = arith.constant 0 : index
    %c0_18 = arith.constant 0 : index
    %19 = vector.load %arg8[%c0_17, %c0_18] : memref<4x1xf32, #tpu.memory_space<vmem>>, vector<4x1xf32>
    %20 = vector.broadcast %19 : vector<4x1xf32> to vector<4x128xf32>
    %21 = arith.addf %18, %20 : vector<4x128xf32>
    %c0_19 = arith.constant 0 : index
    %c0_20 = arith.constant 0 : index
    %22 = vector.load %arg2[%c0_19, %c0_20] : memref<4x128xf32, #tpu.memory_space<vmem>>, vector<4x128xf32>
    %cst_21 = arith.constant 9.99999974E-6 : f32
    %cst_22 = arith.constant 0.999989986 : f32
    %23 = vector.broadcast %cst_21 : f32 to vector<4x128xf32>
    %24 = arith.maximumf %23, %22 : vector<4x128xf32>
    %25 = vector.broadcast %cst_22 : f32 to vector<4x128xf32>
    %26 = arith.minimumf %25, %24 : vector<4x128xf32>
    %cst_23 = arith.constant 1.000000e+00 : f32
    %27 = vector.broadcast %cst_23 : f32 to vector<4x128xf32>
    %28 = arith.subf %27, %26 : vector<4x128xf32>
    %29 = arith.divf %26, %28 : vector<4x128xf32>
    %30 = math.log %29 : vector<4x128xf32>
    %31 = arith.addf %30, %21 : vector<4x128xf32>
    %32 = arith.negf %31 : vector<4x128xf32>
    %33 = math.exp %32 : vector<4x128xf32>
    %cst_24 = arith.constant 1.000000e+00 : f32
    %34 = vector.broadcast %cst_24 : f32 to vector<4x128xf32>
    %35 = arith.addf %34, %33 : vector<4x128xf32>
    %36 = arith.divf %34, %35 : vector<4x128xf32>
    %c0_25 = arith.constant 0 : index
    %c0_26 = arith.constant 0 : index
    %37 = vector.load %arg19[%c0_25, %c0_26] : memref<48x128xf32, #tpu.memory_space<vmem>>, vector<5x128xf32>
    tpu.vector_store %arg19[%c0_25, %c0_26], %16 {strides = array<i32>} : memref<48x128xf32, #tpu.memory_space<vmem>>, vector<5x128xf32>,
    %c8 = arith.constant 8 : index
    %c0_27 = arith.constant 0 : index
    %38 = vector.load %arg19[%c8, %c0_27] : memref<48x128xf32, #tpu.memory_space<vmem>>, vector<4x128xf32>
    tpu.vector_store %arg19[%c8, %c0_27], %36 {strides = array<i32>} : memref<48x128xf32, #tpu.memory_space<vmem>>, vector<4x128xf32>,
    %39 = arith.truncf %10 : vector<128x32xf32> to vector<128x32xbf16>
    %c0_28 = arith.constant 0 : index
    %c0_29 = arith.constant 0 : index
    %c0_30 = arith.constant 0 : index
    %40 = vector.load %arg9[%c0_28, %c0_29, %c0_30] : memref<2x32x32xbf16, #tpu.memory_space<vmem>>, vector<1x32x32xbf16>
    %41 = vector.shape_cast %40 : vector<1x32x32xbf16> to vector<32x32xbf16>
    %cst_31 = arith.constant dense<0.000000e+00> : vector<128x32xf32>
    %42 = tpu.matmul %39, %41, %cst_31 {dimension_numbers = #tpu.dot_dimension_numbers<[1], [0], [0], [1], [0, 0, 1, 1], [], []>} : vector<128x32xbf16>, vector<32x32xbf16>, vector<128x32xf32> -> vector<128x32xf32>
    %c0_32 = arith.constant 0 : index
    %c0_33 = arith.constant 0 : index
    %c0_34 = arith.constant 0 : index
    %43 = vector.load %arg10[%c0_32, %c0_33, %c0_34] : memref<2x1x32xf32, #tpu.memory_space<vmem>>, vector<1x1x32xf32>
    %44 = vector.shape_cast %43 : vector<1x1x32xf32> to vector<1x32xf32>
    %45 = vector.broadcast %44 : vector<1x32xf32> to vector<128x32xf32>
    %46 = arith.addf %42, %45 : vector<128x32xf32>
    %47 = vector.extract_strided_slice %46 {offsets = [0, 0], sizes = [64, 32], strides = [1, 1]} : vector<128x32xf32> to vector<64x32xf32>
    %48 = arith.truncf %47 : vector<64x32xf32> to vector<64x32xbf16>
    %49 = vector.extract_strided_slice %3 {offsets = [0, 0], sizes = [64, 32], strides = [1, 1]} : vector<128x32xbf16> to vector<64x32xbf16>
    "tpu.trace_start"() <{level = 10 : i32, message = "qd,kd->qk"}> : () -> ()
    %cst_35 = arith.constant dense<0.000000e+00> : vector<64x64xf32>
    %50 = tpu.matmul %48, %49, %cst_35 {dimension_numbers = #tpu.dot_dimension_numbers<[1], [1], [0], [0], [0, 0, 1, 0], [], []>} : vector<64x32xbf16>, vector<64x32xbf16>, vector<64x64xf32> -> vector<64x64xf32>
    "tpu.trace_stop"() : () -> ()
    %cst_36 = arith.constant dense<0xFF800000> : vector<64xf32>
    %51 = vector.multi_reduction <maximumf>, %50, %cst_36 [1] : vector<64x64xf32> to vector<64xf32>
    %52 = vector.shape_cast %51 : vector<64xf32> to vector<64x1xf32>
    %53 = vector.broadcast %52 : vector<64x1xf32> to vector<64x64xf32>
    %54 = arith.subf %50, %53 : vector<64x64xf32>
    %55 = math.exp %54 : vector<64x64xf32>
    %cst_37 = arith.constant dense<0.000000e+00> : vector<64xf32>
    %56 = vector.multi_reduction <add>, %55, %cst_37 [1] : vector<64x64xf32> to vector<64xf32>
    %57 = vector.shape_cast %56 : vector<64xf32> to vector<64x1xf32>
    %58 = tpu.reciprocal %57 {approx = true} : vector<64x1xf32> -> vector<64x1xf32>
    %59 = vector.broadcast %58 : vector<64x1xf32> to vector<64x64xf32>
    %60 = arith.mulf %55, %59 : vector<64x64xf32>
    %61 = arith.truncf %60 : vector<64x64xf32> to vector<64x64xbf16>
    %cst_38 = arith.constant dense<0.000000e+00> : vector<64x32xf32>
    %62 = tpu.matmul %61, %49, %cst_38 {dimension_numbers = #tpu.dot_dimension_numbers<[1], [0], [0], [1], [0, 0, 1, 1], [], []>} : vector<64x64xbf16>, vector<64x32xbf16>, vector<64x32xf32> -> vector<64x32xf32>
    %c0_39 = arith.constant 0 : index
    %c0_40 = arith.constant 0 : index
    %63 = vector.load %arg20[%c0_39, %c0_40] : memref<128x32xf32, #tpu.memory_space<vmem>>, vector<64x32xf32>
    tpu.vector_store %arg20[%c0_39, %c0_40], %62 {strides = array<i32>} : memref<128x32xf32, #tpu.memory_space<vmem>>, vector<64x32xf32>,
    %64 = vector.extract_strided_slice %46 {offsets = [64, 0], sizes = [64, 32], strides = [1, 1]} : vector<128x32xf32> to vector<64x32xf32>
    %65 = arith.truncf %64 : vector<64x32xf32> to vector<64x32xbf16>
    %66 = vector.extract_strided_slice %3 {offsets = [64, 0], sizes = [64, 32], strides = [1, 1]} : vector<128x32xbf16> to vector<64x32xbf16>
    "tpu.trace_start"() <{level = 10 : i32, message = "qd,kd->qk"}> : () -> ()
    %cst_41 = arith.constant dense<0.000000e+00> : vector<64x64xf32>
    %67 = tpu.matmul %65, %66, %cst_41 {dimension_numbers = #tpu.dot_dimension_numbers<[1], [1], [0], [0], [0, 0, 1, 0], [], []>} : vector<64x32xbf16>, vector<64x32xbf16>, vector<64x64xf32> -> vector<64x64xf32>
    "tpu.trace_stop"() : () -> ()
    %cst_42 = arith.constant dense<0xFF800000> : vector<64xf32>
    %68 = vector.multi_reduction <maximumf>, %67, %cst_42 [1] : vector<64x64xf32> to vector<64xf32>
    %69 = vector.shape_cast %68 : vector<64xf32> to vector<64x1xf32>
    %70 = vector.broadcast %69 : vector<64x1xf32> to vector<64x64xf32>
    %71 = arith.subf %67, %70 : vector<64x64xf32>
    %72 = math.exp %71 : vector<64x64xf32>
    %cst_43 = arith.constant dense<0.000000e+00> : vector<64xf32>
    %73 = vector.multi_reduction <add>, %72, %cst_43 [1] : vector<64x64xf32> to vector<64xf32>
    %74 = vector.shape_cast %73 : vector<64xf32> to vector<64x1xf32>
    %75 = tpu.reciprocal %74 {approx = true} : vector<64x1xf32> -> vector<64x1xf32>
    %76 = vector.broadcast %75 : vector<64x1xf32> to vector<64x64xf32>
    %77 = arith.mulf %72, %76 : vector<64x64xf32>
    %78 = arith.truncf %77 : vector<64x64xf32> to vector<64x64xbf16>
    %cst_44 = arith.constant dense<0.000000e+00> : vector<64x32xf32>
    %79 = tpu.matmul %78, %66, %cst_44 {dimension_numbers = #tpu.dot_dimension_numbers<[1], [0], [0], [1], [0, 0, 1, 1], [], []>} : vector<64x64xbf16>, vector<64x32xbf16>, vector<64x32xf32> -> vector<64x32xf32>
    %c64 = arith.constant 64 : index
    %c0_45 = arith.constant 0 : index
    %80 = vector.load %arg20[%c64, %c0_45] : memref<128x32xf32, #tpu.memory_space<vmem>>, vector<64x32xf32>
    tpu.vector_store %arg20[%c64, %c0_45], %79 {strides = array<i32>} : memref<128x32xf32, #tpu.memory_space<vmem>>, vector<64x32xf32>,
    %c0_46 = arith.constant 0 : index
    %c0_47 = arith.constant 0 : index
    %81 = vector.load %arg20[%c0_46, %c0_47] : memref<128x32xf32, #tpu.memory_space<vmem>>, vector<128x32xf32>
    %82 = arith.addf %10, %81 : vector<128x32xf32>
    %83 = arith.truncf %82 : vector<128x32xf32> to vector<128x32xbf16>
    %c0_48 = arith.constant 0 : index
    %c0_49 = arith.constant 0 : index
    %c0_50 = arith.constant 0 : index
    %84 = vector.load %arg11[%c0_48, %c0_49, %c0_50] : memref<2x32x32xbf16, #tpu.memory_space<vmem>>, vector<1x32x32xbf16>
    %85 = vector.shape_cast %84 : vector<1x32x32xbf16> to vector<32x32xbf16>
    %cst_51 = arith.constant dense<0.000000e+00> : vector<128x32xf32>
    %86 = tpu.matmul %83, %85, %cst_51 {dimension_numbers = #tpu.dot_dimension_numbers<[1], [0], [0], [1], [0, 0, 1, 1], [], []>} : vector<128x32xbf16>, vector<32x32xbf16>, vector<128x32xf32> -> vector<128x32xf32>
    %c0_52 = arith.constant 0 : index
    %c0_53 = arith.constant 0 : index
    %c0_54 = arith.constant 0 : index
    %87 = vector.load %arg12[%c0_52, %c0_53, %c0_54] : memref<2x1x32xf32, #tpu.memory_space<vmem>>, vector<1x1x32xf32>
    %88 = vector.shape_cast %87 : vector<1x1x32xf32> to vector<1x32xf32>
    %89 = vector.broadcast %88 : vector<1x32xf32> to vector<128x32xf32>
    %90 = arith.addf %86, %89 : vector<128x32xf32>
    %cst_55 = arith.constant 0.000000e+00 : f32
    %91 = vector.broadcast %cst_55 : f32 to vector<128x32xf32>
    %92 = arith.maximumf %90, %91 : vector<128x32xf32>
    %93 = arith.truncf %92 : vector<128x32xf32> to vector<128x32xbf16>
    %c0_56 = arith.constant 0 : index
    %c0_57 = arith.constant 0 : index
    %c0_58 = arith.constant 0 : index
    %94 = vector.load %arg13[%c0_56, %c0_57, %c0_58] : memref<2x32x32xbf16, #tpu.memory_space<vmem>>, vector<1x32x32xbf16>
    %95 = vector.shape_cast %94 : vector<1x32x32xbf16> to vector<32x32xbf16>
    %cst_59 = arith.constant dense<0.000000e+00> : vector<128x32xf32>
    %96 = tpu.matmul %93, %95, %cst_59 {dimension_numbers = #tpu.dot_dimension_numbers<[1], [0], [0], [1], [0, 0, 1, 1], [], []>} : vector<128x32xbf16>, vector<32x32xbf16>, vector<128x32xf32> -> vector<128x32xf32>
    %97 = arith.addf %82, %96 : vector<128x32xf32>
    %c0_60 = arith.constant 0 : index
    %c0_61 = arith.constant 0 : index
    %c0_62 = arith.constant 0 : index
    %98 = vector.load %arg14[%c0_60, %c0_61, %c0_62] : memref<2x1x32xf32, #tpu.memory_space<vmem>>, vector<1x1x32xf32>
    %99 = vector.shape_cast %98 : vector<1x1x32xf32> to vector<1x32xf32>
    %100 = vector.broadcast %99 : vector<1x32xf32> to vector<128x32xf32>
    %101 = arith.addf %97, %100 : vector<128x32xf32>
    %102 = arith.truncf %101 : vector<128x32xf32> to vector<128x32xbf16>
    %c0_63 = arith.constant 0 : index
    %c0_64 = arith.constant 0 : index
    %c0_65 = arith.constant 0 : index
    %103 = vector.load %arg15[%c0_63, %c0_64, %c0_65] : memref<2x5x32xbf16, #tpu.memory_space<vmem>>, vector<1x5x32xbf16>
    %104 = vector.shape_cast %103 : vector<1x5x32xbf16> to vector<5x32xbf16>
    "tpu.trace_start"() <{level = 10 : i32, message = "hd,md->hm"}> : () -> ()
    %cst_66 = arith.constant dense<0.000000e+00> : vector<5x128xf32>
    %105 = tpu.matmul %104, %102, %cst_66 {dimension_numbers = #tpu.dot_dimension_numbers<[1], [1], [0], [0], [0, 0, 1, 0], [], []>} : vector<5x32xbf16>, vector<128x32xbf16>, vector<5x128xf32> -> vector<5x128xf32>
    "tpu.trace_stop"() : () -> ()
    %c0_67 = arith.constant 0 : index
    %c0_68 = arith.constant 0 : index
    %c0_69 = arith.constant 0 : index
    %106 = vector.load %arg16[%c0_67, %c0_68, %c0_69] : memref<2x5x1xf32, #tpu.memory_space<vmem>>, vector<1x5x1xf32>
    %107 = vector.shape_cast %106 : vector<1x5x1xf32> to vector<5x1xf32>
    %108 = vector.broadcast %107 : vector<5x1xf32> to vector<5x128xf32>
    %109 = arith.addf %105, %108 : vector<5x128xf32>
    %c0_70 = arith.constant 0 : index
    %c0_71 = arith.constant 0 : index
    %c0_72 = arith.constant 0 : index
    %110 = vector.load %arg17[%c0_70, %c0_71, %c0_72] : memref<2x4x32xbf16, #tpu.memory_space<vmem>>, vector<1x4x32xbf16>
    %111 = vector.shape_cast %110 : vector<1x4x32xbf16> to vector<4x32xbf16>
    "tpu.trace_start"() <{level = 10 : i32, message = "hd,md->hm"}> : () -> ()
    %cst_73 = arith.constant dense<0.000000e+00> : vector<4x128xf32>
    %112 = tpu.matmul %111, %102, %cst_73 {dimension_numbers = #tpu.dot_dimension_numbers<[1], [1], [0], [0], [0, 0, 1, 0], [], []>} : vector<4x32xbf16>, vector<128x32xbf16>, vector<4x128xf32> -> vector<4x128xf32>
    "tpu.trace_stop"() : () -> ()
    %c0_74 = arith.constant 0 : index
    %c0_75 = arith.constant 0 : index
    %c0_76 = arith.constant 0 : index
    %113 = vector.load %arg18[%c0_74, %c0_75, %c0_76] : memref<2x4x1xf32, #tpu.memory_space<vmem>>, vector<1x4x1xf32>
    %114 = vector.shape_cast %113 : vector<1x4x1xf32> to vector<4x1xf32>
    %115 = vector.broadcast %114 : vector<4x1xf32> to vector<4x128xf32>
    %116 = arith.addf %112, %115 : vector<4x128xf32>
    %cst_77 = arith.constant 9.99999974E-6 : f32
    %cst_78 = arith.constant 0.999989986 : f32
    %117 = vector.broadcast %cst_77 : f32 to vector<4x128xf32>
    %118 = arith.maximumf %117, %36 : vector<4x128xf32>
    %119 = vector.broadcast %cst_78 : f32 to vector<4x128xf32>
    %120 = arith.minimumf %119, %118 : vector<4x128xf32>
    %cst_79 = arith.constant 1.000000e+00 : f32
    %121 = vector.broadcast %cst_79 : f32 to vector<4x128xf32>
    %122 = arith.subf %121, %120 : vector<4x128xf32>
    %123 = arith.divf %120, %122 : vector<4x128xf32>
    %124 = math.log %123 : vector<4x128xf32>
    %125 = arith.addf %124, %116 : vector<4x128xf32>
    %126 = arith.negf %125 : vector<4x128xf32>
    %127 = math.exp %126 : vector<4x128xf32>
    %cst_80 = arith.constant 1.000000e+00 : f32
    %128 = vector.broadcast %cst_80 : f32 to vector<4x128xf32>
    %129 = arith.addf %128, %127 : vector<4x128xf32>
    %130 = arith.divf %128, %129 : vector<4x128xf32>
    %c16 = arith.constant 16 : index
    %c0_81 = arith.constant 0 : index
    %131 = vector.load %arg19[%c16, %c0_81] : memref<48x128xf32, #tpu.memory_space<vmem>>, vector<5x128xf32>
    tpu.vector_store %arg19[%c16, %c0_81], %109 {strides = array<i32>} : memref<48x128xf32, #tpu.memory_space<vmem>>, vector<5x128xf32>,
    %c24 = arith.constant 24 : index
    %c0_82 = arith.constant 0 : index
    %132 = vector.load %arg19[%c24, %c0_82] : memref<48x128xf32, #tpu.memory_space<vmem>>, vector<4x128xf32>
    tpu.vector_store %arg19[%c24, %c0_82], %130 {strides = array<i32>} : memref<48x128xf32, #tpu.memory_space<vmem>>, vector<4x128xf32>,
    %133 = arith.truncf %101 : vector<128x32xf32> to vector<128x32xbf16>
    %c1 = arith.constant 1 : index
    %c0_83 = arith.constant 0 : index
    %c0_84 = arith.constant 0 : index
    %134 = vector.load %arg9[%c1, %c0_83, %c0_84] : memref<2x32x32xbf16, #tpu.memory_space<vmem>>, vector<1x32x32xbf16>
    %135 = vector.shape_cast %134 : vector<1x32x32xbf16> to vector<32x32xbf16>
    %cst_85 = arith.constant dense<0.000000e+00> : vector<128x32xf32>
    %136 = tpu.matmul %133, %135, %cst_85 {dimension_numbers = #tpu.dot_dimension_numbers<[1], [0], [0], [1], [0, 0, 1, 1], [], []>} : vector<128x32xbf16>, vector<32x32xbf16>, vector<128x32xf32> -> vector<128x32xf32>
    %c1_86 = arith.constant 1 : index
    %c0_87 = arith.constant 0 : index
    %c0_88 = arith.constant 0 : index
    %137 = vector.load %arg10[%c1_86, %c0_87, %c0_88] : memref<2x1x32xf32, #tpu.memory_space<vmem>>, vector<1x1x32xf32>
    %138 = vector.shape_cast %137 : vector<1x1x32xf32> to vector<1x32xf32>
    %139 = vector.broadcast %138 : vector<1x32xf32> to vector<128x32xf32>
    %140 = arith.addf %136, %139 : vector<128x32xf32>
    %141 = vector.extract_strided_slice %140 {offsets = [0, 0], sizes = [64, 32], strides = [1, 1]} : vector<128x32xf32> to vector<64x32xf32>
    %142 = arith.truncf %141 : vector<64x32xf32> to vector<64x32xbf16>
    %143 = vector.extract_strided_slice %3 {offsets = [0, 0], sizes = [64, 32], strides = [1, 1]} : vector<128x32xbf16> to vector<64x32xbf16>
    "tpu.trace_start"() <{level = 10 : i32, message = "qd,kd->qk"}> : () -> ()
    %cst_89 = arith.constant dense<0.000000e+00> : vector<64x64xf32>
    %144 = tpu.matmul %142, %143, %cst_89 {dimension_numbers = #tpu.dot_dimension_numbers<[1], [1], [0], [0], [0, 0, 1, 0], [], []>} : vector<64x32xbf16>, vector<64x32xbf16>, vector<64x64xf32> -> vector<64x64xf32>
    "tpu.trace_stop"() : () -> ()
    %cst_90 = arith.constant dense<0xFF800000> : vector<64xf32>
    %145 = vector.multi_reduction <maximumf>, %144, %cst_90 [1] : vector<64x64xf32> to vector<64xf32>
    %146 = vector.shape_cast %145 : vector<64xf32> to vector<64x1xf32>
    %147 = vector.broadcast %146 : vector<64x1xf32> to vector<64x64xf32>
    %148 = arith.subf %144, %147 : vector<64x64xf32>
    %149 = math.exp %148 : vector<64x64xf32>
    %cst_91 = arith.constant dense<0.000000e+00> : vector<64xf32>
    %150 = vector.multi_reduction <add>, %149, %cst_91 [1] : vector<64x64xf32> to vector<64xf32>
    %151 = vector.shape_cast %150 : vector<64xf32> to vector<64x1xf32>
    %152 = tpu.reciprocal %151 {approx = true} : vector<64x1xf32> -> vector<64x1xf32>
    %153 = vector.broadcast %152 : vector<64x1xf32> to vector<64x64xf32>
    %154 = arith.mulf %149, %153 : vector<64x64xf32>
    %155 = arith.truncf %154 : vector<64x64xf32> to vector<64x64xbf16>
    %cst_92 = arith.constant dense<0.000000e+00> : vector<64x32xf32>
    %156 = tpu.matmul %155, %143, %cst_92 {dimension_numbers = #tpu.dot_dimension_numbers<[1], [0], [0], [1], [0, 0, 1, 1], [], []>} : vector<64x64xbf16>, vector<64x32xbf16>, vector<64x32xf32> -> vector<64x32xf32>
    %c0_93 = arith.constant 0 : index
    %c0_94 = arith.constant 0 : index
    %157 = vector.load %arg20[%c0_93, %c0_94] : memref<128x32xf32, #tpu.memory_space<vmem>>, vector<64x32xf32>
    tpu.vector_store %arg20[%c0_93, %c0_94], %156 {strides = array<i32>} : memref<128x32xf32, #tpu.memory_space<vmem>>, vector<64x32xf32>,
    %158 = vector.extract_strided_slice %140 {offsets = [64, 0], sizes = [64, 32], strides = [1, 1]} : vector<128x32xf32> to vector<64x32xf32>
    %159 = arith.truncf %158 : vector<64x32xf32> to vector<64x32xbf16>
    %160 = vector.extract_strided_slice %3 {offsets = [64, 0], sizes = [64, 32], strides = [1, 1]} : vector<128x32xbf16> to vector<64x32xbf16>
    "tpu.trace_start"() <{level = 10 : i32, message = "qd,kd->qk"}> : () -> ()
    %cst_95 = arith.constant dense<0.000000e+00> : vector<64x64xf32>
    %161 = tpu.matmul %159, %160, %cst_95 {dimension_numbers = #tpu.dot_dimension_numbers<[1], [1], [0], [0], [0, 0, 1, 0], [], []>} : vector<64x32xbf16>, vector<64x32xbf16>, vector<64x64xf32> -> vector<64x64xf32>
    "tpu.trace_stop"() : () -> ()
    %cst_96 = arith.constant dense<0xFF800000> : vector<64xf32>
    %162 = vector.multi_reduction <maximumf>, %161, %cst_96 [1] : vector<64x64xf32> to vector<64xf32>
    %163 = vector.shape_cast %162 : vector<64xf32> to vector<64x1xf32>
    %164 = vector.broadcast %163 : vector<64x1xf32> to vector<64x64xf32>
    %165 = arith.subf %161, %164 : vector<64x64xf32>
    %166 = math.exp %165 : vector<64x64xf32>
    %cst_97 = arith.constant dense<0.000000e+00> : vector<64xf32>
    %167 = vector.multi_reduction <add>, %166, %cst_97 [1] : vector<64x64xf32> to vector<64xf32>
    %168 = vector.shape_cast %167 : vector<64xf32> to vector<64x1xf32>
    %169 = tpu.reciprocal %168 {approx = true} : vector<64x1xf32> -> vector<64x1xf32>
    %170 = vector.broadcast %169 : vector<64x1xf32> to vector<64x64xf32>
    %171 = arith.mulf %166, %170 : vector<64x64xf32>
    %172 = arith.truncf %171 : vector<64x64xf32> to vector<64x64xbf16>
    %cst_98 = arith.constant dense<0.000000e+00> : vector<64x32xf32>
    %173 = tpu.matmul %172, %160, %cst_98 {dimension_numbers = #tpu.dot_dimension_numbers<[1], [0], [0], [1], [0, 0, 1, 1], [], []>} : vector<64x64xbf16>, vector<64x32xbf16>, vector<64x32xf32> -> vector<64x32xf32>
    %c64_99 = arith.constant 64 : index
    %c0_100 = arith.constant 0 : index
    %174 = vector.load %arg20[%c64_99, %c0_100] : memref<128x32xf32, #tpu.memory_space<vmem>>, vector<64x32xf32>
    tpu.vector_store %arg20[%c64_99, %c0_100], %173 {strides = array<i32>} : memref<128x32xf32, #tpu.memory_space<vmem>>, vector<64x32xf32>,
    %c0_101 = arith.constant 0 : index
    %c0_102 = arith.constant 0 : index
    %175 = vector.load %arg20[%c0_101, %c0_102] : memref<128x32xf32, #tpu.memory_space<vmem>>, vector<128x32xf32>
    %176 = arith.addf %101, %175 : vector<128x32xf32>
    %177 = arith.truncf %176 : vector<128x32xf32> to vector<128x32xbf16>
    %c1_103 = arith.constant 1 : index
    %c0_104 = arith.constant 0 : index
    %c0_105 = arith.constant 0 : index
    %178 = vector.load %arg11[%c1_103, %c0_104, %c0_105] : memref<2x32x32xbf16, #tpu.memory_space<vmem>>, vector<1x32x32xbf16>
    %179 = vector.shape_cast %178 : vector<1x32x32xbf16> to vector<32x32xbf16>
    %cst_106 = arith.constant dense<0.000000e+00> : vector<128x32xf32>
    %180 = tpu.matmul %177, %179, %cst_106 {dimension_numbers = #tpu.dot_dimension_numbers<[1], [0], [0], [1], [0, 0, 1, 1], [], []>} : vector<128x32xbf16>, vector<32x32xbf16>, vector<128x32xf32> -> vector<128x32xf32>
    %c1_107 = arith.constant 1 : index
    %c0_108 = arith.constant 0 : index
    %c0_109 = arith.constant 0 : index
    %181 = vector.load %arg12[%c1_107, %c0_108, %c0_109] : memref<2x1x32xf32, #tpu.memory_space<vmem>>, vector<1x1x32xf32>
    %182 = vector.shape_cast %181 : vector<1x1x32xf32> to vector<1x32xf32>
    %183 = vector.broadcast %182 : vector<1x32xf32> to vector<128x32xf32>
    %184 = arith.addf %180, %183 : vector<128x32xf32>
    %cst_110 = arith.constant 0.000000e+00 : f32
    %185 = vector.broadcast %cst_110 : f32 to vector<128x32xf32>
    %186 = arith.maximumf %184, %185 : vector<128x32xf32>
    %187 = arith.truncf %186 : vector<128x32xf32> to vector<128x32xbf16>
    %c1_111 = arith.constant 1 : index
    %c0_112 = arith.constant 0 : index
    %c0_113 = arith.constant 0 : index
    %188 = vector.load %arg13[%c1_111, %c0_112, %c0_113] : memref<2x32x32xbf16, #tpu.memory_space<vmem>>, vector<1x32x32xbf16>
    %189 = vector.shape_cast %188 : vector<1x32x32xbf16> to vector<32x32xbf16>
    %cst_114 = arith.constant dense<0.000000e+00> : vector<128x32xf32>
    %190 = tpu.matmul %187, %189, %cst_114 {dimension_numbers = #tpu.dot_dimension_numbers<[1], [0], [0], [1], [0, 0, 1, 1], [], []>} : vector<128x32xbf16>, vector<32x32xbf16>, vector<128x32xf32> -> vector<128x32xf32>
    %191 = arith.addf %176, %190 : vector<128x32xf32>
    %c1_115 = arith.constant 1 : index
    %c0_116 = arith.constant 0 : index
    %c0_117 = arith.constant 0 : index
    %192 = vector.load %arg14[%c1_115, %c0_116, %c0_117] : memref<2x1x32xf32, #tpu.memory_space<vmem>>, vector<1x1x32xf32>
    %193 = vector.shape_cast %192 : vector<1x1x32xf32> to vector<1x32xf32>
    %194 = vector.broadcast %193 : vector<1x32xf32> to vector<128x32xf32>
    %195 = arith.addf %191, %194 : vector<128x32xf32>
    %196 = arith.truncf %195 : vector<128x32xf32> to vector<128x32xbf16>
    %c1_118 = arith.constant 1 : index
    %c0_119 = arith.constant 0 : index
    %c0_120 = arith.constant 0 : index
    %197 = vector.load %arg15[%c1_118, %c0_119, %c0_120] : memref<2x5x32xbf16, #tpu.memory_space<vmem>>, vector<1x5x32xbf16>
    %198 = vector.shape_cast %197 : vector<1x5x32xbf16> to vector<5x32xbf16>
    "tpu.trace_start"() <{level = 10 : i32, message = "hd,md->hm"}> : () -> ()
    %cst_121 = arith.constant dense<0.000000e+00> : vector<5x128xf32>
    %199 = tpu.matmul %198, %196, %cst_121 {dimension_numbers = #tpu.dot_dimension_numbers<[1], [1], [0], [0], [0, 0, 1, 0], [], []>} : vector<5x32xbf16>, vector<128x32xbf16>, vector<5x128xf32> -> vector<5x128xf32>
    "tpu.trace_stop"() : () -> ()
    %c1_122 = arith.constant 1 : index
    %c0_123 = arith.constant 0 : index
    %c0_124 = arith.constant 0 : index
    %200 = vector.load %arg16[%c1_122, %c0_123, %c0_124] : memref<2x5x1xf32, #tpu.memory_space<vmem>>, vector<1x5x1xf32>
    %201 = vector.shape_cast %200 : vector<1x5x1xf32> to vector<5x1xf32>
    %202 = vector.broadcast %201 : vector<5x1xf32> to vector<5x128xf32>
    %203 = arith.addf %199, %202 : vector<5x128xf32>
    %c1_125 = arith.constant 1 : index
    %c0_126 = arith.constant 0 : index
    %c0_127 = arith.constant 0 : index
    %204 = vector.load %arg17[%c1_125, %c0_126, %c0_127] : memref<2x4x32xbf16, #tpu.memory_space<vmem>>, vector<1x4x32xbf16>
    %205 = vector.shape_cast %204 : vector<1x4x32xbf16> to vector<4x32xbf16>
    "tpu.trace_start"() <{level = 10 : i32, message = "hd,md->hm"}> : () -> ()
    %cst_128 = arith.constant dense<0.000000e+00> : vector<4x128xf32>
    %206 = tpu.matmul %205, %196, %cst_128 {dimension_numbers = #tpu.dot_dimension_numbers<[1], [1], [0], [0], [0, 0, 1, 0], [], []>} : vector<4x32xbf16>, vector<128x32xbf16>, vector<4x128xf32> -> vector<4x128xf32>
    "tpu.trace_stop"() : () -> ()
    %c1_129 = arith.constant 1 : index
    %c0_130 = arith.constant 0 : index
    %c0_131 = arith.constant 0 : index
    %207 = vector.load %arg18[%c1_129, %c0_130, %c0_131] : memref<2x4x1xf32, #tpu.memory_space<vmem>>, vector<1x4x1xf32>
    %208 = vector.shape_cast %207 : vector<1x4x1xf32> to vector<4x1xf32>
    %209 = vector.broadcast %208 : vector<4x1xf32> to vector<4x128xf32>
    %210 = arith.addf %206, %209 : vector<4x128xf32>
    %cst_132 = arith.constant 9.99999974E-6 : f32
    %cst_133 = arith.constant 0.999989986 : f32
    %211 = vector.broadcast %cst_132 : f32 to vector<4x128xf32>
    %212 = arith.maximumf %211, %130 : vector<4x128xf32>
    %213 = vector.broadcast %cst_133 : f32 to vector<4x128xf32>
    %214 = arith.minimumf %213, %212 : vector<4x128xf32>
    %cst_134 = arith.constant 1.000000e+00 : f32
    %215 = vector.broadcast %cst_134 : f32 to vector<4x128xf32>
    %216 = arith.subf %215, %214 : vector<4x128xf32>
    %217 = arith.divf %214, %216 : vector<4x128xf32>
    %218 = math.log %217 : vector<4x128xf32>
    %219 = arith.addf %218, %210 : vector<4x128xf32>
    %220 = arith.negf %219 : vector<4x128xf32>
    %221 = math.exp %220 : vector<4x128xf32>
    %cst_135 = arith.constant 1.000000e+00 : f32
    %222 = vector.broadcast %cst_135 : f32 to vector<4x128xf32>
    %223 = arith.addf %222, %221 : vector<4x128xf32>
    %224 = arith.divf %222, %223 : vector<4x128xf32>
    %c32 = arith.constant 32 : index
    %c0_136 = arith.constant 0 : index
    %225 = vector.load %arg19[%c32, %c0_136] : memref<48x128xf32, #tpu.memory_space<vmem>>, vector<5x128xf32>
    tpu.vector_store %arg19[%c32, %c0_136], %203 {strides = array<i32>} : memref<48x128xf32, #tpu.memory_space<vmem>>, vector<5x128xf32>,
    %c40 = arith.constant 40 : index
    %c0_137 = arith.constant 0 : index
    %226 = vector.load %arg19[%c40, %c0_137] : memref<48x128xf32, #tpu.memory_space<vmem>>, vector<4x128xf32>
    tpu.vector_store %arg19[%c40, %c0_137], %224 {strides = array<i32>} : memref<48x128xf32, #tpu.memory_space<vmem>>, vector<4x128xf32>,
    return
  }
  func.func @transform_0(%arg0: i32) -> (i32, i32) {
    %c0_i32 = arith.constant 0 : i32
    %c0_i32_0 = arith.constant 0 : i32
    %c0_i32_1 = arith.constant 0 : i32
    return %c0_i32, %c0_i32_0 : i32, i32
  }
  func.func @transform_1(%arg0: i32) -> (i32, i32) {
    %c0_i32 = arith.constant 0 : i32
    %c0_i32_0 = arith.constant 0 : i32
    %c0_i32_1 = arith.constant 0 : i32
    return %c0_i32, %c0_i32_0 : i32, i32
  }
  func.func @transform_2(%arg0: i32) -> (i32, i32) {
    %c0_i32 = arith.constant 0 : i32
    %c0_i32_0 = arith.constant 0 : i32
    %c0_i32_1 = arith.constant 0 : i32
    return %c0_i32, %c0_i32_0 : i32, i32
  }
  func.func @transform_3(%arg0: i32) -> (i32, i32) {
    %c0_i32 = arith.constant 0 : i32
    %c0_i32_0 = arith.constant 0 : i32
    %c0_i32_1 = arith.constant 0 : i32
    return %c0_i32, %c0_i32_0 : i32, i32
  }
  func.func @transform_4(%arg0: i32) -> (i32, i32) {
    %c0_i32 = arith.constant 0 : i32
    %c0_i32_0 = arith.constant 0 : i32
    %c0_i32_1 = arith.constant 0 : i32
    return %c0_i32, %c0_i32_0 : i32, i32
  }
  func.func @transform_5(%arg0: i32) -> (i32, i32) {
    %c0_i32 = arith.constant 0 : i32
    %c0_i32_0 = arith.constant 0 : i32
    %c0_i32_1 = arith.constant 0 : i32
    return %c0_i32, %c0_i32_0 : i32, i32
  }
  func.func @transform_6(%arg0: i32) -> (i32, i32) {
    %c0_i32 = arith.constant 0 : i32
    %c0_i32_0 = arith.constant 0 : i32
    %c0_i32_1 = arith.constant 0 : i32
    return %c0_i32, %c0_i32_0 : i32, i32
  }
  func.func @transform_7(%arg0: i32) -> (i32, i32) {
    %c0_i32 = arith.constant 0 : i32
    %c0_i32_0 = arith.constant 0 : i32
    %c0_i32_1 = arith.constant 0 : i32
    return %c0_i32, %c0_i32_0 : i32, i32
  }
  func.func @transform_8(%arg0: i32) -> (i32, i32, i32) {
    %c0_i32 = arith.constant 0 : i32
    %c0_i32_0 = arith.constant 0 : i32
    %c0_i32_1 = arith.constant 0 : i32
    %c0_i32_2 = arith.constant 0 : i32
    return %c0_i32, %c0_i32_0, %c0_i32_1 : i32, i32, i32
  }
  func.func @transform_9(%arg0: i32) -> (i32, i32, i32) {
    %c0_i32 = arith.constant 0 : i32
    %c0_i32_0 = arith.constant 0 : i32
    %c0_i32_1 = arith.constant 0 : i32
    %c0_i32_2 = arith.constant 0 : i32
    return %c0_i32, %c0_i32_0, %c0_i32_1 : i32, i32, i32
  }
  func.func @transform_10(%arg0: i32) -> (i32, i32, i32) {
    %c0_i32 = arith.constant 0 : i32
    %c0_i32_0 = arith.constant 0 : i32
    %c0_i32_1 = arith.constant 0 : i32
    %c0_i32_2 = arith.constant 0 : i32
    return %c0_i32, %c0_i32_0, %c0_i32_1 : i32, i32, i32
  }
  func.func @transform_11(%arg0: i32) -> (i32, i32, i32) {
    %c0_i32 = arith.constant 0 : i32
    %c0_i32_0 = arith.constant 0 : i32
    %c0_i32_1 = arith.constant 0 : i32
    %c0_i32_2 = arith.constant 0 : i32
    return %c0_i32, %c0_i32_0, %c0_i32_1 : i32, i32, i32
  }
  func.func @transform_12(%arg0: i32) -> (i32, i32, i32) {
    %c0_i32 = arith.constant 0 : i32
    %c0_i32_0 = arith.constant 0 : i32
    %c0_i32_1 = arith.constant 0 : i32
    %c0_i32_2 = arith.constant 0 : i32
    return %c0_i32, %c0_i32_0, %c0_i32_1 : i32, i32, i32
  }
  func.func @transform_13(%arg0: i32) -> (i32, i32, i32) {
    %c0_i32 = arith.constant 0 : i32
    %c0_i32_0 = arith.constant 0 : i32
    %c0_i32_1 = arith.constant 0 : i32
    %c0_i32_2 = arith.constant 0 : i32
    return %c0_i32, %c0_i32_0, %c0_i32_1 : i32, i32, i32
  }
  func.func @transform_14(%arg0: i32) -> (i32, i32, i32) {
    %c0_i32 = arith.constant 0 : i32
    %c0_i32_0 = arith.constant 0 : i32
    %c0_i32_1 = arith.constant 0 : i32
    %c0_i32_2 = arith.constant 0 : i32
    return %c0_i32, %c0_i32_0, %c0_i32_1 : i32, i32, i32
  }
  func.func @transform_15(%arg0: i32) -> (i32, i32, i32) {
    %c0_i32 = arith.constant 0 : i32
    %c0_i32_0 = arith.constant 0 : i32
    %c0_i32_1 = arith.constant 0 : i32
    %c0_i32_2 = arith.constant 0 : i32
    return %c0_i32, %c0_i32_0, %c0_i32_1 : i32, i32, i32
  }
  func.func @transform_16(%arg0: i32) -> (i32, i32, i32) {
    %c0_i32 = arith.constant 0 : i32
    %c0_i32_0 = arith.constant 0 : i32
    %c0_i32_1 = arith.constant 0 : i32
    %c0_i32_2 = arith.constant 0 : i32
    return %c0_i32, %c0_i32_0, %c0_i32_1 : i32, i32, i32
  }
  func.func @transform_17(%arg0: i32) -> (i32, i32, i32) {
    %c0_i32 = arith.constant 0 : i32
    %c0_i32_0 = arith.constant 0 : i32
    %c0_i32_1 = arith.constant 0 : i32
    %c0_i32_2 = arith.constant 0 : i32
    return %c0_i32, %c0_i32_0, %c0_i32_1 : i32, i32, i32
  }
  func.func @transform_18(%arg0: i32) -> (i32, i32) {
    %c0_i32 = arith.constant 0 : i32
    %c0_i32_0 = arith.constant 0 : i32
    %c0_i32_1 = arith.constant 0 : i32
    return %c0_i32, %c0_i32_0 : i32, i32
  }
}

</mosaic_0001>

<llo_original>
// kernel: asag_forward.3
$region0: #{asag_forward.3}
  #allocation0 [shape = 'u32[]', space=smem, size = 0x4, offset = 0x4, fixed_abs, tag = 'smem constant byte address 0x4 - core index']
  #allocation1 [shape = 'u32[144,128]{1,0:T(1,128)}', space=vmem, size = 0x12000, scoped, tag = 'internal scratch']
  %s0 = inlined_call_operand.vmem [shape: bf16[512,27], index: 0, kind: input, shape index: {}]
  %s1 = inlined_call_operand.vmem [shape: bf16[27,16], index: 1, kind: input, shape index: {}]
  %s2 = inlined_call_operand.vmem [shape: f32[1,16], index: 2, kind: input, shape index: {}]
  %s3 = inlined_call_operand.vmem [shape: bf16[16,32], index: 3, kind: input, shape index: {}]
  %s4 = inlined_call_operand.vmem [shape: f32[1,32], index: 4, kind: input, shape index: {}]
  %s5 = inlined_call_operand.vmem [shape: bf16[512,16], index: 5, kind: output, shape index: {0}]
  %s6 = inlined_call_operand.hbm [shape: f32[512,32], index: 6, kind: output, shape index: {1}]
  %7 = xla_tuple %s5, %s6
  %s8 = sld [smem:[#allocation0]]
  $region61: #{asag_forward.3} parent=0
    _
  %s10 = ssub.s32 1, %s8
  %s11 = scalar_select 0, %s10, %s8
  $region1: #{asag_forward.3} parent=0
    #allocation2 [shape = 'u8[262144]{0}', space=vmem, size = 0x40000, scoped, tag = 'output window, operand 1']
    #allocation3 [shape = 's32[2]{0}', space=sflag, size = 0x8, scoped, tag = 'scoped memory for asag_forward.3']
    %12 = vsyncpa [#allocation3], 0
    %s13 = scalar_lea.sflag [#allocation3], 1
    %14 = vsyncpa %s13, 0
    loop: start=0, step=1, limit=4
    $region2: #{asag_forward.3} parent=1 // loop_pre_header
      _
    $region3: #{asag_forward.3} parent=1 // loop_header
      %s16 = sphi 0, %s20
      %p17 = scmp.ge.s32.totalorder %s16, 4
      %s26 = sphi 0, %s28
      %s29 = sphi 0, %s26
      %s30 = sphi 0, %s29
      %s46 = sphi 0, %s30
      %s50 = sphi 0, %s50
      %s52 = sphi 0, %s50
      %s53 = sphi 0, %s52
      %s67 = sphi 0, %s53
      %s71 = sphi 0, %s71
      %s73 = sphi 0, %s71
      %s74 = sphi 0, %s73
      %s88 = sphi 0, %s74
      %s92 = sphi 0, %s92
      %s94 = sphi 0, %s92
      %s95 = sphi 0, %s94
      %s109 = sphi 0, %s95
      %s113 = sphi 0, %s113
      %s115 = sphi 0, %s113
      %s116 = sphi 0, %s115
      %s130 = sphi 0, %s116
      %s136 = sphi 0, %s138
      %s139 = sphi 0, %s136
      %s140 = sphi 0, %s139
      %s156 = sphi 0, %s140
      %s162 = sphi 0, %s164
      %s165 = sphi 0, %s162
      %s166 = sphi 0, %s165
      %s182 = sphi 0, %s166
    $region4: #{asag_forward.3} parent=1 // loop_header_branch
      %19 = sbr.rel (%p17) target = $region8
    $region5: #{asag_forward.3} parent=1 // loop_body
      %s21 = ssub.s32 %s16, 1
      %s22 = ssub.s32 %s16, 2
      %s23 = sadd.s32 %s16, 1
      %s24 = ssub.s32 %s16, %s23
      %p25 = scmp.eq.s32.totalorder %s24, 0
      %s27 = sadd.s32 %s26, 1
      %s28 = scalar_select %p25, %s26, %s27
      %p31 = pneg %p25
      %p32 = scmp.eq.s32.totalorder %s16, 1
      %p33 = por %p31, %p32
      %p34 = scmp.ne.s32.totalorder %s26, %s29
      %p35 = scmp.eq.s32.totalorder %s16, 0
      %p36 = por %p34, %p35
      %p37 = scmp.ne.s32.totalorder %s26, %s29
      %p38 = scmp.eq.s32.totalorder %s21, 1
      %p39 = por %p37, %p38
      %p40 = scmp.ne.s32.totalorder %s29, %s30
      %p41 = scmp.eq.s32.totalorder %s21, 0
      %p42 = por %p40, %p41
      %p43 = scmp.ne.s32.totalorder %s29, %s30
      %p44 = scmp.eq.s32.totalorder %s22, 1
      %p45 = por %p43, %p44
      %p47 = scmp.ne.s32.totalorder %s30, %s46
      %p48 = scmp.eq.s32.totalorder %s22, 0
      %p49 = por %p47, %p48
      %s51 = sadd.s32 %s50, 1
      %p54 = scmp.eq.s32.totalorder %s16, 1
      %p55 = scmp.ne.s32.totalorder %s50, %s52
      %p56 = scmp.eq.s32.totalorder %s16, 0
      %p57 = por %p55, %p56
      %p58 = scmp.ne.s32.totalorder %s50, %s52
      %p59 = scmp.eq.s32.totalorder %s21, 1
      %p60 = por %p58, %p59
      %p61 = scmp.ne.s32.totalorder %s52, %s53
      %p62 = scmp.eq.s32.totalorder %s21, 0
      %p63 = por %p61, %p62
      %p64 = scmp.ne.s32.totalorder %s52, %s53
      %p65 = scmp.eq.s32.totalorder %s22, 1
      %p66 = por %p64, %p65
      %p68 = scmp.ne.s32.totalorder %s53, %s67
      %p69 = scmp.eq.s32.totalorder %s22, 0
      %p70 = por %p68, %p69
      %s72 = sadd.s32 %s71, 1
      %p75 = scmp.eq.s32.totalorder %s16, 1
      %p76 = scmp.ne.s32.totalorder %s71, %s73
      %p77 = scmp.eq.s32.totalorder %s16, 0
      %p78 = por %p76, %p77
      %p79 = scmp.ne.s32.totalorder %s71, %s73
      %p80 = scmp.eq.s32.totalorder %s21, 1
      %p81 = por %p79, %p80
      %p82 = scmp.ne.s32.totalorder %s73, %s74
      %p83 = scmp.eq.s32.totalorder %s21, 0
      %p84 = por %p82, %p83
      %p85 = scmp.ne.s32.totalorder %s73, %s74
      %p86 = scmp.eq.s32.totalorder %s22, 1
      %p87 = por %p85, %p86
      %p89 = scmp.ne.s32.totalorder %s74, %s88
      %p90 = scmp.eq.s32.totalorder %s22, 0
      %p91 = por %p89, %p90
      %s93 = sadd.s32 %s92, 1
      %p96 = scmp.eq.s32.totalorder %s16, 1
      %p97 = scmp.ne.s32.totalorder %s92, %s94
      %p98 = scmp.eq.s32.totalorder %s16, 0
      %p99 = por %p97, %p98
      %p100 = scmp.ne.s32.totalorder %s92, %s94
      %p101 = scmp.eq.s32.totalorder %s21, 1
      %p102 = por %p100, %p101
      %p103 = scmp.ne.s32.totalorder %s94, %s95
      %p104 = scmp.eq.s32.totalorder %s21, 0
      %p105 = por %p103, %p104
      %p106 = scmp.ne.s32.totalorder %s94, %s95
      %p107 = scmp.eq.s32.totalorder %s22, 1
      %p108 = por %p106, %p107
      %p110 = scmp.ne.s32.totalorder %s95, %s109
      %p111 = scmp.eq.s32.totalorder %s22, 0
      %p112 = por %p110, %p111
      %s114 = sadd.s32 %s113, 1
      %p117 = scmp.eq.s32.totalorder %s16, 1
      %p118 = scmp.ne.s32.totalorder %s113, %s115
      %p119 = scmp.eq.s32.totalorder %s16, 0
      %p120 = por %p118, %p119
      %p121 = scmp.ne.s32.totalorder %s113, %s115
      %p122 = scmp.eq.s32.totalorder %s21, 1
      %p123 = por %p121, %p122
      %p124 = scmp.ne.s32.totalorder %s115, %s116
      %p125 = scmp.eq.s32.totalorder %s21, 0
      %p126 = por %p124, %p125
      %p127 = scmp.ne.s32.totalorder %s115, %s116
      %p128 = scmp.eq.s32.totalorder %s22, 1
      %p129 = por %p127, %p128
      %p131 = scmp.ne.s32.totalorder %s116, %s130
      %p132 = scmp.eq.s32.totalorder %s22, 0
      %p133 = por %p131, %p132
      %s134 = ssub.s32 %s16, %s23
      %p135 = scmp.eq.s32.totalorder %s134, 0
      %s137 = sadd.s32 %s136, 1
      %s138 = scalar_select %p135, %s136, %s137
      %p141 = pneg %p135
      %p142 = scmp.eq.s32.totalorder %s16, 1
      %p143 = por %p141, %p142
      %p144 = scmp.ne.s32.totalorder %s136, %s139
      %p145 = scmp.eq.s32.totalorder %s16, 0
      %p146 = por %p144, %p145
      %p147 = scmp.ne.s32.totalorder %s136, %s139
      %p148 = scmp.eq.s32.totalorder %s21, 1
      %p149 = por %p147, %p148
      %p150 = scmp.ne.s32.totalorder %s139, %s140
      %p151 = scmp.eq.s32.totalorder %s21, 0
      %p152 = por %p150, %p151
      %p153 = scmp.ne.s32.totalorder %s139, %s140
      %p154 = scmp.eq.s32.totalorder %s22, 1
      %p155 = por %p153, %p154
      %p157 = scmp.ne.s32.totalorder %s140, %s156
      %p158 = scmp.eq.s32.totalorder %s22, 0
      %p159 = por %p157, %p158
      %s160 = ssub.s32 %s16, %s23
      %p161 = scmp.eq.s32.totalorder %s160, 0
      %s163 = sadd.s32 %s162, 1
      %s164 = scalar_select %p161, %s162, %s163
      %p167 = pneg %p161
      %p168 = scmp.eq.s32.totalorder %s16, 1
      %p169 = por %p167, %p168
      %p170 = scmp.ne.s32.totalorder %s162, %s165
      %p171 = scmp.eq.s32.totalorder %s16, 0
      %p172 = por %p170, %p171
      %p173 = scmp.ne.s32.totalorder %s162, %s165
      %p174 = scmp.eq.s32.totalorder %s21, 1
      %p175 = por %p173, %p174
      %p176 = scmp.ne.s32.totalorder %s165, %s166
      %p177 = scmp.eq.s32.totalorder %s21, 0
      %p178 = por %p176, %p177
      %p179 = scmp.ne.s32.totalorder %s165, %s166
      %p180 = scmp.eq.s32.totalorder %s22, 1
      %p181 = por %p179, %p180
      %p183 = scmp.ne.s32.totalorder %s166, %s182
      %p184 = scmp.eq.s32.totalorder %s22, 0
      %p185 = por %p183, %p184
      %p186 = scmp.le.s32.totalorder 1, %s16
      %p187 = scmp.lt.s32.totalorder %s16, 3
      %p188 = pnand %p186, %p187
      %p189 = pneg %p188
      // Predicated region
      $region9: #{asag_forward.3} parent=5 // pred_check
        _
      $region10: #{asag_forward.3} parent=5 // pred_check_branch
        %191 = sbr.rel (%p188) target = $region12
      $region11: #{asag_forward.3} parent=5 // pred_region
        %s192 = ssub.s32 %s16, 1
        // Predicated region
        $region13: #{asag_forward.3} parent=11 // pred_check
          %p193 = pneg %p63
        $region14: #{asag_forward.3} parent=11 // pred_check_branch
          %195 = sbr.rel (%p193) target = $region16
        $region15: #{asag_forward.3} parent=11 // pred_region
          _
        $region16: #{asag_forward.3} parent=11 // pred_fallthru
          _
        // Predicated region
        $region17: #{asag_forward.3} parent=11 // pred_check
          %p196 = pneg %p84
        $region18: #{asag_forward.3} parent=11 // pred_check_branch
          %198 = sbr.rel (%p196) target = $region20
        $region19: #{asag_forward.3} parent=11 // pred_region
          _
        $region20: #{asag_forward.3} parent=11 // pred_fallthru
          _
        // Predicated region
        $region21: #{asag_forward.3} parent=11 // pred_check
          %p199 = pneg %p105
        $region22: #{asag_forward.3} parent=11 // pred_check_branch
          %201 = sbr.rel (%p199) target = $region24
        $region23: #{asag_forward.3} parent=11 // pred_region
          _
        $region24: #{asag_forward.3} parent=11 // pred_fallthru
          _
        // Predicated region
        $region25: #{asag_forward.3} parent=11 // pred_check
          %p202 = pneg %p126
        $region26: #{asag_forward.3} parent=11 // pred_check_branch
          %204 = sbr.rel (%p202) target = $region28
        $region27: #{asag_forward.3} parent=11 // pred_region
          _
        $region28: #{asag_forward.3} parent=11 // pred_fallthru
          _
      $region12: #{asag_forward.3} parent=5 // pred_fallthru
        _
      %p205 = scmp.lt.s32.totalorder %s16, 2
      // Predicated region
      $region29: #{asag_forward.3} parent=5 // pred_check
        %p206 = pneg %p205
      $region30: #{asag_forward.3} parent=5 // pred_check_branch
        %208 = sbr.rel (%p206) target = $region32
      $region31: #{asag_forward.3} parent=5 // pred_region
        // Predicated region
        $region33: #{asag_forward.3} parent=31 // pred_check
          %p209 = pneg %p36
        $region34: #{asag_forward.3} parent=31 // pred_check_branch
          %211 = sbr.rel (%p209) target = $region36
        $region35: #{asag_forward.3} parent=31 // pred_region
          %s212 = smul.u32 32, %s16
          %p213 = scmp.lt.s32.totalorder %s212, 63
          %s214 = scalar_select %p213, %s212, 63
          %s215 = smul.addr %s214, 4
          %s216 = scalar_lea.vmem %s0, %s215
          %s217 = smul.u32 32, %s16
        $region36: #{asag_forward.3} parent=31 // pred_fallthru
          _
      $region32: #{asag_forward.3} parent=5 // pred_fallthru
        _
      %p218 = scmp.le.s32.totalorder 1, %s16
      %p219 = scmp.lt.s32.totalorder %s16, 3
      %p220 = pnand %p218, %p219
      %p221 = pneg %p220
      // Predicated region
      $region37: #{asag_forward.3} parent=5 // pred_check
        _
      $region38: #{asag_forward.3} parent=5 // pred_check_branch
        %223 = sbr.rel (%p220) target = $region40
      $region39: #{asag_forward.3} parent=5 // pred_region
        %s224 = ssub.s32 %s16, 1
        %s225 = smul.u32 32, %s21
        %p226 = scmp.lt.s32.totalorder %s225, 63
        %s227 = scalar_select %p226, %s225, 63
        %s228 = smul.addr %s227, 4
        %s229 = scalar_lea.vmem %s0, %s228
        %p230 = pneg %p42
        %p231 = pneg %p39
        %p232 = pneg %p63
        %p233 = pneg %p60
        %p234 = pneg %p84
        %p235 = pneg %p81
        %p236 = pneg %p105
        %p237 = pneg %p102
        %p238 = pneg %p126
        %p239 = pneg %p123
        %p240 = pneg %p152
        %p241 = pneg %p149
        %s242 = smul.u32 32, %s21
        %p243 = scmp.lt.s32.totalorder %s242, 63
        %s244 = scalar_select %p243, %s242, 63
        %s245 = smul.addr %s244, 4
        %s246 = scalar_lea.vmem %s5, %s245
        %p247 = pneg %p178
        %p248 = pneg %p175
        %s249 = sand.u32 %s165, 1
        %s250 = scalar_lea.sflag [#allocation3], %s249
        %s251 = sand.u32 %s165, 1
        %s252 = smul.addr %s251, 256
        %s253 = scalar_lea.vmem [#allocation2], %s252
        %s254 = smul.u32 32, %s21
        %p255 = scmp.lt.s32.totalorder %s254, 63
        %s256 = scalar_select %p255, %s254, 63
        %s257 = smul.addr %s256, 4
        %s258 = scalar_lea.vmem %s0, %s257
        %s259 = smul.u32 32, %s21
        %s260 = smul.u32 32, %s21
        %p261 = scmp.lt.s32.totalorder %s260, 63
        %s262 = scalar_select %p261, %s260, 63
        %s263 = smul.addr %s262, 4
        %s264 = scalar_lea.vmem %s5, %s263
        %s265 = smul.u32 32, %s21
        %s266 = smul.u32 32, %s21
        %v268 = vld [vmem:[%s258] sm:$0xf]
        %v269 = vld [vmem:[%s258 + $0x4] sm:$0xf]
        %v270 = vld [vmem:[%s258 + $0x8] sm:$0xf]
        %v271 = vld [vmem:[%s258 + $0xc] sm:$0xf]
        %v272 = vld [vmem:[%s258 + $0x10] sm:$0xf]
        %v273 = vld [vmem:[%s258 + $0x14] sm:$0xf]
        %v274 = vld [vmem:[%s258 + $0x18] sm:$0xf]
        %v275 = vld [vmem:[%s258 + $0x1c] sm:$0xf]
        %v276 = vld [vmem:[%s258 + $0x20] sm:$0xf]
        %v277 = vld [vmem:[%s258 + $0x24] sm:$0xf]
        %v278 = vld [vmem:[%s258 + $0x28] sm:$0xf]
        %v279 = vld [vmem:[%s258 + $0x2c] sm:$0xf]
        %v280 = vld [vmem:[%s258 + $0x30] sm:$0xf]
        %v281 = vld [vmem:[%s258 + $0x34] sm:$0xf]
        %v282 = vld [vmem:[%s258 + $0x38] sm:$0xf]
        %v283 = vld [vmem:[%s258 + $0x3c] sm:$0xf]
        %v284 = vld [vmem:[%s258 + $0x40] sm:$0xf]
        %v285 = vld [vmem:[%s258 + $0x44] sm:$0xf]
        %v286 = vld [vmem:[%s258 + $0x48] sm:$0xf]
        %v287 = vld [vmem:[%s258 + $0x4c] sm:$0xf]
        %v288 = vld [vmem:[%s258 + $0x50] sm:$0xf]
        %v289 = vld [vmem:[%s258 + $0x54] sm:$0xf]
        %v290 = vld [vmem:[%s258 + $0x58] sm:$0xf]
        %v291 = vld [vmem:[%s258 + $0x5c] sm:$0xf]
        %v292 = vld [vmem:[%s258 + $0x60] sm:$0xf]
        %v293 = vld [vmem:[%s258 + $0x64] sm:$0xf]
        %v294 = vld [vmem:[%s258 + $0x68] sm:$0xf]
        %v295 = vld [vmem:[%s258 + $0x6c] sm:$0xf]
        %v296 = vld [vmem:[%s258 + $0x70] sm:$0xf]
        %v297 = vld [vmem:[%s258 + $0x74] sm:$0xf]
        %v298 = vld [vmem:[%s258 + $0x78] sm:$0xf]
        %v299 = vld [vmem:[%s258 + $0x7c] sm:$0xf]
        %v300 = vld [vmem:[%s1] sm:$0xf]
        %v301 = vld [vmem:[%s1 + $0x4] sm:$0xf]
        %v302 = vld [vmem:[%s1 + $0x8] sm:$0xf]
        %v303 = vld [vmem:[%s1 + $0xc] sm:$0x3]
        %v304 = vld [vmem:[%s2] sm:$0x1]
        %v306 = vlaneseq
        %v307 = vshrl.u32 %v306, 7
        %v308 = vsub.s32 0, %v307
        %v309 = vrot.slane %v304, %v308
        %v343 = vunpack.c.l.b16 %v268
        %v344 = vunpack.c.l.b16 %v269
        %v345 = vunpack.c.l.b16 %v270
        %v346 = vunpack.c.l.b16 %v271
        %v347 = vunpack.c.l.b16 %v272
        %v348 = vunpack.c.l.b16 %v273
        %v349 = vunpack.c.l.b16 %v274
        %v350 = vunpack.c.l.b16 %v275
        %v351 = vunpack.c.l.b16 %v276
        %v352 = vunpack.c.l.b16 %v277
        %v353 = vunpack.c.l.b16 %v278
        %v354 = vunpack.c.l.b16 %v279
        %v355 = vunpack.c.l.b16 %v280
        %v356 = vunpack.c.l.b16 %v281
        %v357 = vunpack.c.l.b16 %v282
        %v358 = vunpack.c.l.b16 %v283
        %v359 = vunpack.c.l.b16 %v284
        %v360 = vunpack.c.l.b16 %v285
        %v361 = vunpack.c.l.b16 %v286
        %v362 = vunpack.c.l.b16 %v287
        %v363 = vunpack.c.l.b16 %v288
        %v364 = vunpack.c.l.b16 %v289
        %v365 = vunpack.c.l.b16 %v290
        %v366 = vunpack.c.l.b16 %v291
        %v367 = vunpack.c.l.b16 %v292
        %v368 = vunpack.c.l.b16 %v293
        %v369 = vunpack.c.l.b16 %v294
        %v370 = vunpack.c.l.b16 %v295
        %v371 = vunpack.c.l.b16 %v296
        %v372 = vunpack.c.l.b16 %v297
        %v373 = vunpack.c.l.b16 %v298
        %v374 = vunpack.c.l.b16 %v299
        %v375 = vpack.c.b16 %v344, %v343
        %v376 = vpack.c.b16 %v346, %v345
        %v377 = vpack.c.b16 %v348, %v347
        %v378 = vpack.c.b16 %v350, %v349
        %v379 = vpack.c.b16 %v352, %v351
        %v380 = vpack.c.b16 %v354, %v353
        %v381 = vpack.c.b16 %v356, %v355
        %v382 = vpack.c.b16 %v358, %v357
        %v383 = vpack.c.b16 %v360, %v359
        %v384 = vpack.c.b16 %v362, %v361
        %v385 = vpack.c.b16 %v364, %v363
        %v386 = vpack.c.b16 %v366, %v365
        %v387 = vpack.c.b16 %v368, %v367
        %v388 = vpack.c.b16 %v370, %v369
        %v389 = vpack.c.b16 %v372, %v371
        %v390 = vpack.c.b16 %v374, %v373
        %v395 = vunpack.c.l.b16 %v300
        %v396 = vunpack.c.l.b16 %v301
        %v397 = vunpack.c.l.b16 %v302
        %v398 = vunpack.c.l.b16 %v303
        %v399 = vpack.c.b16 %v396, %v395
        %v400 = vpack.c.b16 %v398, %v397
        %vm402 = vcmask 220160
        %v404 = vsel %vm402, %v375, 0
        %v407 = vsel %vm402, %v376, 0
        %v410 = vsel %vm402, %v377, 0
        %v413 = vsel %vm402, %v378, 0
        %v416 = vsel %vm402, %v379, 0
        %v419 = vsel %vm402, %v380, 0
        %v422 = vsel %vm402, %v381, 0
        %v425 = vsel %vm402, %v382, 0
        %v428 = vsel %vm402, %v383, 0
        %v431 = vsel %vm402, %v384, 0
        %v434 = vsel %vm402, %v385, 0
        %v437 = vsel %vm402, %v386, 0
        %v440 = vsel %vm402, %v387, 0
        %v443 = vsel %vm402, %v388, 0
        %v446 = vsel %vm402, %v389, 0
        %v449 = vsel %vm402, %v390, 0
        %vm451 = vcmask 1044480
        %vm452 = vcmask 1045504
        %v453 = vsel %vm451, 4294967295, 65535
        %v454 = vsel %vm452, %v453, 0
        %v456 = vand.u32 %v400, %v454
        %458 = vmatprep.subr.bf16.mxu0 0
        %459 = vmatpush1.bf16.msra.mxu0 %v399
        %460 = vmatprep.subr.bf16.mxu0 0
        %461 = vmatpush1.bf16.msra.mxu0 %v456
        %462 = vmatprep.subr.bf16.mxu0 0
        %463 = vmatpush1.bf16.msra.mxu0 0
        %464 = vmatprep.subr.bf16.mxu0 0
        %465 = vmatpush1.bf16.msra.mxu0 0
        %466 = vmatprep.subr.bf16.mxu0 0
        %467 = vmatpush1.bf16.msra.mxu0 0
        %468 = vmatprep.subr.bf16.mxu0 0
        %469 = vmatpush1.bf16.msra.mxu0 0
        %470 = vmatprep.subr.bf16.mxu0 0
        %471 = vmatpush1.bf16.msra.mxu0 0
        %472 = vmatprep.subr.bf16.mxu0 0
        %473 = vmatpush1.bf16.msra.mxu0 0
        %474 = vmatprep.subr.bf16.mxu0 0
        %475 = vmatpush1.bf16.msra.mxu0 0
        %476 = vmatprep.subr.bf16.mxu0 0
        %477 = vmatpush1.bf16.msra.mxu0 0
        %478 = vmatprep.subr.bf16.mxu0 0
        %479 = vmatpush1.bf16.msra.mxu0 0
        %480 = vmatprep.subr.bf16.mxu0 0
        %481 = vmatpush1.bf16.msra.mxu0 0
        %482 = vmatprep.subr.bf16.mxu0 0
        %483 = vmatpush1.bf16.msra.mxu0 0
        %484 = vmatprep.subr.bf16.mxu0 0
        %485 = vmatpush1.bf16.msra.mxu0 0
        %486 = vmatprep.subr.bf16.mxu0 0
        %487 = vmatpush1.bf16.msra.mxu0 0
        %488 = vmatprep.subr.bf16.mxu0 0
        %489 = vmatpush1.bf16.msra.mxu0 0
        %490 = vmatprep.mubr.bf16.mxu0 0
        %491 = vmatmul.mubr.bf16.gmra.mrb[0].mxu0 %v404
        %v492 = vpop.f32.mrb[0].mxu0
        %v493 = vadd.f32 %v309, %v492
        %v494 = vpop.f32.mrb[0].mxu0
        %v495 = vpop.f32.mrb[0].mxu0
        %v496 = vadd.f32 %v309, %v495
        %v497 = vpop.f32.mrb[0].mxu0
        %498 = vmatprep.mubr.bf16.mxu0 0
        %499 = vmatmul.mubr.bf16.gmra.mrb[0].mxu0 %v407
        %v500 = vpop.f32.mrb[0].mxu0
        %v501 = vadd.f32 %v309, %v500
        %v502 = vpop.f32.mrb[0].mxu0
        %v503 = vpop.f32.mrb[0].mxu0
        %v504 = vadd.f32 %v309, %v503
        %v505 = vpop.f32.mrb[0].mxu0
        %506 = vmatprep.mubr.bf16.mxu0 0
        %507 = vmatmul.mubr.bf16.gmra.mrb[0].mxu0 %v410
        %v508 = vpop.f32.mrb[0].mxu0
        %v509 = vadd.f32 %v309, %v508
        %v510 = vpop.f32.mrb[0].mxu0
        %v511 = vpop.f32.mrb[0].mxu0
        %v512 = vadd.f32 %v309, %v511
        %v513 = vpop.f32.mrb[0].mxu0
        %514 = vmatprep.mubr.bf16.mxu0 0
        %515 = vmatmul.mubr.bf16.gmra.mrb[0].mxu0 %v413
        %v516 = vpop.f32.mrb[0].mxu0
        %v517 = vadd.f32 %v309, %v516
        %v518 = vpop.f32.mrb[0].mxu0
        %v519 = vpop.f32.mrb[0].mxu0
        %v520 = vadd.f32 %v309, %v519
        %v521 = vpop.f32.mrb[0].mxu0
        %522 = vmatprep.mubr.bf16.mxu0 0
        %523 = vmatmul.mubr.bf16.gmra.mrb[0].mxu0 %v416
        %v524 = vpop.f32.mrb[0].mxu0
        %v525 = vadd.f32 %v309, %v524
        %v526 = vpop.f32.mrb[0].mxu0
        %v527 = vpop.f32.mrb[0].mxu0
        %v528 = vadd.f32 %v309, %v527
        %v529 = vpop.f32.mrb[0].mxu0
        %530 = vmatprep.mubr.bf16.mxu0 0
        %531 = vmatmul.mubr.bf16.gmra.mrb[0].mxu0 %v419
        %v532 = vpop.f32.mrb[0].mxu0
        %v533 = vadd.f32 %v309, %v532
        %v534 = vpop.f32.mrb[0].mxu0
        %v535 = vpop.f32.mrb[0].mxu0
        %v536 = vadd.f32 %v309, %v535
        %v537 = vpop.f32.mrb[0].mxu0
        %538 = vmatprep.mubr.bf16.mxu0 0
        %539 = vmatmul.mubr.bf16.gmra.mrb[0].mxu0 %v422
        %v540 = vpop.f32.mrb[0].mxu0
        %v541 = vadd.f32 %v309, %v540
        %v542 = vpop.f32.mrb[0].mxu0
        %v543 = vpop.f32.mrb[0].mxu0
        %v544 = vadd.f32 %v309, %v543
        %v545 = vpop.f32.mrb[0].mxu0
        %546 = vmatprep.mubr.bf16.mxu0 0
        %547 = vmatmul.mubr.bf16.gmra.mrb[0].mxu0 %v425
        %v548 = vpop.f32.mrb[0].mxu0
        %v549 = vadd.f32 %v309, %v548
        %v550 = vpop.f32.mrb[0].mxu0
        %v551 = vpop.f32.mrb[0].mxu0
        %v552 = vadd.f32 %v309, %v551
        %v553 = vpop.f32.mrb[0].mxu0
        %554 = vmatprep.mubr.bf16.mxu0 0
        %555 = vmatmul.mubr.bf16.gmra.mrb[0].mxu0 %v428
        %v556 = vpop.f32.mrb[0].mxu0
        %v557 = vadd.f32 %v309, %v556
        %v558 = vpop.f32.mrb[0].mxu0
        %v559 = vpop.f32.mrb[0].mxu0
        %v560 = vadd.f32 %v309, %v559
        %v561 = vpop.f32.mrb[0].mxu0
        %562 = vmatprep.mubr.bf16.mxu0 0
        %563 = vmatmul.mubr.bf16.gmra.mrb[0].mxu0 %v431
        %v564 = vpop.f32.mrb[0].mxu0
        %v565 = vadd.f32 %v309, %v564
        %v566 = vpop.f32.mrb[0].mxu0
        %v567 = vpop.f32.mrb[0].mxu0
        %v568 = vadd.f32 %v309, %v567
        %v569 = vpop.f32.mrb[0].mxu0
        %570 = vmatprep.mubr.bf16.mxu0 0
        %571 = vmatmul.mubr.bf16.gmra.mrb[0].mxu0 %v434
        %v572 = vpop.f32.mrb[0].mxu0
        %v573 = vadd.f32 %v309, %v572
        %v574 = vpop.f32.mrb[0].mxu0
        %v575 = vpop.f32.mrb[0].mxu0
        %v576 = vadd.f32 %v309, %v575
        %v577 = vpop.f32.mrb[0].mxu0
        %578 = vmatprep.mubr.bf16.mxu0 0
        %579 = vmatmul.mubr.bf16.gmra.mrb[0].mxu0 %v437
        %v580 = vpop.f32.mrb[0].mxu0
        %v581 = vadd.f32 %v309, %v580
        %v582 = vpop.f32.mrb[0].mxu0
        %v583 = vpop.f32.mrb[0].mxu0
        %v584 = vadd.f32 %v309, %v583
        %v585 = vpop.f32.mrb[0].mxu0
        %586 = vmatprep.mubr.bf16.mxu0 0
        %587 = vmatmul.mubr.bf16.gmra.mrb[0].mxu0 %v440
        %v588 = vpop.f32.mrb[0].mxu0
        %v589 = vadd.f32 %v309, %v588
        %v590 = vpop.f32.mrb[0].mxu0
        %v591 = vpop.f32.mrb[0].mxu0
        %v592 = vadd.f32 %v309, %v591
        %v593 = vpop.f32.mrb[0].mxu0
        %594 = vmatprep.mubr.bf16.mxu0 0
        %595 = vmatmul.mubr.bf16.gmra.mrb[0].mxu0 %v443
        %v596 = vpop.f32.mrb[0].mxu0
        %v597 = vadd.f32 %v309, %v596
        %v598 = vpop.f32.mrb[0].mxu0
        %v599 = vpop.f32.mrb[0].mxu0
        %v600 = vadd.f32 %v309, %v599
        %v601 = vpop.f32.mrb[0].mxu0
        %602 = vmatprep.mubr.bf16.mxu0 0
        %603 = vmatmul.mubr.bf16.gmra.mrb[0].mxu0 %v446
        %v604 = vpop.f32.mrb[0].mxu0
        %v605 = vadd.f32 %v309, %v604
        %v606 = vpop.f32.mrb[0].mxu0
        %v607 = vpop.f32.mrb[0].mxu0
        %v608 = vadd.f32 %v309, %v607
        %v609 = vpop.f32.mrb[0].mxu0
        %610 = vmatprep.mubr.bf16.mxu0 0
        %611 = vmatmul.mubr.bf16.gmra.mrb[0].mxu0 %v449
        %v612 = vpop.f32.mrb[0].mxu0
        %v613 = vadd.f32 %v309, %v612
        %v614 = vpop.f32.mrb[0].mxu0
        %v615 = vpop.f32.mrb[0].mxu0
        %v616 = vadd.f32 %v309, %v615
        %v617 = vpop.f32.mrb[0].mxu0
        %618 = vdwg.mxu0
        %v619 = vmax.f32 %v493, 0.0
        %v620 = vmax.f32 %v496, 0.0
        %v621 = vmax.f32 %v501, 0.0
        %v622 = vmax.f32 %v504, 0.0
        %v623 = vmax.f32 %v509, 0.0
        %v624 = vmax.f32 %v512, 0.0
        %v625 = vmax.f32 %v517, 0.0
        %v626 = vmax.f32 %v520, 0.0
        %v627 = vmax.f32 %v525, 0.0
        %v628 = vmax.f32 %v528, 0.0
        %v629 = vmax.f32 %v533, 0.0
        %v630 = vmax.f32 %v536, 0.0
        %v631 = vmax.f32 %v541, 0.0
        %v632 = vmax.f32 %v544, 0.0
        %v633 = vmax.f32 %v549, 0.0
        %v634 = vmax.f32 %v552, 0.0
        %v635 = vmax.f32 %v557, 0.0
        %v636 = vmax.f32 %v560, 0.0
        %v637 = vmax.f32 %v565, 0.0
        %v638 = vmax.f32 %v568, 0.0
        %v639 = vmax.f32 %v573, 0.0
        %v640 = vmax.f32 %v576, 0.0
        %v641 = vmax.f32 %v581, 0.0
        %v642 = vmax.f32 %v584, 0.0
        %v643 = vmax.f32 %v589, 0.0
        %v644 = vmax.f32 %v592, 0.0
        %v645 = vmax.f32 %v597, 0.0
        %v646 = vmax.f32 %v600, 0.0
        %v647 = vmax.f32 %v605, 0.0
        %v648 = vmax.f32 %v608, 0.0
        %v649 = vmax.f32 %v613, 0.0
        %v650 = vmax.f32 %v616, 0.0
        %v651 = vpack.c.bf16 %v620, %v619
        %v652 = vpack.c.bf16 %v622, %v621
        %v653 = vpack.c.bf16 %v624, %v623
        %v654 = vpack.c.bf16 %v626, %v625
        %v655 = vpack.c.bf16 %v628, %v627
        %v656 = vpack.c.bf16 %v630, %v629
        %v657 = vpack.c.bf16 %v632, %v631
        %v658 = vpack.c.bf16 %v634, %v633
        %v659 = vpack.c.bf16 %v636, %v635
        %v660 = vpack.c.bf16 %v638, %v637
        %v661 = vpack.c.bf16 %v640, %v639
        %v662 = vpack.c.bf16 %v642, %v641
        %v663 = vpack.c.bf16 %v644, %v643
        %v664 = vpack.c.bf16 %v646, %v645
        %v665 = vpack.c.bf16 %v648, %v647
        %v666 = vpack.c.bf16 %v650, %v649
        %v683 = vunpack.c.l.b16 %v651
        %v684 = vunpack.c.h.b16 %v651
        %v685 = vunpack.c.l.b16 %v652
        %v686 = vunpack.c.h.b16 %v652
        %v687 = vunpack.c.l.b16 %v653
        %v688 = vunpack.c.h.b16 %v653
        %v689 = vunpack.c.l.b16 %v654
        %v690 = vunpack.c.h.b16 %v654
        %v691 = vunpack.c.l.b16 %v655
        %v692 = vunpack.c.h.b16 %v655
        %v693 = vunpack.c.l.b16 %v656
        %v694 = vunpack.c.h.b16 %v656
        %v695 = vunpack.c.l.b16 %v657
        %v696 = vunpack.c.h.b16 %v657
        %v697 = vunpack.c.l.b16 %v658
        %v698 = vunpack.c.h.b16 %v658
        %v699 = vunpack.c.l.b16 %v659
        %v700 = vunpack.c.h.b16 %v659
        %v701 = vunpack.c.l.b16 %v660
        %v702 = vunpack.c.h.b16 %v660
        %v703 = vunpack.c.l.b16 %v661
        %v704 = vunpack.c.h.b16 %v661
        %v705 = vunpack.c.l.b16 %v662
        %v706 = vunpack.c.h.b16 %v662
        %v707 = vunpack.c.l.b16 %v663
        %v708 = vunpack.c.h.b16 %v663
        %v709 = vunpack.c.l.b16 %v664
        %v710 = vunpack.c.h.b16 %v664
        %v711 = vunpack.c.l.b16 %v665
        %v712 = vunpack.c.h.b16 %v665
        %v713 = vunpack.c.l.b16 %v666
        %v714 = vunpack.c.h.b16 %v666
        %v715 = vpack.c.b16 %v683, %v683
        %v716 = vpack.c.b16 %v684, %v684
        %v717 = vpack.c.b16 %v685, %v685
        %v718 = vpack.c.b16 %v686, %v686
        %v719 = vpack.c.b16 %v687, %v687
        %v720 = vpack.c.b16 %v688, %v688
        %v721 = vpack.c.b16 %v689, %v689
        %v722 = vpack.c.b16 %v690, %v690
        %v723 = vpack.c.b16 %v691, %v691
        %v724 = vpack.c.b16 %v692, %v692
        %v725 = vpack.c.b16 %v693, %v693
        %v726 = vpack.c.b16 %v694, %v694
        %v727 = vpack.c.b16 %v695, %v695
        %v728 = vpack.c.b16 %v696, %v696
        %v729 = vpack.c.b16 %v697, %v697
        %v730 = vpack.c.b16 %v698, %v698
        %v731 = vpack.c.b16 %v699, %v699
        %v732 = vpack.c.b16 %v700, %v700
        %v733 = vpack.c.b16 %v701, %v701
        %v734 = vpack.c.b16 %v702, %v702
        %v735 = vpack.c.b16 %v703, %v703
        %v736 = vpack.c.b16 %v704, %v704
        %v737 = vpack.c.b16 %v705, %v705
        %v738 = vpack.c.b16 %v706, %v706
        %v739 = vpack.c.b16 %v707, %v707
        %v740 = vpack.c.b16 %v708, %v708
        %v741 = vpack.c.b16 %v709, %v709
        %v742 = vpack.c.b16 %v710, %v710
        %v743 = vpack.c.b16 %v711, %v711
        %v744 = vpack.c.b16 %v712, %v712
        %v745 = vpack.c.b16 %v713, %v713
        %v746 = vpack.c.b16 %v714, %v714
        %vm779 = vcmask 125952
        %780 = vst.msk [vmem:[%s264] sm:$0xf] %vm779, %v715
        %781 = vst.msk [vmem:[%s264 + $0x4] sm:$0xf] %vm779, %v716
        %782 = vst.msk [vmem:[%s264 + $0x8] sm:$0xf] %vm779, %v717
        %783 = vst.msk [vmem:[%s264 + $0xc] sm:$0xf] %vm779, %v718
        %784 = vst.msk [vmem:[%s264 + $0x10] sm:$0xf] %vm779, %v719
        %785 = vst.msk [vmem:[%s264 + $0x14] sm:$0xf] %vm779, %v720
        %786 = vst.msk [vmem:[%s264 + $0x18] sm:$0xf] %vm779, %v721
        %787 = vst.msk [vmem:[%s264 + $0x1c] sm:$0xf] %vm779, %v722
        %788 = vst.msk [vmem:[%s264 + $0x20] sm:$0xf] %vm779, %v723
        %789 = vst.msk [vmem:[%s264 + $0x24] sm:$0xf] %vm779, %v724
        %790 = vst.msk [vmem:[%s264 + $0x28] sm:$0xf] %vm779, %v725
        %791 = vst.msk [vmem:[%s264 + $0x2c] sm:$0xf] %vm779, %v726
        %792 = vst.msk [vmem:[%s264 + $0x30] sm:$0xf] %vm779, %v727
        %793 = vst.msk [vmem:[%s264 + $0x34] sm:$0xf] %vm779, %v728
        %794 = vst.msk [vmem:[%s264 + $0x38] sm:$0xf] %vm779, %v729
        %795 = vst.msk [vmem:[%s264 + $0x3c] sm:$0xf] %vm779, %v730
        %796 = vst.msk [vmem:[%s264 + $0x40] sm:$0xf] %vm779, %v731
        %797 = vst.msk [vmem:[%s264 + $0x44] sm:$0xf] %vm779, %v732
        %798 = vst.msk [vmem:[%s264 + $0x48] sm:$0xf] %vm779, %v733
        %799 = vst.msk [vmem:[%s264 + $0x4c] sm:$0xf] %vm779, %v734
        %800 = vst.msk [vmem:[%s264 + $0x50] sm:$0xf] %vm779, %v735
        %801 = vst.msk [vmem:[%s264 + $0x54] sm:$0xf] %vm779, %v736
        %802 = vst.msk [vmem:[%s264 + $0x58] sm:$0xf] %vm779, %v737
        %803 = vst.msk [vmem:[%s264 + $0x5c] sm:$0xf] %vm779, %v738
        %804 = vst.msk [vmem:[%s264 + $0x60] sm:$0xf] %vm779, %v739
        %805 = vst.msk [vmem:[%s264 + $0x64] sm:$0xf] %vm779, %v740
        %806 = vst.msk [vmem:[%s264 + $0x68] sm:$0xf] %vm779, %v741
        %807 = vst.msk [vmem:[%s264 + $0x6c] sm:$0xf] %vm779, %v742
        %808 = vst.msk [vmem:[%s264 + $0x70] sm:$0xf] %vm779, %v743
        %809 = vst.msk [vmem:[%s264 + $0x74] sm:$0xf] %vm779, %v744
        %810 = vst.msk [vmem:[%s264 + $0x78] sm:$0xf] %vm779, %v745
        %811 = vst.msk [vmem:[%s264 + $0x7c] sm:$0xf] %vm779, %v746
        %v812 = vld [vmem:[%s3] sm:$0xf]
        %v813 = vld [vmem:[%s3 + $0x4] sm:$0xf]
        %v814 = vld [vmem:[%s4] sm:$0x1]
        %v816 = vlaneseq
        %v817 = vshrl.u32 %v816, 7
        %v818 = vsub.s32 0, %v817
        %v819 = vrot.slane %v814, %v818
        %v823 = vunpack.c.l.b16 %v812
        %v824 = vunpack.c.l.b16 %v813
        %v825 = vpack.c.b16 %v824, %v823
        %vm827 = vcmask 130048
        %v829 = vsel %vm827, %v651, 0
        %v832 = vsel %vm827, %v652, 0
        %v835 = vsel %vm827, %v653, 0
        %v838 = vsel %vm827, %v654, 0
        %v841 = vsel %vm827, %v655, 0
        %v844 = vsel %vm827, %v656, 0
        %v847 = vsel %vm827, %v657, 0
        %v850 = vsel %vm827, %v658, 0
        %v853 = vsel %vm827, %v659, 0
        %v856 = vsel %vm827, %v660, 0
        %v859 = vsel %vm827, %v661, 0
        %v862 = vsel %vm827, %v662, 0
        %v865 = vsel %vm827, %v663, 0
        %v868 = vsel %vm827, %v664, 0
        %v871 = vsel %vm827, %v665, 0
        %v874 = vsel %vm827, %v666, 0
        %876 = vmatprep.subr.bf16.mxu0 0
        %877 = vmatpush1.bf16.msra.mxu0 %v825
        %878 = vmatprep.subr.bf16.mxu0 0
        %879 = vmatpush1.bf16.msra.mxu0 0
        %880 = vmatprep.subr.bf16.mxu0 0
        %881 = vmatpush1.bf16.msra.mxu0 0
        %882 = vmatprep.subr.bf16.mxu0 0
        %883 = vmatpush1.bf16.msra.mxu0 0
        %884 = vmatprep.subr.bf16.mxu0 0
        %885 = vmatpush1.bf16.msra.mxu0 0
        %886 = vmatprep.subr.bf16.mxu0 0
        %887 = vmatpush1.bf16.msra.mxu0 0
        %888 = vmatprep.subr.bf16.mxu0 0
        %889 = vmatpush1.bf16.msra.mxu0 0
        %890 = vmatprep.subr.bf16.mxu0 0
        %891 = vmatpush1.bf16.msra.mxu0 0
        %892 = vmatprep.subr.bf16.mxu0 0
        %893 = vmatpush1.bf16.msra.mxu0 0
        %894 = vmatprep.subr.bf16.mxu0 0
        %895 = vmatpush1.bf16.msra.mxu0 0
        %896 = vmatprep.subr.bf16.mxu0 0
        %897 = vmatpush1.bf16.msra.mxu0 0
        %898 = vmatprep.subr.bf16.mxu0 0
        %899 = vmatpush1.bf16.msra.mxu0 0
        %900 = vmatprep.subr.bf16.mxu0 0
        %901 = vmatpush1.bf16.msra.mxu0 0
        %902 = vmatprep.subr.bf16.mxu0 0
        %903 = vmatpush1.bf16.msra.mxu0 0
        %904 = vmatprep.subr.bf16.mxu0 0
        %905 = vmatpush1.bf16.msra.mxu0 0
        %906 = vmatprep.subr.bf16.mxu0 0
        %907 = vmatpush1.bf16.msra.mxu0 0
        %908 = vmatprep.mubr.bf16.mxu0 0
        %909 = vmatmul.mubr.bf16.gmra.mrb[0].mxu0 %v829
        %v910 = vpop.f32.mrb[0].mxu0
        %v911 = vadd.f32 %v819, %v910
        %v912 = vpop.f32.mrb[0].mxu0
        %v913 = vpop.f32.mrb[0].mxu0
        %v914 = vadd.f32 %v819, %v913
        %v915 = vpop.f32.mrb[0].mxu0
        %916 = vmatprep.mubr.bf16.mxu0 0
        %917 = vmatmul.mubr.bf16.gmra.mrb[0].mxu0 %v832
        %v918 = vpop.f32.mrb[0].mxu0
        %v919 = vadd.f32 %v819, %v918
        %v920 = vpop.f32.mrb[0].mxu0
        %v921 = vpop.f32.mrb[0].mxu0
        %v922 = vadd.f32 %v819, %v921
        %v923 = vpop.f32.mrb[0].mxu0
        %924 = vmatprep.mubr.bf16.mxu0 0
        %925 = vmatmul.mubr.bf16.gmra.mrb[0].mxu0 %v835
        %v926 = vpop.f32.mrb[0].mxu0
        %v927 = vadd.f32 %v819, %v926
        %v928 = vpop.f32.mrb[0].mxu0
        %v929 = vpop.f32.mrb[0].mxu0
        %v930 = vadd.f32 %v819, %v929
        %v931 = vpop.f32.mrb[0].mxu0
        %932 = vmatprep.mubr.bf16.mxu0 0
        %933 = vmatmul.mubr.bf16.gmra.mrb[0].mxu0 %v838
        %v934 = vpop.f32.mrb[0].mxu0
        %v935 = vadd.f32 %v819, %v934
        %v936 = vpop.f32.mrb[0].mxu0
        %v937 = vpop.f32.mrb[0].mxu0
        %v938 = vadd.f32 %v819, %v937
        %v939 = vpop.f32.mrb[0].mxu0
        %940 = vmatprep.mubr.bf16.mxu0 0
        %941 = vmatmul.mubr.bf16.gmra.mrb[0].mxu0 %v841
        %v942 = vpop.f32.mrb[0].mxu0
        %v943 = vadd.f32 %v819, %v942
        %v944 = vpop.f32.mrb[0].mxu0
        %v945 = vpop.f32.mrb[0].mxu0
        %v946 = vadd.f32 %v819, %v945
        %v947 = vpop.f32.mrb[0].mxu0
        %948 = vmatprep.mubr.bf16.mxu0 0
        %949 = vmatmul.mubr.bf16.gmra.mrb[0].mxu0 %v844
        %v950 = vpop.f32.mrb[0].mxu0
        %v951 = vadd.f32 %v819, %v950
        %v952 = vpop.f32.mrb[0].mxu0
        %v953 = vpop.f32.mrb[0].mxu0
        %v954 = vadd.f32 %v819, %v953
        %v955 = vpop.f32.mrb[0].mxu0
        %956 = vmatprep.mubr.bf16.mxu0 0
        %957 = vmatmul.mubr.bf16.gmra.mrb[0].mxu0 %v847
        %v958 = vpop.f32.mrb[0].mxu0
        %v959 = vadd.f32 %v819, %v958
        %v960 = vpop.f32.mrb[0].mxu0
        %v961 = vpop.f32.mrb[0].mxu0
        %v962 = vadd.f32 %v819, %v961
        %v963 = vpop.f32.mrb[0].mxu0
        %964 = vmatprep.mubr.bf16.mxu0 0
        %965 = vmatmul.mubr.bf16.gmra.mrb[0].mxu0 %v850
        %v966 = vpop.f32.mrb[0].mxu0
        %v967 = vadd.f32 %v819, %v966
        %v968 = vpop.f32.mrb[0].mxu0
        %v969 = vpop.f32.mrb[0].mxu0
        %v970 = vadd.f32 %v819, %v969
        %v971 = vpop.f32.mrb[0].mxu0
        %972 = vmatprep.mubr.bf16.mxu0 0
        %973 = vmatmul.mubr.bf16.gmra.mrb[0].mxu0 %v853
        %v974 = vpop.f32.mrb[0].mxu0
        %v975 = vadd.f32 %v819, %v974
        %v976 = vpop.f32.mrb[0].mxu0
        %v977 = vpop.f32.mrb[0].mxu0
        %v978 = vadd.f32 %v819, %v977
        %v979 = vpop.f32.mrb[0].mxu0
        %980 = vmatprep.mubr.bf16.mxu0 0
        %981 = vmatmul.mubr.bf16.gmra.mrb[0].mxu0 %v856
        %v982 = vpop.f32.mrb[0].mxu0
        %v983 = vadd.f32 %v819, %v982
        %v984 = vpop.f32.mrb[0].mxu0
        %v985 = vpop.f32.mrb[0].mxu0
        %v986 = vadd.f32 %v819, %v985
        %v987 = vpop.f32.mrb[0].mxu0
        %988 = vmatprep.mubr.bf16.mxu0 0
        %989 = vmatmul.mubr.bf16.gmra.mrb[0].mxu0 %v859
        %v990 = vpop.f32.mrb[0].mxu0
        %v991 = vadd.f32 %v819, %v990
        %v992 = vpop.f32.mrb[0].mxu0
        %v993 = vpop.f32.mrb[0].mxu0
        %v994 = vadd.f32 %v819, %v993
        %v995 = vpop.f32.mrb[0].mxu0
        %996 = vmatprep.mubr.bf16.mxu0 0
        %997 = vmatmul.mubr.bf16.gmra.mrb[0].mxu0 %v862
        %v998 = vpop.f32.mrb[0].mxu0
        %v999 = vadd.f32 %v819, %v998
        %v1000 = vpop.f32.mrb[0].mxu0
        %v1001 = vpop.f32.mrb[0].mxu0
        %v1002 = vadd.f32 %v819, %v1001
        %v1003 = vpop.f32.mrb[0].mxu0
        %1004 = vmatprep.mubr.bf16.mxu0 0
        %1005 = vmatmul.mubr.bf16.gmra.mrb[0].mxu0 %v865
        %v1006 = vpop.f32.mrb[0].mxu0
        %v1007 = vadd.f32 %v819, %v1006
        %v1008 = vpop.f32.mrb[0].mxu0
        %v1009 = vpop.f32.mrb[0].mxu0
        %v1010 = vadd.f32 %v819, %v1009
        %v1011 = vpop.f32.mrb[0].mxu0
        %1012 = vmatprep.mubr.bf16.mxu0 0
        %1013 = vmatmul.mubr.bf16.gmra.mrb[0].mxu0 %v868
        %v1014 = vpop.f32.mrb[0].mxu0
        %v1015 = vadd.f32 %v819, %v1014
        %v1016 = vpop.f32.mrb[0].mxu0
        %v1017 = vpop.f32.mrb[0].mxu0
        %v1018 = vadd.f32 %v819, %v1017
        %v1019 = vpop.f32.mrb[0].mxu0
        %1020 = vmatprep.mubr.bf16.mxu0 0
        %1021 = vmatmul.mubr.bf16.gmra.mrb[0].mxu0 %v871
        %v1022 = vpop.f32.mrb[0].mxu0
        %v1023 = vadd.f32 %v819, %v1022
        %v1024 = vpop.f32.mrb[0].mxu0
        %v1025 = vpop.f32.mrb[0].mxu0
        %v1026 = vadd.f32 %v819, %v1025
        %v1027 = vpop.f32.mrb[0].mxu0
        %1028 = vmatprep.mubr.bf16.mxu0 0
        %1029 = vmatmul.mubr.bf16.gmra.mrb[0].mxu0 %v874
        %v1030 = vpop.f32.mrb[0].mxu0
        %v1031 = vadd.f32 %v819, %v1030
        %v1032 = vpop.f32.mrb[0].mxu0
        %v1033 = vpop.f32.mrb[0].mxu0
        %v1034 = vadd.f32 %v819, %v1033
        %v1035 = vpop.f32.mrb[0].mxu0
        %1036 = vdwg.mxu0
        %v1037 = vmax.f32 %v911, 0.0
        %v1038 = vmax.f32 %v914, 0.0
        %v1039 = vmax.f32 %v919, 0.0
        %v1040 = vmax.f32 %v922, 0.0
        %v1041 = vmax.f32 %v927, 0.0
        %v1042 = vmax.f32 %v930, 0.0
        %v1043 = vmax.f32 %v935, 0.0
        %v1044 = vmax.f32 %v938, 0.0
        %v1045 = vmax.f32 %v943, 0.0
        %v1046 = vmax.f32 %v946, 0.0
        %v1047 = vmax.f32 %v951, 0.0
        %v1048 = vmax.f32 %v954, 0.0
        %v1049 = vmax.f32 %v959, 0.0
        %v1050 = vmax.f32 %v962, 0.0
        %v1051 = vmax.f32 %v967, 0.0
        %v1052 = vmax.f32 %v970, 0.0
        %v1053 = vmax.f32 %v975, 0.0
        %v1054 = vmax.f32 %v978, 0.0
        %v1055 = vmax.f32 %v983, 0.0
        %v1056 = vmax.f32 %v986, 0.0
        %v1057 = vmax.f32 %v991, 0.0
        %v1058 = vmax.f32 %v994, 0.0
        %v1059 = vmax.f32 %v999, 0.0
        %v1060 = vmax.f32 %v1002, 0.0
        %v1061 = vmax.f32 %v1007, 0.0
        %v1062 = vmax.f32 %v1010, 0.0
        %v1063 = vmax.f32 %v1015, 0.0
        %v1064 = vmax.f32 %v1018, 0.0
        %v1065 = vmax.f32 %v1023, 0.0
        %v1066 = vmax.f32 %v1026, 0.0
        %v1067 = vmax.f32 %v1031, 0.0
        %v1068 = vmax.f32 %v1034, 0.0
        %vm1069 = vcmask 261120
        %1070 = vst.msk [vmem:[%s253] sm:$0xff] %vm1069, %v1037
        %1071 = vst.msk [vmem:[%s253 + $0x8] sm:$0xff] %vm1069, %v1038
        %1072 = vst.msk [vmem:[%s253 + $0x10] sm:$0xff] %vm1069, %v1039
        %1073 = vst.msk [vmem:[%s253 + $0x18] sm:$0xff] %vm1069, %v1040
        %1074 = vst.msk [vmem:[%s253 + $0x20] sm:$0xff] %vm1069, %v1041
        %1075 = vst.msk [vmem:[%s253 + $0x28] sm:$0xff] %vm1069, %v1042
        %1076 = vst.msk [vmem:[%s253 + $0x30] sm:$0xff] %vm1069, %v1043
        %1077 = vst.msk [vmem:[%s253 + $0x38] sm:$0xff] %vm1069, %v1044
        %1078 = vst.msk [vmem:[%s253 + $0x40] sm:$0xff] %vm1069, %v1045
        %1079 = vst.msk [vmem:[%s253 + $0x48] sm:$0xff] %vm1069, %v1046
        %1080 = vst.msk [vmem:[%s253 + $0x50] sm:$0xff] %vm1069, %v1047
        %1081 = vst.msk [vmem:[%s253 + $0x58] sm:$0xff] %vm1069, %v1048
        %1082 = vst.msk [vmem:[%s253 + $0x60] sm:$0xff] %vm1069, %v1049
        %1083 = vst.msk [vmem:[%s253 + $0x68] sm:$0xff] %vm1069, %v1050
        %1084 = vst.msk [vmem:[%s253 + $0x70] sm:$0xff] %vm1069, %v1051
        %1085 = vst.msk [vmem:[%s253 + $0x78] sm:$0xff] %vm1069, %v1052
        %1086 = vst.msk [vmem:[%s253 + $0x80] sm:$0xff] %vm1069, %v1053
        %1087 = vst.msk [vmem:[%s253 + $0x88] sm:$0xff] %vm1069, %v1054
        %1088 = vst.msk [vmem:[%s253 + $0x90] sm:$0xff] %vm1069, %v1055
        %1089 = vst.msk [vmem:[%s253 + $0x98] sm:$0xff] %vm1069, %v1056
        %1090 = vst.msk [vmem:[%s253 + $0xa0] sm:$0xff] %vm1069, %v1057
        %1091 = vst.msk [vmem:[%s253 + $0xa8] sm:$0xff] %vm1069, %v1058
        %1092 = vst.msk [vmem:[%s253 + $0xb0] sm:$0xff] %vm1069, %v1059
        %1093 = vst.msk [vmem:[%s253 + $0xb8] sm:$0xff] %vm1069, %v1060
        %1094 = vst.msk [vmem:[%s253 + $0xc0] sm:$0xff] %vm1069, %v1061
        %1095 = vst.msk [vmem:[%s253 + $0xc8] sm:$0xff] %vm1069, %v1062
        %1096 = vst.msk [vmem:[%s253 + $0xd0] sm:$0xff] %vm1069, %v1063
        %1097 = vst.msk [vmem:[%s253 + $0xd8] sm:$0xff] %vm1069, %v1064
        %1098 = vst.msk [vmem:[%s253 + $0xe0] sm:$0xff] %vm1069, %v1065
        %1099 = vst.msk [vmem:[%s253 + $0xe8] sm:$0xff] %vm1069, %v1066
        %1100 = vst.msk [vmem:[%s253 + $0xf0] sm:$0xff] %vm1069, %v1067
        %1101 = vst.msk [vmem:[%s253 + $0xf8] sm:$0xff] %vm1069, %v1068
        %s1102 = smul.u32 32, %s21
        %p1103 = scmp.lt.s32.totalorder %s1102, 63
        %s1104 = scalar_select %p1103, %s1102, 63
        %s1105 = smul.addr %s1104, 4
        %s1106 = scalar_lea.vmem %s5, %s1105
        %s1107 = sand.u32 %s165, 1
        %s1108 = scalar_lea.sflag [#allocation3], %s1107
        %s1109 = sand.u32 %s165, 1
        %s1110 = smul.addr %s1109, 256
        %s1111 = scalar_lea.vmem [#allocation2], %s1110
        // Predicated region
        $region41: #{asag_forward.3} parent=39 // pred_check
          %p1112 = pneg %p149
        $region42: #{asag_forward.3} parent=39 // pred_check_branch
          %1114 = sbr.rel (%p1112) target = $region44
        $region43: #{asag_forward.3} parent=39 // pred_region
          %s1115 = smul.u32 32, %s21
        $region44: #{asag_forward.3} parent=39 // pred_fallthru
          _
        // Predicated region
        $region45: #{asag_forward.3} parent=39 // pred_check
          %p1116 = pneg %p175
        $region46: #{asag_forward.3} parent=39 // pred_check_branch
          %1118 = sbr.rel (%p1116) target = $region48
        $region47: #{asag_forward.3} parent=39 // pred_region
          %s1119 = smul.u32 32, %s21
          %s1121 = ssub.s32 4096, 4096
          %1122 = vsyncadd %s1108, %s1121
          %s1123 = smul.addr %s1119, 128
          %s1124 = scalar_lea.hbm %s6, %s1123
          %s1125 = sshll.u32 %s1111, 4
          %s1126 = int_to_ptr.vmem [resolvable:$true] %s1125
          %1131 = dma.vmem_to_hbm [thread:$0]  %s1126, 4096, %s1124, %s1108, 128, 128, 8
        $region48: #{asag_forward.3} parent=39 // pred_fallthru
          _
      $region40: #{asag_forward.3} parent=5 // pred_fallthru
        _
      %p1132 = scmp.le.s32.totalorder 2, %s16
      // Predicated region
      $region49: #{asag_forward.3} parent=5 // pred_check
        %p1133 = pneg %p1132
      $region50: #{asag_forward.3} parent=5 // pred_check_branch
        %1135 = sbr.rel (%p1133) target = $region52
      $region51: #{asag_forward.3} parent=5 // pred_region
        %s1136 = ssub.s32 %s16, 2
        // Predicated region
        $region53: #{asag_forward.3} parent=51 // pred_check
          %p1137 = pneg %p155
        $region54: #{asag_forward.3} parent=51 // pred_check_branch
          %1139 = sbr.rel (%p1137) target = $region56
        $region55: #{asag_forward.3} parent=51 // pred_region
          %s1140 = smul.u32 32, %s22
          %p1141 = scmp.lt.s32.totalorder %s1140, 63
          %s1142 = scalar_select %p1141, %s1140, 63
          %s1143 = smul.addr %s1142, 4
          %s1144 = scalar_lea.vmem %s5, %s1143
        $region56: #{asag_forward.3} parent=51 // pred_fallthru
          _
        // Predicated region
        $region57: #{asag_forward.3} parent=51 // pred_check
          %p1145 = pneg %p181
        $region58: #{asag_forward.3} parent=51 // pred_check_branch
          %1147 = sbr.rel (%p1145) target = $region60
        $region59: #{asag_forward.3} parent=51 // pred_region
          %s1148 = sand.u32 %s166, 1
          %s1149 = scalar_lea.sflag [#allocation3], %s1148
          %s1150 = sand.u32 %s166, 1
          %s1151 = smul.addr %s1150, 256
          %s1152 = scalar_lea.vmem [#allocation2], %s1151
          %1153 = dma.done %s1149, 4096
        $region60: #{asag_forward.3} parent=51 // pred_fallthru
          _
      $region52: #{asag_forward.3} parent=5 // pred_fallthru
        _
    $region6: #{asag_forward.3} parent=1 // loop_footer
      %s20 = sadd.s32 1, %s16
    $region7: #{asag_forward.3} parent=1 // loop_footer_branch
      %15 = sbr.rel target = $region3
    $region8: #{asag_forward.3} parent=1 // loop_exit
      _
    %1154 = vsyncpa [#allocation3], 1
    %s1155 = scalar_lea.sflag [#allocation3], 1
    %1156 = vsyncpa %s1155, 1

// kernel: asag_forward.4
$region0: #{asag_forward.4}
  #allocation0 [shape = 'u32[]', space=smem, size = 0x4, offset = 0x4, fixed_abs, tag = 'smem constant byte address 0x4 - core index']
  #allocation1 [shape = 'u32[144,128]{1,0:T(1,128)}', space=vmem, size = 0x12000, scoped, tag = 'internal scratch']
  %s0 = inlined_call_operand.vmem [shape: bf16[128,144], index: 0, kind: input, shape index: {}]
  %s1 = inlined_call_operand.vmem [shape: bf16[144,16], index: 1, kind: input, shape index: {}]
  %s2 = inlined_call_operand.vmem [shape: f32[1,16], index: 2, kind: input, shape index: {}]
  %s3 = inlined_call_operand.vmem [shape: bf16[16,32], index: 3, kind: input, shape index: {}]
  %s4 = inlined_call_operand.vmem [shape: f32[1,32], index: 4, kind: input, shape index: {}]
  %s5 = inlined_call_operand.hbm [shape: bf16[128,16], index: 5, kind: output, shape index: {0}]
  %s6 = inlined_call_operand.vmem [shape: f32[128,32], index: 6, kind: output, shape index: {1}]
  %7 = xla_tuple %s5, %s6
  %s8 = sld [smem:[#allocation0]]
  $region38: #{asag_forward.4} parent=0
    _
  %s10 = ssub.s32 1, %s8
  %s11 = scalar_select 0, %s10, %s8
  $region1: #{asag_forward.4} parent=0
    #allocation2 [shape = 'u8[32768]{0}', space=vmem, size = 0x8000, scoped, tag = 'output window, operand 0, single buffered']
    #allocation3 [shape = 's32[1]{0}', space=sflag, size = 0x4, scoped, tag = 'scoped memory for asag_forward.4']
    %12 = vsyncpa [#allocation3], 0
    // Predicated region
    $region2: #{asag_forward.4} parent=1 // pred_check
      _
    $region3: #{asag_forward.4} parent=1 // pred_check_branch
      %14 = sbr.rel (0) target = $region5
    $region4: #{asag_forward.4} parent=1 // pred_region
      _
    $region5: #{asag_forward.4} parent=1 // pred_fallthru
      _
    // Predicated region
    $region6: #{asag_forward.4} parent=1 // pred_check
      _
    $region7: #{asag_forward.4} parent=1 // pred_check_branch
      %16 = sbr.rel (0) target = $region9
    $region8: #{asag_forward.4} parent=1 // pred_region
      _
    $region9: #{asag_forward.4} parent=1 // pred_fallthru
      _
    // Predicated region
    $region10: #{asag_forward.4} parent=1 // pred_check
      _
    $region11: #{asag_forward.4} parent=1 // pred_check_branch
      %18 = sbr.rel (0) target = $region13
    $region12: #{asag_forward.4} parent=1 // pred_region
      _
    $region13: #{asag_forward.4} parent=1 // pred_fallthru
      _
    // Predicated region
    $region14: #{asag_forward.4} parent=1 // pred_check
      _
    $region15: #{asag_forward.4} parent=1 // pred_check_branch
      %20 = sbr.rel (0) target = $region17
    $region16: #{asag_forward.4} parent=1 // pred_region
      _
    $region17: #{asag_forward.4} parent=1 // pred_fallthru
      _
    // Predicated region
    $region18: #{asag_forward.4} parent=1 // pred_check
      _
    $region19: #{asag_forward.4} parent=1 // pred_check_branch
      %22 = sbr.rel (0) target = $region21
    $region20: #{asag_forward.4} parent=1 // pred_region
      _
    $region21: #{asag_forward.4} parent=1 // pred_fallthru
      _
    %v24 = vld [vmem:[%s0] sm:$0xff]
    %v25 = vld [vmem:[%s0 + $0x8] sm:$0xff]
    %v26 = vld [vmem:[%s0 + $0x10] sm:$0xff]
    %v27 = vld [vmem:[%s0 + $0x18] sm:$0xff]
    %v28 = vld [vmem:[%s0 + $0x20] sm:$0xff]
    %v29 = vld [vmem:[%s0 + $0x28] sm:$0xff]
    %v30 = vld [vmem:[%s0 + $0x30] sm:$0xff]
    %v31 = vld [vmem:[%s0 + $0x38] sm:$0xff]
    %v32 = vld [vmem:[%s0 + $0x40] sm:$0xff]
    %v33 = vld [vmem:[%s0 + $0x48] sm:$0xff]
    %v34 = vld [vmem:[%s0 + $0x50] sm:$0xff]
    %v35 = vld [vmem:[%s0 + $0x58] sm:$0xff]
    %v36 = vld [vmem:[%s0 + $0x60] sm:$0xff]
    %v37 = vld [vmem:[%s0 + $0x68] sm:$0xff]
    %v38 = vld [vmem:[%s0 + $0x70] sm:$0xff]
    %v39 = vld [vmem:[%s0 + $0x78] sm:$0xff]
    %v40 = vld [vmem:[%s1] sm:$0xf]
    %v41 = vld [vmem:[%s1 + $0x4] sm:$0xf]
    %v42 = vld [vmem:[%s1 + $0x8] sm:$0xf]
    %v43 = vld [vmem:[%s1 + $0xc] sm:$0xf]
    %v44 = vld [vmem:[%s1 + $0x10] sm:$0xf]
    %v45 = vld [vmem:[%s1 + $0x14] sm:$0xf]
    %v46 = vld [vmem:[%s1 + $0x18] sm:$0xf]
    %v47 = vld [vmem:[%s1 + $0x1c] sm:$0xf]
    %v48 = vld [vmem:[%s1 + $0x20] sm:$0xf]
    %v49 = vld [vmem:[%s1 + $0x24] sm:$0xf]
    %v50 = vld [vmem:[%s1 + $0x28] sm:$0xf]
    %v51 = vld [vmem:[%s1 + $0x2c] sm:$0xf]
    %v52 = vld [vmem:[%s1 + $0x30] sm:$0xf]
    %v53 = vld [vmem:[%s1 + $0x34] sm:$0xf]
    %v54 = vld [vmem:[%s1 + $0x38] sm:$0xf]
    %v55 = vld [vmem:[%s1 + $0x3c] sm:$0xf]
    %v56 = vld [vmem:[%s1 + $0x40] sm:$0xf]
    %v57 = vld [vmem:[%s1 + $0x44] sm:$0xf]
    %v58 = vld [vmem:[%s2] sm:$0x1]
    %v60 = vlaneseq
    %v61 = vshrl.u32 %v60, 7
    %v62 = vsub.s32 0, %v61
    %v63 = vrot.slane %v58, %v62
    %v81 = vunpack.c.l.b16 %v24
    %v82 = vunpack.c.h.b16 %v24
    %v83 = vunpack.c.l.b16 %v25
    %v84 = vunpack.c.h.b16 %v25
    %v85 = vunpack.c.l.b16 %v26
    %v86 = vunpack.c.h.b16 %v26
    %v87 = vunpack.c.l.b16 %v27
    %v88 = vunpack.c.h.b16 %v27
    %v89 = vunpack.c.l.b16 %v28
    %v90 = vunpack.c.h.b16 %v28
    %v91 = vunpack.c.l.b16 %v29
    %v92 = vunpack.c.h.b16 %v29
    %v93 = vunpack.c.l.b16 %v30
    %v94 = vunpack.c.h.b16 %v30
    %v95 = vunpack.c.l.b16 %v31
    %v96 = vunpack.c.h.b16 %v31
    %v97 = vunpack.c.l.b16 %v32
    %v98 = vunpack.c.h.b16 %v32
    %v99 = vunpack.c.l.b16 %v33
    %v100 = vunpack.c.h.b16 %v33
    %v101 = vunpack.c.l.b16 %v34
    %v102 = vunpack.c.h.b16 %v34
    %v103 = vunpack.c.l.b16 %v35
    %v104 = vunpack.c.h.b16 %v35
    %v105 = vunpack.c.l.b16 %v36
    %v106 = vunpack.c.h.b16 %v36
    %v107 = vunpack.c.l.b16 %v37
    %v108 = vunpack.c.h.b16 %v37
    %v109 = vunpack.c.l.b16 %v38
    %v110 = vunpack.c.h.b16 %v38
    %v111 = vunpack.c.l.b16 %v39
    %v112 = vunpack.c.h.b16 %v39
    %v113 = vpack.c.b16 %v83, %v81
    %v114 = vpack.c.b16 %v84, %v82
    %v115 = vpack.c.b16 %v87, %v85
    %v116 = vpack.c.b16 %v88, %v86
    %v117 = vpack.c.b16 %v91, %v89
    %v118 = vpack.c.b16 %v92, %v90
    %v119 = vpack.c.b16 %v95, %v93
    %v120 = vpack.c.b16 %v96, %v94
    %v121 = vpack.c.b16 %v99, %v97
    %v122 = vpack.c.b16 %v100, %v98
    %v123 = vpack.c.b16 %v103, %v101
    %v124 = vpack.c.b16 %v104, %v102
    %v125 = vpack.c.b16 %v107, %v105
    %v126 = vpack.c.b16 %v108, %v106
    %v127 = vpack.c.b16 %v111, %v109
    %v128 = vpack.c.b16 %v112, %v110
    %v155 = vunpack.c.l.b16 %v40
    %v156 = vunpack.c.l.b16 %v41
    %v157 = vunpack.c.l.b16 %v42
    %v158 = vunpack.c.l.b16 %v43
    %v159 = vunpack.c.l.b16 %v44
    %v160 = vunpack.c.l.b16 %v45
    %v161 = vunpack.c.l.b16 %v46
    %v162 = vunpack.c.l.b16 %v47
    %v163 = vunpack.c.l.b16 %v48
    %v164 = vunpack.c.l.b16 %v49
    %v165 = vunpack.c.l.b16 %v50
    %v166 = vunpack.c.l.b16 %v51
    %v167 = vunpack.c.l.b16 %v52
    %v168 = vunpack.c.l.b16 %v53
    %v169 = vunpack.c.l.b16 %v54
    %v170 = vunpack.c.l.b16 %v55
    %v171 = vunpack.c.l.b16 %v56
    %v172 = vunpack.c.l.b16 %v57
    %v173 = vpack.c.b16 %v156, %v155
    %v174 = vpack.c.b16 %v158, %v157
    %v175 = vpack.c.b16 %v160, %v159
    %v176 = vpack.c.b16 %v162, %v161
    %v177 = vpack.c.b16 %v164, %v163
    %v178 = vpack.c.b16 %v166, %v165
    %v179 = vpack.c.b16 %v168, %v167
    %v180 = vpack.c.b16 %v170, %v169
    %v181 = vpack.c.b16 %v172, %v171
    %vm191 = vcmask 130048
    %v193 = vsel %vm191, %v114, 0
    %v196 = vsel %vm191, %v116, 0
    %v199 = vsel %vm191, %v118, 0
    %v202 = vsel %vm191, %v120, 0
    %v205 = vsel %vm191, %v122, 0
    %v208 = vsel %vm191, %v124, 0
    %v211 = vsel %vm191, %v126, 0
    %v214 = vsel %vm191, %v128, 0
    %216 = vmatprep.subr.bf16.mxu0 0
    %217 = vmatpush1.bf16.msra.mxu0 %v173
    %218 = vmatprep.subr.bf16.mxu0 0
    %219 = vmatpush1.bf16.msra.mxu0 %v174
    %220 = vmatprep.subr.bf16.mxu0 0
    %221 = vmatpush1.bf16.msra.mxu0 %v175
    %222 = vmatprep.subr.bf16.mxu0 0
    %223 = vmatpush1.bf16.msra.mxu0 %v176
    %224 = vmatprep.subr.bf16.mxu0 0
    %225 = vmatpush1.bf16.msra.mxu0 %v177
    %226 = vmatprep.subr.bf16.mxu0 0
    %227 = vmatpush1.bf16.msra.mxu0 %v178
    %228 = vmatprep.subr.bf16.mxu0 0
    %229 = vmatpush1.bf16.msra.mxu0 %v179
    %230 = vmatprep.subr.bf16.mxu0 0
    %231 = vmatpush1.bf16.msra.mxu0 %v180
    %232 = vmatprep.subr.bf16.mxu0 0
    %233 = vmatpush1.bf16.msra.mxu0 %v181
    %234 = vmatprep.subr.bf16.mxu0 0
    %235 = vmatpush1.bf16.msra.mxu0 0
    %236 = vmatprep.subr.bf16.mxu0 0
    %237 = vmatpush1.bf16.msra.mxu0 0
    %238 = vmatprep.subr.bf16.mxu0 0
    %239 = vmatpush1.bf16.msra.mxu0 0
    %240 = vmatprep.subr.bf16.mxu0 0
    %241 = vmatpush1.bf16.msra.mxu0 0
    %242 = vmatprep.subr.bf16.mxu0 0
    %243 = vmatpush1.bf16.msra.mxu0 0
    %244 = vmatprep.subr.bf16.mxu0 0
    %245 = vmatpush1.bf16.msra.mxu0 0
    %246 = vmatprep.subr.bf16.mxu0 0
    %247 = vmatpush1.bf16.msra.mxu0 0
    %248 = vmatprep.mubr.bf16.mxu0 %v193
    %249 = vmatmul.mubr.bf16.gmra.mrb[0].mxu0 %v113
    %v250 = vpop.f32.mrb[0].mxu0
    %v251 = vadd.f32 %v63, %v250
    %v252 = vpop.f32.mrb[0].mxu0
    %v253 = vpop.f32.mrb[0].mxu0
    %v254 = vadd.f32 %v63, %v253
    %v255 = vpop.f32.mrb[0].mxu0
    %256 = vmatprep.mubr.bf16.mxu0 %v196
    %257 = vmatmul.mubr.bf16.gmra.mrb[0].mxu0 %v115
    %v258 = vpop.f32.mrb[0].mxu0
    %v259 = vadd.f32 %v63, %v258
    %v260 = vpop.f32.mrb[0].mxu0
    %v261 = vpop.f32.mrb[0].mxu0
    %v262 = vadd.f32 %v63, %v261
    %v263 = vpop.f32.mrb[0].mxu0
    %264 = vmatprep.mubr.bf16.mxu0 %v199
    %265 = vmatmul.mubr.bf16.gmra.mrb[0].mxu0 %v117
    %v266 = vpop.f32.mrb[0].mxu0
    %v267 = vadd.f32 %v63, %v266
    %v268 = vpop.f32.mrb[0].mxu0
    %v269 = vpop.f32.mrb[0].mxu0
    %v270 = vadd.f32 %v63, %v269
    %v271 = vpop.f32.mrb[0].mxu0
    %272 = vmatprep.mubr.bf16.mxu0 %v202
    %273 = vmatmul.mubr.bf16.gmra.mrb[0].mxu0 %v119
    %v274 = vpop.f32.mrb[0].mxu0
    %v275 = vadd.f32 %v63, %v274
    %v276 = vpop.f32.mrb[0].mxu0
    %v277 = vpop.f32.mrb[0].mxu0
    %v278 = vadd.f32 %v63, %v277
    %v279 = vpop.f32.mrb[0].mxu0
    %280 = vmatprep.mubr.bf16.mxu0 %v205
    %281 = vmatmul.mubr.bf16.gmra.mrb[0].mxu0 %v121
    %v282 = vpop.f32.mrb[0].mxu0
    %v283 = vadd.f32 %v63, %v282
    %v284 = vpop.f32.mrb[0].mxu0
    %v285 = vpop.f32.mrb[0].mxu0
    %v286 = vadd.f32 %v63, %v285
    %v287 = vpop.f32.mrb[0].mxu0
    %288 = vmatprep.mubr.bf16.mxu0 %v208
    %289 = vmatmul.mubr.bf16.gmra.mrb[0].mxu0 %v123
    %v290 = vpop.f32.mrb[0].mxu0
    %v291 = vadd.f32 %v63, %v290
    %v292 = vpop.f32.mrb[0].mxu0
    %v293 = vpop.f32.mrb[0].mxu0
    %v294 = vadd.f32 %v63, %v293
    %v295 = vpop.f32.mrb[0].mxu0
    %296 = vmatprep.mubr.bf16.mxu0 %v211
    %297 = vmatmul.mubr.bf16.gmra.mrb[0].mxu0 %v125
    %v298 = vpop.f32.mrb[0].mxu0
    %v299 = vadd.f32 %v63, %v298
    %v300 = vpop.f32.mrb[0].mxu0
    %v301 = vpop.f32.mrb[0].mxu0
    %v302 = vadd.f32 %v63, %v301
    %v303 = vpop.f32.mrb[0].mxu0
    %304 = vmatprep.mubr.bf16.mxu0 %v214
    %305 = vmatmul.mubr.bf16.gmra.mrb[0].mxu0 %v127
    %v306 = vpop.f32.mrb[0].mxu0
    %v307 = vadd.f32 %v63, %v306
    %v308 = vpop.f32.mrb[0].mxu0
    %v309 = vpop.f32.mrb[0].mxu0
    %v310 = vadd.f32 %v63, %v309
    %v311 = vpop.f32.mrb[0].mxu0
    %312 = vdwg.mxu0
    %v313 = vmax.f32 %v251, 0.0
    %v314 = vmax.f32 %v254, 0.0
    %v315 = vmax.f32 %v259, 0.0
    %v316 = vmax.f32 %v262, 0.0
    %v317 = vmax.f32 %v267, 0.0
    %v318 = vmax.f32 %v270, 0.0
    %v319 = vmax.f32 %v275, 0.0
    %v320 = vmax.f32 %v278, 0.0
    %v321 = vmax.f32 %v283, 0.0
    %v322 = vmax.f32 %v286, 0.0
    %v323 = vmax.f32 %v291, 0.0
    %v324 = vmax.f32 %v294, 0.0
    %v325 = vmax.f32 %v299, 0.0
    %v326 = vmax.f32 %v302, 0.0
    %v327 = vmax.f32 %v307, 0.0
    %v328 = vmax.f32 %v310, 0.0
    %v329 = vpack.c.bf16 %v314, %v313
    %v330 = vpack.c.bf16 %v316, %v315
    %v331 = vpack.c.bf16 %v318, %v317
    %v332 = vpack.c.bf16 %v320, %v319
    %v333 = vpack.c.bf16 %v322, %v321
    %v334 = vpack.c.bf16 %v324, %v323
    %v335 = vpack.c.bf16 %v326, %v325
    %v336 = vpack.c.bf16 %v328, %v327
    %v345 = vunpack.c.l.b16 %v329
    %v346 = vunpack.c.h.b16 %v329
    %v347 = vunpack.c.l.b16 %v330
    %v348 = vunpack.c.h.b16 %v330
    %v349 = vunpack.c.l.b16 %v331
    %v350 = vunpack.c.h.b16 %v331
    %v351 = vunpack.c.l.b16 %v332
    %v352 = vunpack.c.h.b16 %v332
    %v353 = vunpack.c.l.b16 %v333
    %v354 = vunpack.c.h.b16 %v333
    %v355 = vunpack.c.l.b16 %v334
    %v356 = vunpack.c.h.b16 %v334
    %v357 = vunpack.c.l.b16 %v335
    %v358 = vunpack.c.h.b16 %v335
    %v359 = vunpack.c.l.b16 %v336
    %v360 = vunpack.c.h.b16 %v336
    %v361 = vpack.c.b16 %v345, %v345
    %v362 = vpack.c.b16 %v346, %v346
    %v363 = vpack.c.b16 %v347, %v347
    %v364 = vpack.c.b16 %v348, %v348
    %v365 = vpack.c.b16 %v349, %v349
    %v366 = vpack.c.b16 %v350, %v350
    %v367 = vpack.c.b16 %v351, %v351
    %v368 = vpack.c.b16 %v352, %v352
    %v369 = vpack.c.b16 %v353, %v353
    %v370 = vpack.c.b16 %v354, %v354
    %v371 = vpack.c.b16 %v355, %v355
    %v372 = vpack.c.b16 %v356, %v356
    %v373 = vpack.c.b16 %v357, %v357
    %v374 = vpack.c.b16 %v358, %v358
    %v375 = vpack.c.b16 %v359, %v359
    %v376 = vpack.c.b16 %v360, %v360
    %vm393 = vcmask 125952
    %394 = vst.msk [vmem:[#allocation2] sm:$0xf] %vm393, %v361
    %395 = vst.msk [vmem:[#allocation2 + $0x4] sm:$0xf] %vm393, %v362
    %396 = vst.msk [vmem:[#allocation2 + $0x8] sm:$0xf] %vm393, %v363
    %397 = vst.msk [vmem:[#allocation2 + $0xc] sm:$0xf] %vm393, %v364
    %398 = vst.msk [vmem:[#allocation2 + $0x10] sm:$0xf] %vm393, %v365
    %399 = vst.msk [vmem:[#allocation2 + $0x14] sm:$0xf] %vm393, %v366
    %400 = vst.msk [vmem:[#allocation2 + $0x18] sm:$0xf] %vm393, %v367
    %401 = vst.msk [vmem:[#allocation2 + $0x1c] sm:$0xf] %vm393, %v368
    %402 = vst.msk [vmem:[#allocation2 + $0x20] sm:$0xf] %vm393, %v369
    %403 = vst.msk [vmem:[#allocation2 + $0x24] sm:$0xf] %vm393, %v370
    %404 = vst.msk [vmem:[#allocation2 + $0x28] sm:$0xf] %vm393, %v371
    %405 = vst.msk [vmem:[#allocation2 + $0x2c] sm:$0xf] %vm393, %v372
    %406 = vst.msk [vmem:[#allocation2 + $0x30] sm:$0xf] %vm393, %v373
    %407 = vst.msk [vmem:[#allocation2 + $0x34] sm:$0xf] %vm393, %v374
    %408 = vst.msk [vmem:[#allocation2 + $0x38] sm:$0xf] %vm393, %v375
    %409 = vst.msk [vmem:[#allocation2 + $0x3c] sm:$0xf] %vm393, %v376
    %v410 = vld [vmem:[%s3] sm:$0xf]
    %v411 = vld [vmem:[%s3 + $0x4] sm:$0xf]
    %v412 = vld [vmem:[%s4] sm:$0x1]
    %v414 = vlaneseq
    %v415 = vshrl.u32 %v414, 7
    %v416 = vsub.s32 0, %v415
    %v417 = vrot.slane %v412, %v416
    %v421 = vunpack.c.l.b16 %v410
    %v422 = vunpack.c.l.b16 %v411
    %v423 = vpack.c.b16 %v422, %v421
    %v426 = vsel %vm191, %v329, 0
    %v429 = vsel %vm191, %v330, 0
    %v432 = vsel %vm191, %v331, 0
    %v435 = vsel %vm191, %v332, 0
    %v438 = vsel %vm191, %v333, 0
    %v441 = vsel %vm191, %v334, 0
    %v444 = vsel %vm191, %v335, 0
    %v447 = vsel %vm191, %v336, 0
    %449 = vmatprep.subr.bf16.mxu0 0
    %450 = vmatpush1.bf16.msra.mxu0 %v423
    %451 = vmatprep.subr.bf16.mxu0 0
    %452 = vmatpush1.bf16.msra.mxu0 0
    %453 = vmatprep.subr.bf16.mxu0 0
    %454 = vmatpush1.bf16.msra.mxu0 0
    %455 = vmatprep.subr.bf16.mxu0 0
    %456 = vmatpush1.bf16.msra.mxu0 0
    %457 = vmatprep.subr.bf16.mxu0 0
    %458 = vmatpush1.bf16.msra.mxu0 0
    %459 = vmatprep.subr.bf16.mxu0 0
    %460 = vmatpush1.bf16.msra.mxu0 0
    %461 = vmatprep.subr.bf16.mxu0 0
    %462 = vmatpush1.bf16.msra.mxu0 0
    %463 = vmatprep.subr.bf16.mxu0 0
    %464 = vmatpush1.bf16.msra.mxu0 0
    %465 = vmatprep.subr.bf16.mxu0 0
    %466 = vmatpush1.bf16.msra.mxu0 0
    %467 = vmatprep.subr.bf16.mxu0 0
    %468 = vmatpush1.bf16.msra.mxu0 0
    %469 = vmatprep.subr.bf16.mxu0 0
    %470 = vmatpush1.bf16.msra.mxu0 0
    %471 = vmatprep.subr.bf16.mxu0 0
    %472 = vmatpush1.bf16.msra.mxu0 0
    %473 = vmatprep.subr.bf16.mxu0 0
    %474 = vmatpush1.bf16.msra.mxu0 0
    %475 = vmatprep.subr.bf16.mxu0 0
    %476 = vmatpush1.bf16.msra.mxu0 0
    %477 = vmatprep.subr.bf16.mxu0 0
    %478 = vmatpush1.bf16.msra.mxu0 0
    %479 = vmatprep.subr.bf16.mxu0 0
    %480 = vmatpush1.bf16.msra.mxu0 0
    %481 = vmatprep.mubr.bf16.mxu0 0
    %482 = vmatmul.mubr.bf16.gmra.mrb[0].mxu0 %v426
    %v483 = vpop.f32.mrb[0].mxu0
    %v484 = vadd.f32 %v417, %v483
    %v485 = vpop.f32.mrb[0].mxu0
    %v486 = vpop.f32.mrb[0].mxu0
    %v487 = vadd.f32 %v417, %v486
    %v488 = vpop.f32.mrb[0].mxu0
    %489 = vmatprep.mubr.bf16.mxu0 0
    %490 = vmatmul.mubr.bf16.gmra.mrb[0].mxu0 %v429
    %v491 = vpop.f32.mrb[0].mxu0
    %v492 = vadd.f32 %v417, %v491
    %v493 = vpop.f32.mrb[0].mxu0
    %v494 = vpop.f32.mrb[0].mxu0
    %v495 = vadd.f32 %v417, %v494
    %v496 = vpop.f32.mrb[0].mxu0
    %497 = vmatprep.mubr.bf16.mxu0 0
    %498 = vmatmul.mubr.bf16.gmra.mrb[0].mxu0 %v432
    %v499 = vpop.f32.mrb[0].mxu0
    %v500 = vadd.f32 %v417, %v499
    %v501 = vpop.f32.mrb[0].mxu0
    %v502 = vpop.f32.mrb[0].mxu0
    %v503 = vadd.f32 %v417, %v502
    %v504 = vpop.f32.mrb[0].mxu0
    %505 = vmatprep.mubr.bf16.mxu0 0
    %506 = vmatmul.mubr.bf16.gmra.mrb[0].mxu0 %v435
    %v507 = vpop.f32.mrb[0].mxu0
    %v508 = vadd.f32 %v417, %v507
    %v509 = vpop.f32.mrb[0].mxu0
    %v510 = vpop.f32.mrb[0].mxu0
    %v511 = vadd.f32 %v417, %v510
    %v512 = vpop.f32.mrb[0].mxu0
    %513 = vmatprep.mubr.bf16.mxu0 0
    %514 = vmatmul.mubr.bf16.gmra.mrb[0].mxu0 %v438
    %v515 = vpop.f32.mrb[0].mxu0
    %v516 = vadd.f32 %v417, %v515
    %v517 = vpop.f32.mrb[0].mxu0
    %v518 = vpop.f32.mrb[0].mxu0
    %v519 = vadd.f32 %v417, %v518
    %v520 = vpop.f32.mrb[0].mxu0
    %521 = vmatprep.mubr.bf16.mxu0 0
    %522 = vmatmul.mubr.bf16.gmra.mrb[0].mxu0 %v441
    %v523 = vpop.f32.mrb[0].mxu0
    %v524 = vadd.f32 %v417, %v523
    %v525 = vpop.f32.mrb[0].mxu0
    %v526 = vpop.f32.mrb[0].mxu0
    %v527 = vadd.f32 %v417, %v526
    %v528 = vpop.f32.mrb[0].mxu0
    %529 = vmatprep.mubr.bf16.mxu0 0
    %530 = vmatmul.mubr.bf16.gmra.mrb[0].mxu0 %v444
    %v531 = vpop.f32.mrb[0].mxu0
    %v532 = vadd.f32 %v417, %v531
    %v533 = vpop.f32.mrb[0].mxu0
    %v534 = vpop.f32.mrb[0].mxu0
    %v535 = vadd.f32 %v417, %v534
    %v536 = vpop.f32.mrb[0].mxu0
    %537 = vmatprep.mubr.bf16.mxu0 0
    %538 = vmatmul.mubr.bf16.gmra.mrb[0].mxu0 %v447
    %v539 = vpop.f32.mrb[0].mxu0
    %v540 = vadd.f32 %v417, %v539
    %v541 = vpop.f32.mrb[0].mxu0
    %v542 = vpop.f32.mrb[0].mxu0
    %v543 = vadd.f32 %v417, %v542
    %v544 = vpop.f32.mrb[0].mxu0
    %545 = vdwg.mxu0
    %v546 = vmax.f32 %v484, 0.0
    %v547 = vmax.f32 %v487, 0.0
    %v548 = vmax.f32 %v492, 0.0
    %v549 = vmax.f32 %v495, 0.0
    %v550 = vmax.f32 %v500, 0.0
    %v551 = vmax.f32 %v503, 0.0
    %v552 = vmax.f32 %v508, 0.0
    %v553 = vmax.f32 %v511, 0.0
    %v554 = vmax.f32 %v516, 0.0
    %v555 = vmax.f32 %v519, 0.0
    %v556 = vmax.f32 %v524, 0.0
    %v557 = vmax.f32 %v527, 0.0
    %v558 = vmax.f32 %v532, 0.0
    %v559 = vmax.f32 %v535, 0.0
    %v560 = vmax.f32 %v540, 0.0
    %v561 = vmax.f32 %v543, 0.0
    %vm562 = vcmask 261120
    %563 = vst.msk [vmem:[%s6] sm:$0xff] %vm562, %v546
    %564 = vst.msk [vmem:[%s6 + $0x8] sm:$0xff] %vm562, %v547
    %565 = vst.msk [vmem:[%s6 + $0x10] sm:$0xff] %vm562, %v548
    %566 = vst.msk [vmem:[%s6 + $0x18] sm:$0xff] %vm562, %v549
    %567 = vst.msk [vmem:[%s6 + $0x20] sm:$0xff] %vm562, %v550
    %568 = vst.msk [vmem:[%s6 + $0x28] sm:$0xff] %vm562, %v551
    %569 = vst.msk [vmem:[%s6 + $0x30] sm:$0xff] %vm562, %v552
    %570 = vst.msk [vmem:[%s6 + $0x38] sm:$0xff] %vm562, %v553
    %571 = vst.msk [vmem:[%s6 + $0x40] sm:$0xff] %vm562, %v554
    %572 = vst.msk [vmem:[%s6 + $0x48] sm:$0xff] %vm562, %v555
    %573 = vst.msk [vmem:[%s6 + $0x50] sm:$0xff] %vm562, %v556
    %574 = vst.msk [vmem:[%s6 + $0x58] sm:$0xff] %vm562, %v557
    %575 = vst.msk [vmem:[%s6 + $0x60] sm:$0xff] %vm562, %v558
    %576 = vst.msk [vmem:[%s6 + $0x68] sm:$0xff] %vm562, %v559
    %577 = vst.msk [vmem:[%s6 + $0x70] sm:$0xff] %vm562, %v560
    %578 = vst.msk [vmem:[%s6 + $0x78] sm:$0xff] %vm562, %v561
    // Predicated region
    $region22: #{asag_forward.4} parent=1 // pred_check
      _
    $region23: #{asag_forward.4} parent=1 // pred_check_branch
      %580 = sbr.rel (0) target = $region25
    $region24: #{asag_forward.4} parent=1 // pred_region
      %s582 = ssub.s32 1024, 1024
      %583 = vsyncadd [#allocation3], %s582
      %s584 = sshll.u32 [#allocation2], 4
      %s585 = int_to_ptr.vmem [resolvable:$true] %s584
      %590 = dma.vmem_to_hbm [thread:$0]  %s585, 1024, %s5, [#allocation3], 64, 64, 4
    $region25: #{asag_forward.4} parent=1 // pred_fallthru
      _
    // Predicated region
    $region26: #{asag_forward.4} parent=1 // pred_check
      _
    $region27: #{asag_forward.4} parent=1 // pred_check_branch
      %592 = sbr.rel (0) target = $region29
    $region28: #{asag_forward.4} parent=1 // pred_region
      _
    $region29: #{asag_forward.4} parent=1 // pred_fallthru
      _
    // Predicated region
    $region30: #{asag_forward.4} parent=1 // pred_check
      _
    $region31: #{asag_forward.4} parent=1 // pred_check_branch
      %594 = sbr.rel (0) target = $region33
    $region32: #{asag_forward.4} parent=1 // pred_region
      %595 = dma.done [#allocation3], 1024
    $region33: #{asag_forward.4} parent=1 // pred_fallthru
      _
    // Predicated region
    $region34: #{asag_forward.4} parent=1 // pred_check
      _
    $region35: #{asag_forward.4} parent=1 // pred_check_branch
      %597 = sbr.rel (0) target = $region37
    $region36: #{asag_forward.4} parent=1 // pred_region
      _
    $region37: #{asag_forward.4} parent=1 // pred_fallthru
      _
    %598 = vsyncpa [#allocation3], 1

// kernel: asag_forward.5
$region0: #{asag_forward.5}
  #allocation0 [shape = 'u32[]', space=smem, size = 0x4, offset = 0x4, fixed_abs, tag = 'smem constant byte address 0x4 - core index']
  #allocation1 [shape = 'u32[144,128]{1,0:T(1,128)}', space=vmem, size = 0x12000, scoped, tag = 'internal scratch']
  #allocation2 [shape = 'f32[128,32]{1,0:T(8,128)}', space=vmem, size = 0x10000, scoped, tag = 'scratch operand']
  %s0 = inlined_call_operand.vmem [shape: f32[128,32], index: 0, kind: input, shape index: {}]
  %s1 = inlined_call_operand.vmem [shape: f32[4,128], index: 1, kind: input, shape index: {}]
  %s2 = inlined_call_operand.vmem [shape: bf16[32,32], index: 2, kind: input, shape index: {}]
  %s3 = inlined_call_operand.vmem [shape: f32[1,32], index: 3, kind: input, shape index: {}]
  %s4 = inlined_call_operand.vmem [shape: bf16[5,32], index: 4, kind: input, shape index: {}]
  %s5 = inlined_call_operand.vmem [shape: f32[5,1], index: 5, kind: input, shape index: {}]
  %s6 = inlined_call_operand.vmem [shape: bf16[4,32], index: 6, kind: input, shape index: {}]
  %s7 = inlined_call_operand.vmem [shape: f32[4,1], index: 7, kind: input, shape index: {}]
  %s8 = inlined_call_operand.vmem [shape: bf16[2,32,32], index: 8, kind: input, shape index: {}]
  %s9 = inlined_call_operand.vmem [shape: f32[2,1,32], index: 9, kind: input, shape index: {}]
  %s10 = inlined_call_operand.vmem [shape: bf16[2,32,32], index: 10, kind: input, shape index: {}]
  %s11 = inlined_call_operand.vmem [shape: f32[2,1,32], index: 11, kind: input, shape index: {}]
  %s12 = inlined_call_operand.vmem [shape: bf16[2,32,32], index: 12, kind: input, shape index: {}]
  %s13 = inlined_call_operand.vmem [shape: f32[2,1,32], index: 13, kind: input, shape index: {}]
  %s14 = inlined_call_operand.vmem [shape: bf16[2,5,32], index: 14, kind: input, shape index: {}]
  %s15 = inlined_call_operand.vmem [shape: f32[2,5,1], index: 15, kind: input, shape index: {}]
  %s16 = inlined_call_operand.vmem [shape: bf16[2,4,32], index: 16, kind: input, shape index: {}]
  %s17 = inlined_call_operand.vmem [shape: f32[2,4,1], index: 17, kind: input, shape index: {}]
  %s18 = inlined_call_operand.vmem [shape: f32[48,128], index: 18, kind: output, shape index: {}]
  %s19 = sld [smem:[#allocation0]]
  $region82: #{asag_forward.5} parent=0
    _
  %s21 = ssub.s32 1, %s19
  %s22 = scalar_select 0, %s21, %s19
  // Predicated region
  $region2: #{asag_forward.5} parent=0 // pred_check
    _
  $region3: #{asag_forward.5} parent=0 // pred_check_branch
    %24 = sbr.rel (0) target = $region5
  $region4: #{asag_forward.5} parent=0 // pred_region
    _
  $region5: #{asag_forward.5} parent=0 // pred_fallthru
    _
  // Predicated region
  $region6: #{asag_forward.5} parent=0 // pred_check
    _
  $region7: #{asag_forward.5} parent=0 // pred_check_branch
    %26 = sbr.rel (0) target = $region9
  $region8: #{asag_forward.5} parent=0 // pred_region
    _
  $region9: #{asag_forward.5} parent=0 // pred_fallthru
    _
  // Predicated region
  $region10: #{asag_forward.5} parent=0 // pred_check
    _
  $region11: #{asag_forward.5} parent=0 // pred_check_branch
    %28 = sbr.rel (0) target = $region13
  $region12: #{asag_forward.5} parent=0 // pred_region
    _
  $region13: #{asag_forward.5} parent=0 // pred_fallthru
    _
  // Predicated region
  $region14: #{asag_forward.5} parent=0 // pred_check
    _
  $region15: #{asag_forward.5} parent=0 // pred_check_branch
    %30 = sbr.rel (0) target = $region17
  $region16: #{asag_forward.5} parent=0 // pred_region
    _
  $region17: #{asag_forward.5} parent=0 // pred_fallthru
    _
  // Predicated region
  $region18: #{asag_forward.5} parent=0 // pred_check
    _
  $region19: #{asag_forward.5} parent=0 // pred_check_branch
    %32 = sbr.rel (0) target = $region21
  $region20: #{asag_forward.5} parent=0 // pred_region
    _
  $region21: #{asag_forward.5} parent=0 // pred_fallthru
    _
  // Predicated region
  $region22: #{asag_forward.5} parent=0 // pred_check
    _
  $region23: #{asag_forward.5} parent=0 // pred_check_branch
    %34 = sbr.rel (0) target = $region25
  $region24: #{asag_forward.5} parent=0 // pred_region
    _
  $region25: #{asag_forward.5} parent=0 // pred_fallthru
    _
  // Predicated region
  $region26: #{asag_forward.5} parent=0 // pred_check
    _
  $region27: #{asag_forward.5} parent=0 // pred_check_branch
    %36 = sbr.rel (0) target = $region29
  $region28: #{asag_forward.5} parent=0 // pred_region
    _
  $region29: #{asag_forward.5} parent=0 // pred_fallthru
    _
  // Predicated region
  $region30: #{asag_forward.5} parent=0 // pred_check
    _
  $region31: #{asag_forward.5} parent=0 // pred_check_branch
    %38 = sbr.rel (0) target = $region33
  $region32: #{asag_forward.5} parent=0 // pred_region
    _
  $region33: #{asag_forward.5} parent=0 // pred_fallthru
    _
  // Predicated region
  $region34: #{asag_forward.5} parent=0 // pred_check
    _
  $region35: #{asag_forward.5} parent=0 // pred_check_branch
    %40 = sbr.rel (0) target = $region37
  $region36: #{asag_forward.5} parent=0 // pred_region
    _
  $region37: #{asag_forward.5} parent=0 // pred_fallthru
    _
  // Predicated region
  $region38: #{asag_forward.5} parent=0 // pred_check
    _
  $region39: #{asag_forward.5} parent=0 // pred_check_branch
    %42 = sbr.rel (0) target = $region41
  $region40: #{asag_forward.5} parent=0 // pred_region
    _
  $region41: #{asag_forward.5} parent=0 // pred_fallthru
    _
  // Predicated region
  $region42: #{asag_forward.5} parent=0 // pred_check
    _
  $region43: #{asag_forward.5} parent=0 // pred_check_branch
    %44 = sbr.rel (0) target = $region45
  $region44: #{asag_forward.5} parent=0 // pred_region
    _
  $region45: #{asag_forward.5} parent=0 // pred_fallthru
    _
  // Predicated region
  $region46: #{asag_forward.5} parent=0 // pred_check
    _
  $region47: #{asag_forward.5} parent=0 // pred_check_branch
    %46 = sbr.rel (0) target = $region49
  $region48: #{asag_forward.5} parent=0 // pred_region
    _
  $region49: #{asag_forward.5} parent=0 // pred_fallthru
    _
  // Predicated region
  $region50: #{asag_forward.5} parent=0 // pred_check
    _
  $region51: #{asag_forward.5} parent=0 // pred_check_branch
    %48 = sbr.rel (0) target = $region53
  $region52: #{asag_forward.5} parent=0 // pred_region
    _
  $region53: #{asag_forward.5} parent=0 // pred_fallthru
    _
  // Predicated region
  $region54: #{asag_forward.5} parent=0 // pred_check
    _
  $region55: #{asag_forward.5} parent=0 // pred_check_branch
    %50 = sbr.rel (0) target = $region57
  $region56: #{asag_forward.5} parent=0 // pred_region
    _
  $region57: #{asag_forward.5} parent=0 // pred_fallthru
    _
  // Predicated region
  $region58: #{asag_forward.5} parent=0 // pred_check
    _
  $region59: #{asag_forward.5} parent=0 // pred_check_branch
    %52 = sbr.rel (0) target = $region61
  $region60: #{asag_forward.5} parent=0 // pred_region
    _
  $region61: #{asag_forward.5} parent=0 // pred_fallthru
    _
  // Predicated region
  $region62: #{asag_forward.5} parent=0 // pred_check
    _
  $region63: #{asag_forward.5} parent=0 // pred_check_branch
    %54 = sbr.rel (0) target = $region65
  $region64: #{asag_forward.5} parent=0 // pred_region
    _
  $region65: #{asag_forward.5} parent=0 // pred_fallthru
    _
  // Predicated region
  $region66: #{asag_forward.5} parent=0 // pred_check
    _
  $region67: #{asag_forward.5} parent=0 // pred_check_branch
    %56 = sbr.rel (0) target = $region69
  $region68: #{asag_forward.5} parent=0 // pred_region
    _
  $region69: #{asag_forward.5} parent=0 // pred_fallthru
    _
  // Predicated region
  $region70: #{asag_forward.5} parent=0 // pred_check
    _
  $region71: #{asag_forward.5} parent=0 // pred_check_branch
    %58 = sbr.rel (0) target = $region73
  $region72: #{asag_forward.5} parent=0 // pred_region
    _
  $region73: #{asag_forward.5} parent=0 // pred_fallthru
    _
  %60 = vst [vmem:[%s18] sm:$0xff] 0.0
  %61 = vst [vmem:[%s18 + $0x8] sm:$0xff] 0.0
  %62 = vst [vmem:[%s18 + $0x10] sm:$0xff] 0.0
  %63 = vst [vmem:[%s18 + $0x18] sm:$0xff] 0.0
  %64 = vst [vmem:[%s18 + $0x20] sm:$0xff] 0.0
  %65 = vst [vmem:[%s18 + $0x28] sm:$0xff] 0.0
  %v66 = vld [vmem:[%s0] sm:$0xff]
  %v67 = vld [vmem:[%s0 + $0x8] sm:$0xff]
  %v68 = vld [vmem:[%s0 + $0x10] sm:$0xff]
  %v69 = vld [vmem:[%s0 + $0x18] sm:$0xff]
  %v70 = vld [vmem:[%s0 + $0x20] sm:$0xff]
  %v71 = vld [vmem:[%s0 + $0x28] sm:$0xff]
  %v72 = vld [vmem:[%s0 + $0x30] sm:$0xff]
  %v73 = vld [vmem:[%s0 + $0x38] sm:$0xff]
  %v74 = vld [vmem:[%s0 + $0x40] sm:$0xff]
  %v75 = vld [vmem:[%s0 + $0x48] sm:$0xff]
  %v76 = vld [vmem:[%s0 + $0x50] sm:$0xff]
  %v77 = vld [vmem:[%s0 + $0x58] sm:$0xff]
  %v78 = vld [vmem:[%s0 + $0x60] sm:$0xff]
  %v79 = vld [vmem:[%s0 + $0x68] sm:$0xff]
  %v80 = vld [vmem:[%s0 + $0x70] sm:$0xff]
  %v81 = vld [vmem:[%s0 + $0x78] sm:$0xff]
  %v82 = vpack.c.bf16 %v67, %v66
  %v83 = vpack.c.bf16 %v69, %v68
  %v84 = vpack.c.bf16 %v71, %v70
  %v85 = vpack.c.bf16 %v73, %v72
  %v86 = vpack.c.bf16 %v75, %v74
  %v87 = vpack.c.bf16 %v77, %v76
  %v88 = vpack.c.bf16 %v79, %v78
  %v89 = vpack.c.bf16 %v81, %v80
  %v90 = vld [vmem:[%s2] sm:$0xf]
  %v91 = vld [vmem:[%s2 + $0x4] sm:$0xf]
  %v92 = vld [vmem:[%s2 + $0x8] sm:$0xf]
  %v93 = vld [vmem:[%s2 + $0xc] sm:$0xf]
  %v94 = vld [vmem:[%s3] sm:$0x1]
  %v96 = vlaneseq
  %v97 = vshrl.u32 %v96, 7
  %v98 = vsub.s32 0, %v97
  %v99 = vrot.slane %v94, %v98
  %v105 = vunpack.c.l.b16 %v90
  %v106 = vunpack.c.l.b16 %v91
  %v107 = vunpack.c.l.b16 %v92
  %v108 = vunpack.c.l.b16 %v93
  %v109 = vpack.c.b16 %v106, %v105
  %v110 = vpack.c.b16 %v108, %v107
  %vm113 = vcmask 261120
  %v115 = vsel %vm113, %v82, 0
  %v118 = vsel %vm113, %v83, 0
  %v121 = vsel %vm113, %v84, 0
  %v124 = vsel %vm113, %v85, 0
  %v127 = vsel %vm113, %v86, 0
  %v130 = vsel %vm113, %v87, 0
  %v133 = vsel %vm113, %v88, 0
  %v136 = vsel %vm113, %v89, 0
  %138 = vmatprep.subr.bf16.mxu0 0
  %139 = vmatpush1.bf16.msra.mxu0 %v109
  %140 = vmatprep.subr.bf16.mxu0 0
  %141 = vmatpush1.bf16.msra.mxu0 %v110
  %142 = vmatprep.subr.bf16.mxu0 0
  %143 = vmatpush1.bf16.msra.mxu0 0
  %144 = vmatprep.subr.bf16.mxu0 0
  %145 = vmatpush1.bf16.msra.mxu0 0
  %146 = vmatprep.subr.bf16.mxu0 0
  %147 = vmatpush1.bf16.msra.mxu0 0
  %148 = vmatprep.subr.bf16.mxu0 0
  %149 = vmatpush1.bf16.msra.mxu0 0
  %150 = vmatprep.subr.bf16.mxu0 0
  %151 = vmatpush1.bf16.msra.mxu0 0
  %152 = vmatprep.subr.bf16.mxu0 0
  %153 = vmatpush1.bf16.msra.mxu0 0
  %154 = vmatprep.subr.bf16.mxu0 0
  %155 = vmatpush1.bf16.msra.mxu0 0
  %156 = vmatprep.subr.bf16.mxu0 0
  %157 = vmatpush1.bf16.msra.mxu0 0
  %158 = vmatprep.subr.bf16.mxu0 0
  %159 = vmatpush1.bf16.msra.mxu0 0
  %160 = vmatprep.subr.bf16.mxu0 0
  %161 = vmatpush1.bf16.msra.mxu0 0
  %162 = vmatprep.subr.bf16.mxu0 0
  %163 = vmatpush1.bf16.msra.mxu0 0
  %164 = vmatprep.subr.bf16.mxu0 0
  %165 = vmatpush1.bf16.msra.mxu0 0
  %166 = vmatprep.subr.bf16.mxu0 0
  %167 = vmatpush1.bf16.msra.mxu0 0
  %168 = vmatprep.subr.bf16.mxu0 0
  %169 = vmatpush1.bf16.msra.mxu0 0
  %170 = vmatprep.mubr.bf16.mxu0 0
  %171 = vmatmul.mubr.bf16.gmra.mrb[0].mxu0 %v115
  %v172 = vpop.f32.mrb[0].mxu0
  %v173 = vadd.f32 %v99, %v172
  %v174 = vpop.f32.mrb[0].mxu0
  %v175 = vpop.f32.mrb[0].mxu0
  %v176 = vadd.f32 %v99, %v175
  %v177 = vpop.f32.mrb[0].mxu0
  %178 = vmatprep.mubr.bf16.mxu0 0
  %179 = vmatmul.mubr.bf16.gmra.mrb[0].mxu0 %v118
  %v180 = vpop.f32.mrb[0].mxu0
  %v181 = vadd.f32 %v99, %v180
  %v182 = vpop.f32.mrb[0].mxu0
  %v183 = vpop.f32.mrb[0].mxu0
  %v184 = vadd.f32 %v99, %v183
  %v185 = vpop.f32.mrb[0].mxu0
  %186 = vmatprep.mubr.bf16.mxu0 0
  %187 = vmatmul.mubr.bf16.gmra.mrb[0].mxu0 %v121
  %v188 = vpop.f32.mrb[0].mxu0
  %v189 = vadd.f32 %v99, %v188
  %v190 = vpop.f32.mrb[0].mxu0
  %v191 = vpop.f32.mrb[0].mxu0
  %v192 = vadd.f32 %v99, %v191
  %v193 = vpop.f32.mrb[0].mxu0
  %194 = vmatprep.mubr.bf16.mxu0 0
  %195 = vmatmul.mubr.bf16.gmra.mrb[0].mxu0 %v124
  %v196 = vpop.f32.mrb[0].mxu0
  %v197 = vadd.f32 %v99, %v196
  %v198 = vpop.f32.mrb[0].mxu0
  %v199 = vpop.f32.mrb[0].mxu0
  %v200 = vadd.f32 %v99, %v199
  %v201 = vpop.f32.mrb[0].mxu0
  %202 = vmatprep.mubr.bf16.mxu0 0
  %203 = vmatmul.mubr.bf16.gmra.mrb[0].mxu0 %v127
  %v204 = vpop.f32.mrb[0].mxu0
  %v205 = vadd.f32 %v99, %v204
  %v206 = vpop.f32.mrb[0].mxu0
  %v207 = vpop.f32.mrb[0].mxu0
  %v208 = vadd.f32 %v99, %v207
  %v209 = vpop.f32.mrb[0].mxu0
  %210 = vmatprep.mubr.bf16.mxu0 0
  %211 = vmatmul.mubr.bf16.gmra.mrb[0].mxu0 %v130
  %v212 = vpop.f32.mrb[0].mxu0
  %v213 = vadd.f32 %v99, %v212
  %v214 = vpop.f32.mrb[0].mxu0
  %v215 = vpop.f32.mrb[0].mxu0
  %v216 = vadd.f32 %v99, %v215
  %v217 = vpop.f32.mrb[0].mxu0
  %218 = vmatprep.mubr.bf16.mxu0 0
  %219 = vmatmul.mubr.bf16.gmra.mrb[0].mxu0 %v133
  %v220 = vpop.f32.mrb[0].mxu0
  %v221 = vadd.f32 %v99, %v220
  %v222 = vpop.f32.mrb[0].mxu0
  %v223 = vpop.f32.mrb[0].mxu0
  %v224 = vadd.f32 %v99, %v223
  %v225 = vpop.f32.mrb[0].mxu0
  %226 = vmatprep.mubr.bf16.mxu0 0
  %227 = vmatmul.mubr.bf16.gmra.mrb[0].mxu0 %v136
  %v228 = vpop.f32.mrb[0].mxu0
  %v229 = vadd.f32 %v99, %v228
  %v230 = vpop.f32.mrb[0].mxu0
  %v231 = vpop.f32.mrb[0].mxu0
  %v232 = vadd.f32 %v99, %v231
  %v233 = vpop.f32.mrb[0].mxu0
  %234 = vdwg.mxu0
  %v235 = vmax.f32 %v173, 0.0
  %v236 = vmax.f32 %v176, 0.0
  %v237 = vmax.f32 %v181, 0.0
  %v238 = vmax.f32 %v184, 0.0
  %v239 = vmax.f32 %v189, 0.0
  %v240 = vmax.f32 %v192, 0.0
  %v241 = vmax.f32 %v197, 0.0
  %v242 = vmax.f32 %v200, 0.0
  %v243 = vmax.f32 %v205, 0.0
  %v244 = vmax.f32 %v208, 0.0
  %v245 = vmax.f32 %v213, 0.0
  %v246 = vmax.f32 %v216, 0.0
  %v247 = vmax.f32 %v221, 0.0
  %v248 = vmax.f32 %v224, 0.0
  %v249 = vmax.f32 %v229, 0.0
  %v250 = vmax.f32 %v232, 0.0
  %v251 = vpack.c.bf16 %v236, %v235
  %v252 = vpack.c.bf16 %v238, %v237
  %v253 = vpack.c.bf16 %v240, %v239
  %v254 = vpack.c.bf16 %v242, %v241
  %v255 = vpack.c.bf16 %v244, %v243
  %v256 = vpack.c.bf16 %v246, %v245
  %v257 = vpack.c.bf16 %v248, %v247
  %v258 = vpack.c.bf16 %v250, %v249
  %v259 = vld [vmem:[%s4] sm:$0x7]
  %v260 = vld [vmem:[%s5] sm:$0x1f]
  %262 = vset.pattern.permute.xlu0 0
  %263 = vperm.xlu0 %262, %v260
  %v264 = vpop.permute.xlu0 %263
  %v267 = vsel %vm113, %v259, 0
  %v270 = vsel %vm113, %v251, 0
  %v273 = vsel %vm113, %v252, 0
  %v276 = vsel %vm113, %v253, 0
  %v279 = vsel %vm113, %v254, 0
  %v282 = vsel %vm113, %v255, 0
  %v285 = vsel %vm113, %v256, 0
  %v288 = vsel %vm113, %v257, 0
  %v291 = vsel %vm113, %v258, 0
  %293 = vmatprep.subr.bf16.mxu0 0
  %294 = vmatpush1.bf16.xpose.msra.mxu0 %v270
  %295 = vmatprep.subr.bf16.mxu0 0
  %296 = vmatpush1.bf16.xpose.msra.mxu0 %v273
  %297 = vmatprep.subr.bf16.mxu0 0
  %298 = vmatpush1.bf16.xpose.msra.mxu0 %v276
  %299 = vmatprep.subr.bf16.mxu0 0
  %300 = vmatpush1.bf16.xpose.msra.mxu0 %v279
  %301 = vmatprep.subr.bf16.mxu0 0
  %302 = vmatpush1.bf16.xpose.msra.mxu0 %v282
  %303 = vmatprep.subr.bf16.mxu0 0
  %304 = vmatpush1.bf16.xpose.msra.mxu0 %v285
  %305 = vmatprep.subr.bf16.mxu0 0
  %306 = vmatpush1.bf16.xpose.msra.mxu0 %v288
  %307 = vmatprep.subr.bf16.mxu0 0
  %308 = vmatpush1.bf16.xpose.msra.mxu0 %v291
  %309 = vmatprep.subr.bf16.mxu0 0
  %310 = vmatpush1.bf16.xpose.msra.mxu0 0
  %311 = vmatprep.subr.bf16.mxu0 0
  %312 = vmatpush1.bf16.xpose.msra.mxu0 0
  %313 = vmatprep.subr.bf16.mxu0 0
  %314 = vmatpush1.bf16.xpose.msra.mxu0 0
  %315 = vmatprep.subr.bf16.mxu0 0
  %316 = vmatpush1.bf16.xpose.msra.mxu0 0
  %317 = vmatprep.subr.bf16.mxu0 0
  %318 = vmatpush1.bf16.xpose.msra.mxu0 0
  %319 = vmatprep.subr.bf16.mxu0 0
  %320 = vmatpush1.bf16.xpose.msra.mxu0 0
  %321 = vmatprep.subr.bf16.mxu0 0
  %322 = vmatpush1.bf16.xpose.msra.mxu0 0
  %323 = vmatprep.subr.bf16.mxu0 0
  %324 = vmatpush1.bf16.xpose.msra.mxu0 0
  %325 = vmatprep.mubr.bf16.mxu0 0
  %326 = vmatmul.mubr.bf16.gmra.mrb[0].mxu0 %v267
  %v327 = vpop.f32.mrb[0].mxu0
  %v328 = vadd.f32 %v264, %v327
  %v329 = vpop.f32.mrb[0].mxu0
  %v330 = vpop.f32.mrb[0].mxu0
  %v331 = vpop.f32.mrb[0].mxu0
  %332 = vdwg.mxu0
  %v333 = vld [vmem:[%s6] sm:$0x3]
  %v334 = vld [vmem:[%s7] sm:$0xf]
  %336 = vset.pattern.permute.xlu0 0
  %337 = vperm.xlu0 %336, %v334
  %v338 = vpop.permute.xlu0 %337
  %v341 = vsel %vm113, %v333, 0
  %343 = vmatprep.subr.bf16.mxu0 0
  %344 = vmatpush1.bf16.xpose.msra.mxu0 %v270
  %345 = vmatprep.subr.bf16.mxu0 0
  %346 = vmatpush1.bf16.xpose.msra.mxu0 %v273
  %347 = vmatprep.subr.bf16.mxu0 0
  %348 = vmatpush1.bf16.xpose.msra.mxu0 %v276
  %349 = vmatprep.subr.bf16.mxu0 0
  %350 = vmatpush1.bf16.xpose.msra.mxu0 %v279
  %351 = vmatprep.subr.bf16.mxu0 0
  %352 = vmatpush1.bf16.xpose.msra.mxu0 %v282
  %353 = vmatprep.subr.bf16.mxu0 0
  %354 = vmatpush1.bf16.xpose.msra.mxu0 %v285
  %355 = vmatprep.subr.bf16.mxu0 0
  %356 = vmatpush1.bf16.xpose.msra.mxu0 %v288
  %357 = vmatprep.subr.bf16.mxu0 0
  %358 = vmatpush1.bf16.xpose.msra.mxu0 %v291
  %359 = vmatprep.subr.bf16.mxu0 0
  %360 = vmatpush1.bf16.xpose.msra.mxu0 0
  %361 = vmatprep.subr.bf16.mxu0 0
  %362 = vmatpush1.bf16.xpose.msra.mxu0 0
  %363 = vmatprep.subr.bf16.mxu0 0
  %364 = vmatpush1.bf16.xpose.msra.mxu0 0
  %365 = vmatprep.subr.bf16.mxu0 0
  %366 = vmatpush1.bf16.xpose.msra.mxu0 0
  %367 = vmatprep.subr.bf16.mxu0 0
  %368 = vmatpush1.bf16.xpose.msra.mxu0 0
  %369 = vmatprep.subr.bf16.mxu0 0
  %370 = vmatpush1.bf16.xpose.msra.mxu0 0
  %371 = vmatprep.subr.bf16.mxu0 0
  %372 = vmatpush1.bf16.xpose.msra.mxu0 0
  %373 = vmatprep.subr.bf16.mxu0 0
  %374 = vmatpush1.bf16.xpose.msra.mxu0 0
  %375 = vmatprep.mubr.bf16.mxu0 0
  %376 = vmatmul.mubr.bf16.gmra.mrb[0].mxu0 %v341
  %v377 = vpop.f32.mrb[0].mxu0
  %v378 = vadd.f32 %v338, %v377
  %v379 = vpop.f32.mrb[0].mxu0
  %v380 = vpop.f32.mrb[0].mxu0
  %v381 = vpop.f32.mrb[0].mxu0
  %382 = vdwg.mxu0
  %v383 = vld [vmem:[%s1] sm:$0xf]
  %v384 = vmax.f32 %v383, 1e-05
  %v385 = vmin.f32 %v384, 0.99999
  %v386 = vsub.f32 1.0, %v385
  %v387 = vrcp.pop %v386
  %v388 = vmul.f32 %v385, %v387
  %v389 = vlog2.pop %v388
  %v390 = vmul.f32 %v389, 0.6931472
  %v391 = vadd.f32 %v390, %v378
  %v392 = vxor.u32 %v391, 2147483648
  %v393 = vmul.f32 %v392, 1.442695
  %v394 = vpow.pop %v393
  %v395 = vadd.f32 %v394, 1.0
  %v396 = vrcp.pop %v395
  %v397 = vmul.f32 1.0, %v396
  %398 = vst [vmem:[%s18] sm:$0x1f] %v328
  %399 = vst [vmem:[%s18 + $0x8] sm:$0xf] %v397
  %v400 = vld [vmem:[%s8] sm:$0xf]
  %v401 = vld [vmem:[%s8 + $0x4] sm:$0xf]
  %v402 = vld [vmem:[%s8 + $0x8] sm:$0xf]
  %v403 = vld [vmem:[%s8 + $0xc] sm:$0xf]
  %v404 = vld [vmem:[%s9] sm:$0x1]
  %v406 = vlaneseq
  %v407 = vshrl.u32 %v406, 7
  %v408 = vsub.s32 0, %v407
  %v409 = vrot.slane %v404, %v408
  %v415 = vunpack.c.l.b16 %v400
  %v416 = vunpack.c.l.b16 %v401
  %v417 = vunpack.c.l.b16 %v402
  %v418 = vunpack.c.l.b16 %v403
  %v419 = vpack.c.b16 %v416, %v415
  %v420 = vpack.c.b16 %v418, %v417
  %423 = vmatprep.subr.bf16.mxu0 0
  %424 = vmatpush1.bf16.msra.mxu0 %v419
  %425 = vmatprep.subr.bf16.mxu0 0
  %426 = vmatpush1.bf16.msra.mxu0 %v420
  %427 = vmatprep.subr.bf16.mxu0 0
  %428 = vmatpush1.bf16.msra.mxu0 0
  %429 = vmatprep.subr.bf16.mxu0 0
  %430 = vmatpush1.bf16.msra.mxu0 0
  %431 = vmatprep.subr.bf16.mxu0 0
  %432 = vmatpush1.bf16.msra.mxu0 0
  %433 = vmatprep.subr.bf16.mxu0 0
  %434 = vmatpush1.bf16.msra.mxu0 0
  %435 = vmatprep.subr.bf16.mxu0 0
  %436 = vmatpush1.bf16.msra.mxu0 0
  %437 = vmatprep.subr.bf16.mxu0 0
  %438 = vmatpush1.bf16.msra.mxu0 0
  %439 = vmatprep.subr.bf16.mxu0 0
  %440 = vmatpush1.bf16.msra.mxu0 0
  %441 = vmatprep.subr.bf16.mxu0 0
  %442 = vmatpush1.bf16.msra.mxu0 0
  %443 = vmatprep.subr.bf16.mxu0 0
  %444 = vmatpush1.bf16.msra.mxu0 0
  %445 = vmatprep.subr.bf16.mxu0 0
  %446 = vmatpush1.bf16.msra.mxu0 0
  %447 = vmatprep.subr.bf16.mxu0 0
  %448 = vmatpush1.bf16.msra.mxu0 0
  %449 = vmatprep.subr.bf16.mxu0 0
  %450 = vmatpush1.bf16.msra.mxu0 0
  %451 = vmatprep.subr.bf16.mxu0 0
  %452 = vmatpush1.bf16.msra.mxu0 0
  %453 = vmatprep.subr.bf16.mxu0 0
  %454 = vmatpush1.bf16.msra.mxu0 0
  %455 = vmatprep.mubr.bf16.mxu0 0
  %456 = vmatmul.mubr.bf16.gmra.mrb[0].mxu0 %v270
  %v457 = vpop.f32.mrb[0].mxu0
  %v458 = vadd.f32 %v409, %v457
  %v459 = vpop.f32.mrb[0].mxu0
  %v460 = vpop.f32.mrb[0].mxu0
  %v461 = vadd.f32 %v409, %v460
  %v462 = vpop.f32.mrb[0].mxu0
  %463 = vmatprep.mubr.bf16.mxu0 0
  %464 = vmatmul.mubr.bf16.gmra.mrb[0].mxu0 %v273
  %v465 = vpop.f32.mrb[0].mxu0
  %v466 = vadd.f32 %v409, %v465
  %v467 = vpop.f32.mrb[0].mxu0
  %v468 = vpop.f32.mrb[0].mxu0
  %v469 = vadd.f32 %v409, %v468
  %v470 = vpop.f32.mrb[0].mxu0
  %471 = vmatprep.mubr.bf16.mxu0 0
  %472 = vmatmul.mubr.bf16.gmra.mrb[0].mxu0 %v276
  %v473 = vpop.f32.mrb[0].mxu0
  %v474 = vadd.f32 %v409, %v473
  %v475 = vpop.f32.mrb[0].mxu0
  %v476 = vpop.f32.mrb[0].mxu0
  %v477 = vadd.f32 %v409, %v476
  %v478 = vpop.f32.mrb[0].mxu0
  %479 = vmatprep.mubr.bf16.mxu0 0
  %480 = vmatmul.mubr.bf16.gmra.mrb[0].mxu0 %v279
  %v481 = vpop.f32.mrb[0].mxu0
  %v482 = vadd.f32 %v409, %v481
  %v483 = vpop.f32.mrb[0].mxu0
  %v484 = vpop.f32.mrb[0].mxu0
  %v485 = vadd.f32 %v409, %v484
  %v486 = vpop.f32.mrb[0].mxu0
  %487 = vmatprep.mubr.bf16.mxu0 0
  %488 = vmatmul.mubr.bf16.gmra.mrb[0].mxu0 %v282
  %v489 = vpop.f32.mrb[0].mxu0
  %v490 = vadd.f32 %v409, %v489
  %v491 = vpop.f32.mrb[0].mxu0
  %v492 = vpop.f32.mrb[0].mxu0
  %v493 = vadd.f32 %v409, %v492
  %v494 = vpop.f32.mrb[0].mxu0
  %495 = vmatprep.mubr.bf16.mxu0 0
  %496 = vmatmul.mubr.bf16.gmra.mrb[0].mxu0 %v285
  %v497 = vpop.f32.mrb[0].mxu0
  %v498 = vadd.f32 %v409, %v497
  %v499 = vpop.f32.mrb[0].mxu0
  %v500 = vpop.f32.mrb[0].mxu0
  %v501 = vadd.f32 %v409, %v500
  %v502 = vpop.f32.mrb[0].mxu0
  %503 = vmatprep.mubr.bf16.mxu0 0
  %504 = vmatmul.mubr.bf16.gmra.mrb[0].mxu0 %v288
  %v505 = vpop.f32.mrb[0].mxu0
  %v506 = vadd.f32 %v409, %v505
  %v507 = vpop.f32.mrb[0].mxu0
  %v508 = vpop.f32.mrb[0].mxu0
  %v509 = vadd.f32 %v409, %v508
  %v510 = vpop.f32.mrb[0].mxu0
  %511 = vmatprep.mubr.bf16.mxu0 0
  %512 = vmatmul.mubr.bf16.gmra.mrb[0].mxu0 %v291
  %v513 = vpop.f32.mrb[0].mxu0
  %v514 = vadd.f32 %v409, %v513
  %v515 = vpop.f32.mrb[0].mxu0
  %v516 = vpop.f32.mrb[0].mxu0
  %v517 = vadd.f32 %v409, %v516
  %v518 = vpop.f32.mrb[0].mxu0
  %519 = vdwg.mxu0
  %v520 = vpack.c.bf16 %v461, %v458
  %v521 = vpack.c.bf16 %v469, %v466
  %v522 = vpack.c.bf16 %v477, %v474
  %v523 = vpack.c.bf16 %v485, %v482
  %v525 = vsel %vm113, %v520, 0
  %v528 = vsel %vm113, %v521, 0
  %v531 = vsel %vm113, %v522, 0
  %v534 = vsel %vm113, %v523, 0
  %536 = vmatprep.subr.bf16.mxu0 0
  %537 = vmatpush1.bf16.xpose.msra.mxu0 %v115
  %538 = vmatprep.subr.bf16.mxu0 0
  %539 = vmatpush1.bf16.xpose.msra.mxu0 %v118
  %540 = vmatprep.subr.bf16.mxu0 0
  %541 = vmatpush1.bf16.xpose.msra.mxu0 %v121
  %542 = vmatprep.subr.bf16.mxu0 0
  %543 = vmatpush1.bf16.xpose.msra.mxu0 %v124
  %544 = vmatprep.subr.bf16.mxu0 0
  %545 = vmatpush1.bf16.xpose.msra.mxu0 0
  %546 = vmatprep.subr.bf16.mxu0 0
  %547 = vmatpush1.bf16.xpose.msra.mxu0 0
  %548 = vmatprep.subr.bf16.mxu0 0
  %549 = vmatpush1.bf16.xpose.msra.mxu0 0
  %550 = vmatprep.subr.bf16.mxu0 0
  %551 = vmatpush1.bf16.xpose.msra.mxu0 0
  %552 = vmatprep.subr.bf16.mxu0 0
  %553 = vmatpush1.bf16.xpose.msra.mxu0 0
  %554 = vmatprep.subr.bf16.mxu0 0
  %555 = vmatpush1.bf16.xpose.msra.mxu0 0
  %556 = vmatprep.subr.bf16.mxu0 0
  %557 = vmatpush1.bf16.xpose.msra.mxu0 0
  %558 = vmatprep.subr.bf16.mxu0 0
  %559 = vmatpush1.bf16.xpose.msra.mxu0 0
  %560 = vmatprep.subr.bf16.mxu0 0
  %561 = vmatpush1.bf16.xpose.msra.mxu0 0
  %562 = vmatprep.subr.bf16.mxu0 0
  %563 = vmatpush1.bf16.xpose.msra.mxu0 0
  %564 = vmatprep.subr.bf16.mxu0 0
  %565 = vmatpush1.bf16.xpose.msra.mxu0 0
  %566 = vmatprep.subr.bf16.mxu0 0
  %567 = vmatpush1.bf16.xpose.msra.mxu0 0
  %568 = vmatprep.mubr.bf16.mxu0 0
  %569 = vmatmul.mubr.bf16.gmra.mrb[0].mxu0 %v525
  %v570 = vpop.f32.mrb[0].mxu0
  %v571 = vadd.f32 0.0, %v570
  %v572 = vpop.f32.mrb[0].mxu0
  %v573 = vpop.f32.mrb[0].mxu0
  %v574 = vadd.f32 0.0, %v573
  %v575 = vpop.f32.mrb[0].mxu0
  %576 = vmatprep.mubr.bf16.mxu0 0
  %577 = vmatmul.mubr.bf16.gmra.mrb[0].mxu0 %v528
  %v578 = vpop.f32.mrb[0].mxu0
  %v579 = vadd.f32 0.0, %v578
  %v580 = vpop.f32.mrb[0].mxu0
  %v581 = vpop.f32.mrb[0].mxu0
  %v582 = vadd.f32 0.0, %v581
  %v583 = vpop.f32.mrb[0].mxu0
  %584 = vmatprep.mubr.bf16.mxu0 0
  %585 = vmatmul.mubr.bf16.gmra.mrb[0].mxu0 %v531
  %v586 = vpop.f32.mrb[0].mxu0
  %v587 = vadd.f32 0.0, %v586
  %v588 = vpop.f32.mrb[0].mxu0
  %v589 = vpop.f32.mrb[0].mxu0
  %v590 = vadd.f32 0.0, %v589
  %v591 = vpop.f32.mrb[0].mxu0
  %592 = vmatprep.mubr.bf16.mxu0 0
  %593 = vmatmul.mubr.bf16.gmra.mrb[0].mxu0 %v534
  %v594 = vpop.f32.mrb[0].mxu0
  %v595 = vadd.f32 0.0, %v594
  %v596 = vpop.f32.mrb[0].mxu0
  %v597 = vpop.f32.mrb[0].mxu0
  %v598 = vadd.f32 0.0, %v597
  %v599 = vpop.f32.mrb[0].mxu0
  %600 = vdwg.mxu0
  %vm601 = vcmask 523264
  %v602 = vsel %vm601, %v571, -inf
  %603 = vmax.xlane.f32.xlu0 %v602
  %v604 = vpop.xlane.xlu0 %603
  %v605 = vsel %vm601, %v574, -inf
  %606 = vmax.xlane.f32.xlu0 %v605
  %v607 = vpop.xlane.xlu0 %606
  %v608 = vsel %vm601, %v579, -inf
  %609 = vmax.xlane.f32.xlu0 %v608
  %v610 = vpop.xlane.xlu0 %609
  %v611 = vsel %vm601, %v582, -inf
  %612 = vmax.xlane.f32.xlu0 %v611
  %v613 = vpop.xlane.xlu0 %612
  %v614 = vsel %vm601, %v587, -inf
  %615 = vmax.xlane.f32.xlu0 %v614
  %v616 = vpop.xlane.xlu0 %615
  %v617 = vsel %vm601, %v590, -inf
  %618 = vmax.xlane.f32.xlu0 %v617
  %v619 = vpop.xlane.xlu0 %618
  %v620 = vsel %vm601, %v595, -inf
  %621 = vmax.xlane.f32.xlu0 %v620
  %v622 = vpop.xlane.xlu0 %621
  %v623 = vsel %vm601, %v598, -inf
  %624 = vmax.xlane.f32.xlu0 %v623
  %v625 = vpop.xlane.xlu0 %624
  %v626 = vsub.f32 %v571, %v604
  %v627 = vsub.f32 %v574, %v607
  %v628 = vsub.f32 %v579, %v610
  %v629 = vsub.f32 %v582, %v613
  %v630 = vsub.f32 %v587, %v616
  %v631 = vsub.f32 %v590, %v619
  %v632 = vsub.f32 %v595, %v622
  %v633 = vsub.f32 %v598, %v625
  %v634 = vmul.f32 %v626, 1.442695
  %v635 = vpow.pop %v634
  %v636 = vmul.f32 %v627, 1.442695
  %v637 = vpow.pop %v636
  %v638 = vmul.f32 %v628, 1.442695
  %v639 = vpow.pop %v638
  %v640 = vmul.f32 %v629, 1.442695
  %v641 = vpow.pop %v640
  %v642 = vmul.f32 %v630, 1.442695
  %v643 = vpow.pop %v642
  %v644 = vmul.f32 %v631, 1.442695
  %v645 = vpow.pop %v644
  %v646 = vmul.f32 %v632, 1.442695
  %v647 = vpow.pop %v646
  %v648 = vmul.f32 %v633, 1.442695
  %v649 = vpow.pop %v648
  %v650 = vsel %vm601, %v635, 0.0
  %651 = vadd.xlane.f32.xlu0 %v650
  %v652 = vpop.xlane.xlu0 %651
  %v653 = vsel %vm601, %v637, 0.0
  %654 = vadd.xlane.f32.xlu0 %v653
  %v655 = vpop.xlane.xlu0 %654
  %v656 = vsel %vm601, %v639, 0.0
  %657 = vadd.xlane.f32.xlu0 %v656
  %v658 = vpop.xlane.xlu0 %657
  %v659 = vsel %vm601, %v641, 0.0
  %660 = vadd.xlane.f32.xlu0 %v659
  %v661 = vpop.xlane.xlu0 %660
  %v662 = vsel %vm601, %v643, 0.0
  %663 = vadd.xlane.f32.xlu0 %v662
  %v664 = vpop.xlane.xlu0 %663
  %v665 = vsel %vm601, %v645, 0.0
  %666 = vadd.xlane.f32.xlu0 %v665
  %v667 = vpop.xlane.xlu0 %666
  %v668 = vsel %vm601, %v647, 0.0
  %669 = vadd.xlane.f32.xlu0 %v668
  %v670 = vpop.xlane.xlu0 %669
  %v671 = vsel %vm601, %v649, 0.0
  %672 = vadd.xlane.f32.xlu0 %v671
  %v673 = vpop.xlane.xlu0 %672
  %v674 = vrcp.pop %v652
  %v675 = vrcp.pop %v655
  %v676 = vrcp.pop %v658
  %v677 = vrcp.pop %v661
  %v678 = vrcp.pop %v664
  %v679 = vrcp.pop %v667
  %v680 = vrcp.pop %v670
  %v681 = vrcp.pop %v673
  %v682 = vmul.f32 %v635, %v674
  %v683 = vmul.f32 %v637, %v675
  %v684 = vmul.f32 %v639, %v676
  %v685 = vmul.f32 %v641, %v677
  %v686 = vmul.f32 %v643, %v678
  %v687 = vmul.f32 %v645, %v679
  %v688 = vmul.f32 %v647, %v680
  %v689 = vmul.f32 %v649, %v681
  %v690 = vpack.c.bf16 %v683, %v682
  %v691 = vpack.c.bf16 %v685, %v684
  %v692 = vpack.c.bf16 %v687, %v686
  %v693 = vpack.c.bf16 %v689, %v688
  %v695 = vsel %vm601, %v690, 0
  %v698 = vsel %vm601, %v691, 0
  %v701 = vsel %vm601, %v692, 0
  %v704 = vsel %vm601, %v693, 0
  %706 = vmatprep.subr.bf16.mxu0 0
  %707 = vmatpush1.bf16.msra.mxu0 %v82
  %708 = vmatprep.subr.bf16.mxu0 0
  %709 = vmatpush1.bf16.msra.mxu0 %v83
  %710 = vmatprep.subr.bf16.mxu0 0
  %711 = vmatpush1.bf16.msra.mxu0 %v84
  %712 = vmatprep.subr.bf16.mxu0 0
  %713 = vmatpush1.bf16.msra.mxu0 %v85
  %714 = vmatprep.subr.bf16.mxu0 0
  %715 = vmatpush1.bf16.msra.mxu0 0
  %716 = vmatprep.subr.bf16.mxu0 0
  %717 = vmatpush1.bf16.msra.mxu0 0
  %718 = vmatprep.subr.bf16.mxu0 0
  %719 = vmatpush1.bf16.msra.mxu0 0
  %720 = vmatprep.subr.bf16.mxu0 0
  %721 = vmatpush1.bf16.msra.mxu0 0
  %722 = vmatprep.subr.bf16.mxu0 0
  %723 = vmatpush1.bf16.msra.mxu0 0
  %724 = vmatprep.subr.bf16.mxu0 0
  %725 = vmatpush1.bf16.msra.mxu0 0
  %726 = vmatprep.subr.bf16.mxu0 0
  %727 = vmatpush1.bf16.msra.mxu0 0
  %728 = vmatprep.subr.bf16.mxu0 0
  %729 = vmatpush1.bf16.msra.mxu0 0
  %730 = vmatprep.subr.bf16.mxu0 0
  %731 = vmatpush1.bf16.msra.mxu0 0
  %732 = vmatprep.subr.bf16.mxu0 0
  %733 = vmatpush1.bf16.msra.mxu0 0
  %734 = vmatprep.subr.bf16.mxu0 0
  %735 = vmatpush1.bf16.msra.mxu0 0
  %736 = vmatprep.subr.bf16.mxu0 0
  %737 = vmatpush1.bf16.msra.mxu0 0
  %738 = vmatprep.mubr.bf16.mxu0 0
  %739 = vmatmul.mubr.bf16.gmra.mrb[0].mxu0 %v695
  %v740 = vpop.f32.mrb[0].mxu0
  %v741 = vadd.f32 0.0, %v740
  %v742 = vpop.f32.mrb[0].mxu0
  %v743 = vpop.f32.mrb[0].mxu0
  %v744 = vadd.f32 0.0, %v743
  %v745 = vpop.f32.mrb[0].mxu0
  %746 = vmatprep.mubr.bf16.mxu0 0
  %747 = vmatmul.mubr.bf16.gmra.mrb[0].mxu0 %v698
  %v748 = vpop.f32.mrb[0].mxu0
  %v749 = vadd.f32 0.0, %v748
  %v750 = vpop.f32.mrb[0].mxu0
  %v751 = vpop.f32.mrb[0].mxu0
  %v752 = vadd.f32 0.0, %v751
  %v753 = vpop.f32.mrb[0].mxu0
  %754 = vmatprep.mubr.bf16.mxu0 0
  %755 = vmatmul.mubr.bf16.gmra.mrb[0].mxu0 %v701
  %v756 = vpop.f32.mrb[0].mxu0
  %v757 = vadd.f32 0.0, %v756
  %v758 = vpop.f32.mrb[0].mxu0
  %v759 = vpop.f32.mrb[0].mxu0
  %v760 = vadd.f32 0.0, %v759
  %v761 = vpop.f32.mrb[0].mxu0
  %762 = vmatprep.mubr.bf16.mxu0 0
  %763 = vmatmul.mubr.bf16.gmra.mrb[0].mxu0 %v704
  %v764 = vpop.f32.mrb[0].mxu0
  %v765 = vadd.f32 0.0, %v764
  %v766 = vpop.f32.mrb[0].mxu0
  %v767 = vpop.f32.mrb[0].mxu0
  %v768 = vadd.f32 0.0, %v767
  %v769 = vpop.f32.mrb[0].mxu0
  %770 = vdwg.mxu0
  %771 = vst.msk [vmem:[#allocation2] sm:$0xff] %vm113, %v741
  %772 = vst.msk [vmem:[#allocation2 + $0x8] sm:$0xff] %vm113, %v744
  %773 = vst.msk [vmem:[#allocation2 + $0x10] sm:$0xff] %vm113, %v749
  %774 = vst.msk [vmem:[#allocation2 + $0x18] sm:$0xff] %vm113, %v752
  %775 = vst.msk [vmem:[#allocation2 + $0x20] sm:$0xff] %vm113, %v757
  %776 = vst.msk [vmem:[#allocation2 + $0x28] sm:$0xff] %vm113, %v760
  %777 = vst.msk [vmem:[#allocation2 + $0x30] sm:$0xff] %vm113, %v765
  %778 = vst.msk [vmem:[#allocation2 + $0x38] sm:$0xff] %vm113, %v768
  %v779 = vpack.c.bf16 %v493, %v490
  %v780 = vpack.c.bf16 %v501, %v498
  %v781 = vpack.c.bf16 %v509, %v506
  %v782 = vpack.c.bf16 %v517, %v514
  %v784 = vsel %vm113, %v779, 0
  %v787 = vsel %vm113, %v780, 0
  %v790 = vsel %vm113, %v781, 0
  %v793 = vsel %vm113, %v782, 0
  %795 = vmatprep.subr.bf16.mxu0 0
  %796 = vmatpush1.bf16.xpose.msra.mxu0 %v127
  %797 = vmatprep.subr.bf16.mxu0 0
  %798 = vmatpush1.bf16.xpose.msra.mxu0 %v130
  %799 = vmatprep.subr.bf16.mxu0 0
  %800 = vmatpush1.bf16.xpose.msra.mxu0 %v133
  %801 = vmatprep.subr.bf16.mxu0 0
  %802 = vmatpush1.bf16.xpose.msra.mxu0 %v136
  %803 = vmatprep.subr.bf16.mxu0 0
  %804 = vmatpush1.bf16.xpose.msra.mxu0 0
  %805 = vmatprep.subr.bf16.mxu0 0
  %806 = vmatpush1.bf16.xpose.msra.mxu0 0
  %807 = vmatprep.subr.bf16.mxu0 0
  %808 = vmatpush1.bf16.xpose.msra.mxu0 0
  %809 = vmatprep.subr.bf16.mxu0 0
  %810 = vmatpush1.bf16.xpose.msra.mxu0 0
  %811 = vmatprep.subr.bf16.mxu0 0
  %812 = vmatpush1.bf16.xpose.msra.mxu0 0
  %813 = vmatprep.subr.bf16.mxu0 0
  %814 = vmatpush1.bf16.xpose.msra.mxu0 0
  %815 = vmatprep.subr.bf16.mxu0 0
  %816 = vmatpush1.bf16.xpose.msra.mxu0 0
  %817 = vmatprep.subr.bf16.mxu0 0
  %818 = vmatpush1.bf16.xpose.msra.mxu0 0
  %819 = vmatprep.subr.bf16.mxu0 0
  %820 = vmatpush1.bf16.xpose.msra.mxu0 0
  %821 = vmatprep.subr.bf16.mxu0 0
  %822 = vmatpush1.bf16.xpose.msra.mxu0 0
  %823 = vmatprep.subr.bf16.mxu0 0
  %824 = vmatpush1.bf16.xpose.msra.mxu0 0
  %825 = vmatprep.subr.bf16.mxu0 0
  %826 = vmatpush1.bf16.xpose.msra.mxu0 0
  %827 = vmatprep.mubr.bf16.mxu0 0
  %828 = vmatmul.mubr.bf16.gmra.mrb[0].mxu0 %v784
  %v829 = vpop.f32.mrb[0].mxu0
  %v830 = vadd.f32 0.0, %v829
  %v831 = vpop.f32.mrb[0].mxu0
  %v832 = vpop.f32.mrb[0].mxu0
  %v833 = vadd.f32 0.0, %v832
  %v834 = vpop.f32.mrb[0].mxu0
  %835 = vmatprep.mubr.bf16.mxu0 0
  %836 = vmatmul.mubr.bf16.gmra.mrb[0].mxu0 %v787
  %v837 = vpop.f32.mrb[0].mxu0
  %v838 = vadd.f32 0.0, %v837
  %v839 = vpop.f32.mrb[0].mxu0
  %v840 = vpop.f32.mrb[0].mxu0
  %v841 = vadd.f32 0.0, %v840
  %v842 = vpop.f32.mrb[0].mxu0
  %843 = vmatprep.mubr.bf16.mxu0 0
  %844 = vmatmul.mubr.bf16.gmra.mrb[0].mxu0 %v790
  %v845 = vpop.f32.mrb[0].mxu0
  %v846 = vadd.f32 0.0, %v845
  %v847 = vpop.f32.mrb[0].mxu0
  %v848 = vpop.f32.mrb[0].mxu0
  %v849 = vadd.f32 0.0, %v848
  %v850 = vpop.f32.mrb[0].mxu0
  %851 = vmatprep.mubr.bf16.mxu0 0
  %852 = vmatmul.mubr.bf16.gmra.mrb[0].mxu0 %v793
  %v853 = vpop.f32.mrb[0].mxu0
  %v854 = vadd.f32 0.0, %v853
  %v855 = vpop.f32.mrb[0].mxu0
  %v856 = vpop.f32.mrb[0].mxu0
  %v857 = vadd.f32 0.0, %v856
  %v858 = vpop.f32.mrb[0].mxu0
  %859 = vdwg.mxu0
  %v860 = vsel %vm601, %v830, -inf
  %861 = vmax.xlane.f32.xlu0 %v860
  %v862 = vpop.xlane.xlu0 %861
  %v863 = vsel %vm601, %v833, -inf
  %864 = vmax.xlane.f32.xlu0 %v863
  %v865 = vpop.xlane.xlu0 %864
  %v866 = vsel %vm601, %v838, -inf
  %867 = vmax.xlane.f32.xlu0 %v866
  %v868 = vpop.xlane.xlu0 %867
  %v869 = vsel %vm601, %v841, -inf
  %870 = vmax.xlane.f32.xlu0 %v869
  %v871 = vpop.xlane.xlu0 %870
  %v872 = vsel %vm601, %v846, -inf
  %873 = vmax.xlane.f32.xlu0 %v872
  %v874 = vpop.xlane.xlu0 %873
  %v875 = vsel %vm601, %v849, -inf
  %876 = vmax.xlane.f32.xlu0 %v875
  %v877 = vpop.xlane.xlu0 %876
  %v878 = vsel %vm601, %v854, -inf
  %879 = vmax.xlane.f32.xlu0 %v878
  %v880 = vpop.xlane.xlu0 %879
  %v881 = vsel %vm601, %v857, -inf
  %882 = vmax.xlane.f32.xlu0 %v881
  %v883 = vpop.xlane.xlu0 %882
  %v884 = vsub.f32 %v830, %v862
  %v885 = vsub.f32 %v833, %v865
  %v886 = vsub.f32 %v838, %v868
  %v887 = vsub.f32 %v841, %v871
  %v888 = vsub.f32 %v846, %v874
  %v889 = vsub.f32 %v849, %v877
  %v890 = vsub.f32 %v854, %v880
  %v891 = vsub.f32 %v857, %v883
  %v892 = vmul.f32 %v884, 1.442695
  %v893 = vpow.pop %v892
  %v894 = vmul.f32 %v885, 1.442695
  %v895 = vpow.pop %v894
  %v896 = vmul.f32 %v886, 1.442695
  %v897 = vpow.pop %v896
  %v898 = vmul.f32 %v887, 1.442695
  %v899 = vpow.pop %v898
  %v900 = vmul.f32 %v888, 1.442695
  %v901 = vpow.pop %v900
  %v902 = vmul.f32 %v889, 1.442695
  %v903 = vpow.pop %v902
  %v904 = vmul.f32 %v890, 1.442695
  %v905 = vpow.pop %v904
  %v906 = vmul.f32 %v891, 1.442695
  %v907 = vpow.pop %v906
  %v908 = vsel %vm601, %v893, 0.0
  %909 = vadd.xlane.f32.xlu0 %v908
  %v910 = vpop.xlane.xlu0 %909
  %v911 = vsel %vm601, %v895, 0.0
  %912 = vadd.xlane.f32.xlu0 %v911
  %v913 = vpop.xlane.xlu0 %912
  %v914 = vsel %vm601, %v897, 0.0
  %915 = vadd.xlane.f32.xlu0 %v914
  %v916 = vpop.xlane.xlu0 %915
  %v917 = vsel %vm601, %v899, 0.0
  %918 = vadd.xlane.f32.xlu0 %v917
  %v919 = vpop.xlane.xlu0 %918
  %v920 = vsel %vm601, %v901, 0.0
  %921 = vadd.xlane.f32.xlu0 %v920
  %v922 = vpop.xlane.xlu0 %921
  %v923 = vsel %vm601, %v903, 0.0
  %924 = vadd.xlane.f32.xlu0 %v923
  %v925 = vpop.xlane.xlu0 %924
  %v926 = vsel %vm601, %v905, 0.0
  %927 = vadd.xlane.f32.xlu0 %v926
  %v928 = vpop.xlane.xlu0 %927
  %v929 = vsel %vm601, %v907, 0.0
  %930 = vadd.xlane.f32.xlu0 %v929
  %v931 = vpop.xlane.xlu0 %930
  %v932 = vrcp.pop %v910
  %v933 = vrcp.pop %v913
  %v934 = vrcp.pop %v916
  %v935 = vrcp.pop %v919
  %v936 = vrcp.pop %v922
  %v937 = vrcp.pop %v925
  %v938 = vrcp.pop %v928
  %v939 = vrcp.pop %v931
  %v940 = vmul.f32 %v893, %v932
  %v941 = vmul.f32 %v895, %v933
  %v942 = vmul.f32 %v897, %v934
  %v943 = vmul.f32 %v899, %v935
  %v944 = vmul.f32 %v901, %v936
  %v945 = vmul.f32 %v903, %v937
  %v946 = vmul.f32 %v905, %v938
  %v947 = vmul.f32 %v907, %v939
  %v948 = vpack.c.bf16 %v941, %v940
  %v949 = vpack.c.bf16 %v943, %v942
  %v950 = vpack.c.bf16 %v945, %v944
  %v951 = vpack.c.bf16 %v947, %v946
  %v953 = vsel %vm601, %v948, 0
  %v956 = vsel %vm601, %v949, 0
  %v959 = vsel %vm601, %v950, 0
  %v962 = vsel %vm601, %v951, 0
  %964 = vmatprep.subr.bf16.mxu0 0
  %965 = vmatpush1.bf16.msra.mxu0 %v86
  %966 = vmatprep.subr.bf16.mxu0 0
  %967 = vmatpush1.bf16.msra.mxu0 %v87
  %968 = vmatprep.subr.bf16.mxu0 0
  %969 = vmatpush1.bf16.msra.mxu0 %v88
  %970 = vmatprep.subr.bf16.mxu0 0
  %971 = vmatpush1.bf16.msra.mxu0 %v89
  %972 = vmatprep.subr.bf16.mxu0 0
  %973 = vmatpush1.bf16.msra.mxu0 0
  %974 = vmatprep.subr.bf16.mxu0 0
  %975 = vmatpush1.bf16.msra.mxu0 0
  %976 = vmatprep.subr.bf16.mxu0 0
  %977 = vmatpush1.bf16.msra.mxu0 0
  %978 = vmatprep.subr.bf16.mxu0 0
  %979 = vmatpush1.bf16.msra.mxu0 0
  %980 = vmatprep.subr.bf16.mxu0 0
  %981 = vmatpush1.bf16.msra.mxu0 0
  %982 = vmatprep.subr.bf16.mxu0 0
  %983 = vmatpush1.bf16.msra.mxu0 0
  %984 = vmatprep.subr.bf16.mxu0 0
  %985 = vmatpush1.bf16.msra.mxu0 0
  %986 = vmatprep.subr.bf16.mxu0 0
  %987 = vmatpush1.bf16.msra.mxu0 0
  %988 = vmatprep.subr.bf16.mxu0 0
  %989 = vmatpush1.bf16.msra.mxu0 0
  %990 = vmatprep.subr.bf16.mxu0 0
  %991 = vmatpush1.bf16.msra.mxu0 0
  %992 = vmatprep.subr.bf16.mxu0 0
  %993 = vmatpush1.bf16.msra.mxu0 0
  %994 = vmatprep.subr.bf16.mxu0 0
  %995 = vmatpush1.bf16.msra.mxu0 0
  %996 = vmatprep.mubr.bf16.mxu0 0
  %997 = vmatmul.mubr.bf16.gmra.mrb[0].mxu0 %v953
  %v998 = vpop.f32.mrb[0].mxu0
  %v999 = vadd.f32 0.0, %v998
  %v1000 = vpop.f32.mrb[0].mxu0
  %v1001 = vpop.f32.mrb[0].mxu0
  %v1002 = vadd.f32 0.0, %v1001
  %v1003 = vpop.f32.mrb[0].mxu0
  %1004 = vmatprep.mubr.bf16.mxu0 0
  %1005 = vmatmul.mubr.bf16.gmra.mrb[0].mxu0 %v956
  %v1006 = vpop.f32.mrb[0].mxu0
  %v1007 = vadd.f32 0.0, %v1006
  %v1008 = vpop.f32.mrb[0].mxu0
  %v1009 = vpop.f32.mrb[0].mxu0
  %v1010 = vadd.f32 0.0, %v1009
  %v1011 = vpop.f32.mrb[0].mxu0
  %1012 = vmatprep.mubr.bf16.mxu0 0
  %1013 = vmatmul.mubr.bf16.gmra.mrb[0].mxu0 %v959
  %v1014 = vpop.f32.mrb[0].mxu0
  %v1015 = vadd.f32 0.0, %v1014
  %v1016 = vpop.f32.mrb[0].mxu0
  %v1017 = vpop.f32.mrb[0].mxu0
  %v1018 = vadd.f32 0.0, %v1017
  %v1019 = vpop.f32.mrb[0].mxu0
  %1020 = vmatprep.mubr.bf16.mxu0 0
  %1021 = vmatmul.mubr.bf16.gmra.mrb[0].mxu0 %v962
  %v1022 = vpop.f32.mrb[0].mxu0
  %v1023 = vadd.f32 0.0, %v1022
  %v1024 = vpop.f32.mrb[0].mxu0
  %v1025 = vpop.f32.mrb[0].mxu0
  %v1026 = vadd.f32 0.0, %v1025
  %v1027 = vpop.f32.mrb[0].mxu0
  %1028 = vdwg.mxu0
  %1029 = vst.msk [vmem:[#allocation2 + $0x40] sm:$0xff] %vm113, %v999
  %1030 = vst.msk [vmem:[#allocation2 + $0x48] sm:$0xff] %vm113, %v1002
  %1031 = vst.msk [vmem:[#allocation2 + $0x50] sm:$0xff] %vm113, %v1007
  %1032 = vst.msk [vmem:[#allocation2 + $0x58] sm:$0xff] %vm113, %v1010
  %1033 = vst.msk [vmem:[#allocation2 + $0x60] sm:$0xff] %vm113, %v1015
  %1034 = vst.msk [vmem:[#allocation2 + $0x68] sm:$0xff] %vm113, %v1018
  %1035 = vst.msk [vmem:[#allocation2 + $0x70] sm:$0xff] %vm113, %v1023
  %1036 = vst.msk [vmem:[#allocation2 + $0x78] sm:$0xff] %vm113, %v1026
  %v1037 = vld [vmem:[#allocation2] sm:$0xff]
  %v1038 = vld [vmem:[#allocation2 + $0x8] sm:$0xff]
  %v1039 = vld [vmem:[#allocation2 + $0x10] sm:$0xff]
  %v1040 = vld [vmem:[#allocation2 + $0x18] sm:$0xff]
  %v1041 = vld [vmem:[#allocation2 + $0x20] sm:$0xff]
  %v1042 = vld [vmem:[#allocation2 + $0x28] sm:$0xff]
  %v1043 = vld [vmem:[#allocation2 + $0x30] sm:$0xff]
  %v1044 = vld [vmem:[#allocation2 + $0x38] sm:$0xff]
  %v1045 = vld [vmem:[#allocation2 + $0x40] sm:$0xff]
  %v1046 = vld [vmem:[#allocation2 + $0x48] sm:$0xff]
  %v1047 = vld [vmem:[#allocation2 + $0x50] sm:$0xff]
  %v1048 = vld [vmem:[#allocation2 + $0x58] sm:$0xff]
  %v1049 = vld [vmem:[#allocation2 + $0x60] sm:$0xff]
  %v1050 = vld [vmem:[#allocation2 + $0x68] sm:$0xff]
  %v1051 = vld [vmem:[#allocation2 + $0x70] sm:$0xff]
  %v1052 = vld [vmem:[#allocation2 + $0x78] sm:$0xff]
  %v1053 = vadd.f32 %v235, %v1037
  %v1054 = vadd.f32 %v236, %v1038
  %v1055 = vadd.f32 %v237, %v1039
  %v1056 = vadd.f32 %v238, %v1040
  %v1057 = vadd.f32 %v239, %v1041
  %v1058 = vadd.f32 %v240, %v1042
  %v1059 = vadd.f32 %v241, %v1043
  %v1060 = vadd.f32 %v242, %v1044
  %v1061 = vadd.f32 %v243, %v1045
  %v1062 = vadd.f32 %v244, %v1046
  %v1063 = vadd.f32 %v245, %v1047
  %v1064 = vadd.f32 %v246, %v1048
  %v1065 = vadd.f32 %v247, %v1049
  %v1066 = vadd.f32 %v248, %v1050
  %v1067 = vadd.f32 %v249, %v1051
  %v1068 = vadd.f32 %v250, %v1052
  %v1069 = vpack.c.bf16 %v1054, %v1053
  %v1070 = vpack.c.bf16 %v1056, %v1055
  %v1071 = vpack.c.bf16 %v1058, %v1057
  %v1072 = vpack.c.bf16 %v1060, %v1059
  %v1073 = vpack.c.bf16 %v1062, %v1061
  %v1074 = vpack.c.bf16 %v1064, %v1063
  %v1075 = vpack.c.bf16 %v1066, %v1065
  %v1076 = vpack.c.bf16 %v1068, %v1067
  %v1077 = vld [vmem:[%s10] sm:$0xf]
  %v1078 = vld [vmem:[%s10 + $0x4] sm:$0xf]
  %v1079 = vld [vmem:[%s10 + $0x8] sm:$0xf]
  %v1080 = vld [vmem:[%s10 + $0xc] sm:$0xf]
  %v1081 = vld [vmem:[%s11] sm:$0x1]
  %v1083 = vlaneseq
  %v1084 = vshrl.u32 %v1083, 7
  %v1085 = vsub.s32 0, %v1084
  %v1086 = vrot.slane %v1081, %v1085
  %v1092 = vunpack.c.l.b16 %v1077
  %v1093 = vunpack.c.l.b16 %v1078
  %v1094 = vunpack.c.l.b16 %v1079
  %v1095 = vunpack.c.l.b16 %v1080
  %v1096 = vpack.c.b16 %v1093, %v1092
  %v1097 = vpack.c.b16 %v1095, %v1094
  %v1101 = vsel %vm113, %v1069, 0
  %v1104 = vsel %vm113, %v1070, 0
  %v1107 = vsel %vm113, %v1071, 0
  %v1110 = vsel %vm113, %v1072, 0
  %v1113 = vsel %vm113, %v1073, 0
  %v1116 = vsel %vm113, %v1074, 0
  %v1119 = vsel %vm113, %v1075, 0
  %v1122 = vsel %vm113, %v1076, 0
  %1124 = vmatprep.subr.bf16.mxu0 0
  %1125 = vmatpush1.bf16.msra.mxu0 %v1096
  %1126 = vmatprep.subr.bf16.mxu0 0
  %1127 = vmatpush1.bf16.msra.mxu0 %v1097
  %1128 = vmatprep.subr.bf16.mxu0 0
  %1129 = vmatpush1.bf16.msra.mxu0 0
  %1130 = vmatprep.subr.bf16.mxu0 0
  %1131 = vmatpush1.bf16.msra.mxu0 0
  %1132 = vmatprep.subr.bf16.mxu0 0
  %1133 = vmatpush1.bf16.msra.mxu0 0
  %1134 = vmatprep.subr.bf16.mxu0 0
  %1135 = vmatpush1.bf16.msra.mxu0 0
  %1136 = vmatprep.subr.bf16.mxu0 0
  %1137 = vmatpush1.bf16.msra.mxu0 0
  %1138 = vmatprep.subr.bf16.mxu0 0
  %1139 = vmatpush1.bf16.msra.mxu0 0
  %1140 = vmatprep.subr.bf16.mxu0 0
  %1141 = vmatpush1.bf16.msra.mxu0 0
  %1142 = vmatprep.subr.bf16.mxu0 0
  %1143 = vmatpush1.bf16.msra.mxu0 0
  %1144 = vmatprep.subr.bf16.mxu0 0
  %1145 = vmatpush1.bf16.msra.mxu0 0
  %1146 = vmatprep.subr.bf16.mxu0 0
  %1147 = vmatpush1.bf16.msra.mxu0 0
  %1148 = vmatprep.subr.bf16.mxu0 0
  %1149 = vmatpush1.bf16.msra.mxu0 0
  %1150 = vmatprep.subr.bf16.mxu0 0
  %1151 = vmatpush1.bf16.msra.mxu0 0
  %1152 = vmatprep.subr.bf16.mxu0 0
  %1153 = vmatpush1.bf16.msra.mxu0 0
  %1154 = vmatprep.subr.bf16.mxu0 0
  %1155 = vmatpush1.bf16.msra.mxu0 0
  %1156 = vmatprep.mubr.bf16.mxu0 0
  %1157 = vmatmul.mubr.bf16.gmra.mrb[0].mxu0 %v1101
  %v1158 = vpop.f32.mrb[0].mxu0
  %v1159 = vadd.f32 %v1086, %v1158
  %v1160 = vpop.f32.mrb[0].mxu0
  %v1161 = vpop.f32.mrb[0].mxu0
  %v1162 = vadd.f32 %v1086, %v1161
  %v1163 = vpop.f32.mrb[0].mxu0
  %1164 = vmatprep.mubr.bf16.mxu0 0
  %1165 = vmatmul.mubr.bf16.gmra.mrb[0].mxu0 %v1104
  %v1166 = vpop.f32.mrb[0].mxu0
  %v1167 = vadd.f32 %v1086, %v1166
  %v1168 = vpop.f32.mrb[0].mxu0
  %v1169 = vpop.f32.mrb[0].mxu0
  %v1170 = vadd.f32 %v1086, %v1169
  %v1171 = vpop.f32.mrb[0].mxu0
  %1172 = vmatprep.mubr.bf16.mxu0 0
  %1173 = vmatmul.mubr.bf16.gmra.mrb[0].mxu0 %v1107
  %v1174 = vpop.f32.mrb[0].mxu0
  %v1175 = vadd.f32 %v1086, %v1174
  %v1176 = vpop.f32.mrb[0].mxu0
  %v1177 = vpop.f32.mrb[0].mxu0
  %v1178 = vadd.f32 %v1086, %v1177
  %v1179 = vpop.f32.mrb[0].mxu0
  %1180 = vmatprep.mubr.bf16.mxu0 0
  %1181 = vmatmul.mubr.bf16.gmra.mrb[0].mxu0 %v1110
  %v1182 = vpop.f32.mrb[0].mxu0
  %v1183 = vadd.f32 %v1086, %v1182
  %v1184 = vpop.f32.mrb[0].mxu0
  %v1185 = vpop.f32.mrb[0].mxu0
  %v1186 = vadd.f32 %v1086, %v1185
  %v1187 = vpop.f32.mrb[0].mxu0
  %1188 = vmatprep.mubr.bf16.mxu0 0
  %1189 = vmatmul.mubr.bf16.gmra.mrb[0].mxu0 %v1113
  %v1190 = vpop.f32.mrb[0].mxu0
  %v1191 = vadd.f32 %v1086, %v1190
  %v1192 = vpop.f32.mrb[0].mxu0
  %v1193 = vpop.f32.mrb[0].mxu0
  %v1194 = vadd.f32 %v1086, %v1193
  %v1195 = vpop.f32.mrb[0].mxu0
  %1196 = vmatprep.mubr.bf16.mxu0 0
  %1197 = vmatmul.mubr.bf16.gmra.mrb[0].mxu0 %v1116
  %v1198 = vpop.f32.mrb[0].mxu0
  %v1199 = vadd.f32 %v1086, %v1198
  %v1200 = vpop.f32.mrb[0].mxu0
  %v1201 = vpop.f32.mrb[0].mxu0
  %v1202 = vadd.f32 %v1086, %v1201
  %v1203 = vpop.f32.mrb[0].mxu0
  %1204 = vmatprep.mubr.bf16.mxu0 0
  %1205 = vmatmul.mubr.bf16.gmra.mrb[0].mxu0 %v1119
  %v1206 = vpop.f32.mrb[0].mxu0
  %v1207 = vadd.f32 %v1086, %v1206
  %v1208 = vpop.f32.mrb[0].mxu0
  %v1209 = vpop.f32.mrb[0].mxu0
  %v1210 = vadd.f32 %v1086, %v1209
  %v1211 = vpop.f32.mrb[0].mxu0
  %1212 = vmatprep.mubr.bf16.mxu0 0
  %1213 = vmatmul.mubr.bf16.gmra.mrb[0].mxu0 %v1122
  %v1214 = vpop.f32.mrb[0].mxu0
  %v1215 = vadd.f32 %v1086, %v1214
  %v1216 = vpop.f32.mrb[0].mxu0
  %v1217 = vpop.f32.mrb[0].mxu0
  %v1218 = vadd.f32 %v1086, %v1217
  %v1219 = vpop.f32.mrb[0].mxu0
  %1220 = vdwg.mxu0
  %v1221 = vmax.f32 %v1159, 0.0
  %v1222 = vmax.f32 %v1162, 0.0
  %v1223 = vmax.f32 %v1167, 0.0
  %v1224 = vmax.f32 %v1170, 0.0
  %v1225 = vmax.f32 %v1175, 0.0
  %v1226 = vmax.f32 %v1178, 0.0
  %v1227 = vmax.f32 %v1183, 0.0
  %v1228 = vmax.f32 %v1186, 0.0
  %v1229 = vmax.f32 %v1191, 0.0
  %v1230 = vmax.f32 %v1194, 0.0
  %v1231 = vmax.f32 %v1199, 0.0
  %v1232 = vmax.f32 %v1202, 0.0
  %v1233 = vmax.f32 %v1207, 0.0
  %v1234 = vmax.f32 %v1210, 0.0
  %v1235 = vmax.f32 %v1215, 0.0
  %v1236 = vmax.f32 %v1218, 0.0
  %v1237 = vpack.c.bf16 %v1222, %v1221
  %v1238 = vpack.c.bf16 %v1224, %v1223
  %v1239 = vpack.c.bf16 %v1226, %v1225
  %v1240 = vpack.c.bf16 %v1228, %v1227
  %v1241 = vpack.c.bf16 %v1230, %v1229
  %v1242 = vpack.c.bf16 %v1232, %v1231
  %v1243 = vpack.c.bf16 %v1234, %v1233
  %v1244 = vpack.c.bf16 %v1236, %v1235
  %v1245 = vld [vmem:[%s12] sm:$0xf]
  %v1246 = vld [vmem:[%s12 + $0x4] sm:$0xf]
  %v1247 = vld [vmem:[%s12 + $0x8] sm:$0xf]
  %v1248 = vld [vmem:[%s12 + $0xc] sm:$0xf]
  %v1253 = vunpack.c.l.b16 %v1245
  %v1254 = vunpack.c.l.b16 %v1246
  %v1255 = vunpack.c.l.b16 %v1247
  %v1256 = vunpack.c.l.b16 %v1248
  %v1257 = vpack.c.b16 %v1254, %v1253
  %v1258 = vpack.c.b16 %v1256, %v1255
  %v1262 = vsel %vm113, %v1237, 0
  %v1265 = vsel %vm113, %v1238, 0
  %v1268 = vsel %vm113, %v1239, 0
  %v1271 = vsel %vm113, %v1240, 0
  %v1274 = vsel %vm113, %v1241, 0
  %v1277 = vsel %vm113, %v1242, 0
  %v1280 = vsel %vm113, %v1243, 0
  %v1283 = vsel %vm113, %v1244, 0
  %1285 = vmatprep.subr.bf16.mxu0 0
  %1286 = vmatpush1.bf16.msra.mxu0 %v1257
  %1287 = vmatprep.subr.bf16.mxu0 0
  %1288 = vmatpush1.bf16.msra.mxu0 %v1258
  %1289 = vmatprep.subr.bf16.mxu0 0
  %1290 = vmatpush1.bf16.msra.mxu0 0
  %1291 = vmatprep.subr.bf16.mxu0 0
  %1292 = vmatpush1.bf16.msra.mxu0 0
  %1293 = vmatprep.subr.bf16.mxu0 0
  %1294 = vmatpush1.bf16.msra.mxu0 0
  %1295 = vmatprep.subr.bf16.mxu0 0
  %1296 = vmatpush1.bf16.msra.mxu0 0
  %1297 = vmatprep.subr.bf16.mxu0 0
  %1298 = vmatpush1.bf16.msra.mxu0 0
  %1299 = vmatprep.subr.bf16.mxu0 0
  %1300 = vmatpush1.bf16.msra.mxu0 0
  %1301 = vmatprep.subr.bf16.mxu0 0
  %1302 = vmatpush1.bf16.msra.mxu0 0
  %1303 = vmatprep.subr.bf16.mxu0 0
  %1304 = vmatpush1.bf16.msra.mxu0 0
  %1305 = vmatprep.subr.bf16.mxu0 0
  %1306 = vmatpush1.bf16.msra.mxu0 0
  %1307 = vmatprep.subr.bf16.mxu0 0
  %1308 = vmatpush1.bf16.msra.mxu0 0
  %1309 = vmatprep.subr.bf16.mxu0 0
  %1310 = vmatpush1.bf16.msra.mxu0 0
  %1311 = vmatprep.subr.bf16.mxu0 0
  %1312 = vmatpush1.bf16.msra.mxu0 0
  %1313 = vmatprep.subr.bf16.mxu0 0
  %1314 = vmatpush1.bf16.msra.mxu0 0
  %1315 = vmatprep.subr.bf16.mxu0 0
  %1316 = vmatpush1.bf16.msra.mxu0 0
  %1317 = vmatprep.mubr.bf16.mxu0 0
  %1318 = vmatmul.mubr.bf16.gmra.mrb[0].mxu0 %v1262
  %v1319 = vpop.f32.mrb[0].mxu0
  %v1320 = vadd.f32 0.0, %v1319
  %v1321 = vpop.f32.mrb[0].mxu0
  %v1322 = vpop.f32.mrb[0].mxu0
  %v1323 = vadd.f32 0.0, %v1322
  %v1324 = vpop.f32.mrb[0].mxu0
  %1325 = vmatprep.mubr.bf16.mxu0 0
  %1326 = vmatmul.mubr.bf16.gmra.mrb[0].mxu0 %v1265
  %v1327 = vpop.f32.mrb[0].mxu0
  %v1328 = vadd.f32 0.0, %v1327
  %v1329 = vpop.f32.mrb[0].mxu0
  %v1330 = vpop.f32.mrb[0].mxu0
  %v1331 = vadd.f32 0.0, %v1330
  %v1332 = vpop.f32.mrb[0].mxu0
  %1333 = vmatprep.mubr.bf16.mxu0 0
  %1334 = vmatmul.mubr.bf16.gmra.mrb[0].mxu0 %v1268
  %v1335 = vpop.f32.mrb[0].mxu0
  %v1336 = vadd.f32 0.0, %v1335
  %v1337 = vpop.f32.mrb[0].mxu0
  %v1338 = vpop.f32.mrb[0].mxu0
  %v1339 = vadd.f32 0.0, %v1338
  %v1340 = vpop.f32.mrb[0].mxu0
  %1341 = vmatprep.mubr.bf16.mxu0 0
  %1342 = vmatmul.mubr.bf16.gmra.mrb[0].mxu0 %v1271
  %v1343 = vpop.f32.mrb[0].mxu0
  %v1344 = vadd.f32 0.0, %v1343
  %v1345 = vpop.f32.mrb[0].mxu0
  %v1346 = vpop.f32.mrb[0].mxu0
  %v1347 = vadd.f32 0.0, %v1346
  %v1348 = vpop.f32.mrb[0].mxu0
  %1349 = vmatprep.mubr.bf16.mxu0 0
  %1350 = vmatmul.mubr.bf16.gmra.mrb[0].mxu0 %v1274
  %v1351 = vpop.f32.mrb[0].mxu0
  %v1352 = vadd.f32 0.0, %v1351
  %v1353 = vpop.f32.mrb[0].mxu0
  %v1354 = vpop.f32.mrb[0].mxu0
  %v1355 = vadd.f32 0.0, %v1354
  %v1356 = vpop.f32.mrb[0].mxu0
  %1357 = vmatprep.mubr.bf16.mxu0 0
  %1358 = vmatmul.mubr.bf16.gmra.mrb[0].mxu0 %v1277
  %v1359 = vpop.f32.mrb[0].mxu0
  %v1360 = vadd.f32 0.0, %v1359
  %v1361 = vpop.f32.mrb[0].mxu0
  %v1362 = vpop.f32.mrb[0].mxu0
  %v1363 = vadd.f32 0.0, %v1362
  %v1364 = vpop.f32.mrb[0].mxu0
  %1365 = vmatprep.mubr.bf16.mxu0 0
  %1366 = vmatmul.mubr.bf16.gmra.mrb[0].mxu0 %v1280
  %v1367 = vpop.f32.mrb[0].mxu0
  %v1368 = vadd.f32 0.0, %v1367
  %v1369 = vpop.f32.mrb[0].mxu0
  %v1370 = vpop.f32.mrb[0].mxu0
  %v1371 = vadd.f32 0.0, %v1370
  %v1372 = vpop.f32.mrb[0].mxu0
  %1373 = vmatprep.mubr.bf16.mxu0 0
  %1374 = vmatmul.mubr.bf16.gmra.mrb[0].mxu0 %v1283
  %v1375 = vpop.f32.mrb[0].mxu0
  %v1376 = vadd.f32 0.0, %v1375
  %v1377 = vpop.f32.mrb[0].mxu0
  %v1378 = vpop.f32.mrb[0].mxu0
  %v1379 = vadd.f32 0.0, %v1378
  %v1380 = vpop.f32.mrb[0].mxu0
  %1381 = vdwg.mxu0
  %v1382 = vadd.f32 %v1053, %v1320
  %v1383 = vadd.f32 %v1054, %v1323
  %v1384 = vadd.f32 %v1055, %v1328
  %v1385 = vadd.f32 %v1056, %v1331
  %v1386 = vadd.f32 %v1057, %v1336
  %v1387 = vadd.f32 %v1058, %v1339
  %v1388 = vadd.f32 %v1059, %v1344
  %v1389 = vadd.f32 %v1060, %v1347
  %v1390 = vadd.f32 %v1061, %v1352
  %v1391 = vadd.f32 %v1062, %v1355
  %v1392 = vadd.f32 %v1063, %v1360
  %v1393 = vadd.f32 %v1064, %v1363
  %v1394 = vadd.f32 %v1065, %v1368
  %v1395 = vadd.f32 %v1066, %v1371
  %v1396 = vadd.f32 %v1067, %v1376
  %v1397 = vadd.f32 %v1068, %v1379
  %v1398 = vld [vmem:[%s13] sm:$0x1]
  %v1400 = vlaneseq
  %v1401 = vshrl.u32 %v1400, 7
  %v1402 = vsub.s32 0, %v1401
  %v1403 = vrot.slane %v1398, %v1402
  %v1405 = vadd.f32 %v1382, %v1403
  %v1406 = vadd.f32 %v1383, %v1403
  %v1407 = vadd.f32 %v1384, %v1403
  %v1408 = vadd.f32 %v1385, %v1403
  %v1409 = vadd.f32 %v1386, %v1403
  %v1410 = vadd.f32 %v1387, %v1403
  %v1411 = vadd.f32 %v1388, %v1403
  %v1412 = vadd.f32 %v1389, %v1403
  %v1413 = vadd.f32 %v1390, %v1403
  %v1414 = vadd.f32 %v1391, %v1403
  %v1415 = vadd.f32 %v1392, %v1403
  %v1416 = vadd.f32 %v1393, %v1403
  %v1417 = vadd.f32 %v1394, %v1403
  %v1418 = vadd.f32 %v1395, %v1403
  %v1419 = vadd.f32 %v1396, %v1403
  %v1420 = vadd.f32 %v1397, %v1403
  %v1421 = vpack.c.bf16 %v1406, %v1405
  %v1422 = vpack.c.bf16 %v1408, %v1407
  %v1423 = vpack.c.bf16 %v1410, %v1409
  %v1424 = vpack.c.bf16 %v1412, %v1411
  %v1425 = vpack.c.bf16 %v1414, %v1413
  %v1426 = vpack.c.bf16 %v1416, %v1415
  %v1427 = vpack.c.bf16 %v1418, %v1417
  %v1428 = vpack.c.bf16 %v1420, %v1419
  %v1429 = vld [vmem:[%s14] sm:$0x7]
  %v1430 = vld [vmem:[%s15] sm:$0x1f]
  %1432 = vset.pattern.permute.xlu0 0
  %1433 = vperm.xlu0 %1432, %v1430
  %v1434 = vpop.permute.xlu0 %1433
  %v1437 = vsel %vm113, %v1429, 0
  %v1440 = vsel %vm113, %v1421, 0
  %v1443 = vsel %vm113, %v1422, 0
  %v1446 = vsel %vm113, %v1423, 0
  %v1449 = vsel %vm113, %v1424, 0
  %v1452 = vsel %vm113, %v1425, 0
  %v1455 = vsel %vm113, %v1426, 0
  %v1458 = vsel %vm113, %v1427, 0
  %v1461 = vsel %vm113, %v1428, 0
  %1463 = vmatprep.subr.bf16.mxu0 0
  %1464 = vmatpush1.bf16.xpose.msra.mxu0 %v1440
  %1465 = vmatprep.subr.bf16.mxu0 0
  %1466 = vmatpush1.bf16.xpose.msra.mxu0 %v1443
  %1467 = vmatprep.subr.bf16.mxu0 0
  %1468 = vmatpush1.bf16.xpose.msra.mxu0 %v1446
  %1469 = vmatprep.subr.bf16.mxu0 0
  %1470 = vmatpush1.bf16.xpose.msra.mxu0 %v1449
  %1471 = vmatprep.subr.bf16.mxu0 0
  %1472 = vmatpush1.bf16.xpose.msra.mxu0 %v1452
  %1473 = vmatprep.subr.bf16.mxu0 0
  %1474 = vmatpush1.bf16.xpose.msra.mxu0 %v1455
  %1475 = vmatprep.subr.bf16.mxu0 0
  %1476 = vmatpush1.bf16.xpose.msra.mxu0 %v1458
  %1477 = vmatprep.subr.bf16.mxu0 0
  %1478 = vmatpush1.bf16.xpose.msra.mxu0 %v1461
  %1479 = vmatprep.subr.bf16.mxu0 0
  %1480 = vmatpush1.bf16.xpose.msra.mxu0 0
  %1481 = vmatprep.subr.bf16.mxu0 0
  %1482 = vmatpush1.bf16.xpose.msra.mxu0 0
  %1483 = vmatprep.subr.bf16.mxu0 0
  %1484 = vmatpush1.bf16.xpose.msra.mxu0 0
  %1485 = vmatprep.subr.bf16.mxu0 0
  %1486 = vmatpush1.bf16.xpose.msra.mxu0 0
  %1487 = vmatprep.subr.bf16.mxu0 0
  %1488 = vmatpush1.bf16.xpose.msra.mxu0 0
  %1489 = vmatprep.subr.bf16.mxu0 0
  %1490 = vmatpush1.bf16.xpose.msra.mxu0 0
  %1491 = vmatprep.subr.bf16.mxu0 0
  %1492 = vmatpush1.bf16.xpose.msra.mxu0 0
  %1493 = vmatprep.subr.bf16.mxu0 0
  %1494 = vmatpush1.bf16.xpose.msra.mxu0 0
  %1495 = vmatprep.mubr.bf16.mxu0 0
  %1496 = vmatmul.mubr.bf16.gmra.mrb[0].mxu0 %v1437
  %v1497 = vpop.f32.mrb[0].mxu0
  %v1498 = vadd.f32 %v1434, %v1497
  %v1499 = vpop.f32.mrb[0].mxu0
  %v1500 = vpop.f32.mrb[0].mxu0
  %v1501 = vpop.f32.mrb[0].mxu0
  %1502 = vdwg.mxu0
  %v1503 = vld [vmem:[%s16] sm:$0x3]
  %v1504 = vld [vmem:[%s17] sm:$0xf]
  %1506 = vset.pattern.permute.xlu0 0
  %1507 = vperm.xlu0 %1506, %v1504
  %v1508 = vpop.permute.xlu0 %1507
  %v1511 = vsel %vm113, %v1503, 0
  %1513 = vmatprep.subr.bf16.mxu0 0
  %1514 = vmatpush1.bf16.xpose.msra.mxu0 %v1440
  %1515 = vmatprep.subr.bf16.mxu0 0
  %1516 = vmatpush1.bf16.xpose.msra.mxu0 %v1443
  %1517 = vmatprep.subr.bf16.mxu0 0
  %1518 = vmatpush1.bf16.xpose.msra.mxu0 %v1446
  %1519 = vmatprep.subr.bf16.mxu0 0
  %1520 = vmatpush1.bf16.xpose.msra.mxu0 %v1449
  %1521 = vmatprep.subr.bf16.mxu0 0
  %1522 = vmatpush1.bf16.xpose.msra.mxu0 %v1452
  %1523 = vmatprep.subr.bf16.mxu0 0
  %1524 = vmatpush1.bf16.xpose.msra.mxu0 %v1455
  %1525 = vmatprep.subr.bf16.mxu0 0
  %1526 = vmatpush1.bf16.xpose.msra.mxu0 %v1458
  %1527 = vmatprep.subr.bf16.mxu0 0
  %1528 = vmatpush1.bf16.xpose.msra.mxu0 %v1461
  %1529 = vmatprep.subr.bf16.mxu0 0
  %1530 = vmatpush1.bf16.xpose.msra.mxu0 0
  %1531 = vmatprep.subr.bf16.mxu0 0
  %1532 = vmatpush1.bf16.xpose.msra.mxu0 0
  %1533 = vmatprep.subr.bf16.mxu0 0
  %1534 = vmatpush1.bf16.xpose.msra.mxu0 0
  %1535 = vmatprep.subr.bf16.mxu0 0
  %1536 = vmatpush1.bf16.xpose.msra.mxu0 0
  %1537 = vmatprep.subr.bf16.mxu0 0
  %1538 = vmatpush1.bf16.xpose.msra.mxu0 0
  %1539 = vmatprep.subr.bf16.mxu0 0
  %1540 = vmatpush1.bf16.xpose.msra.mxu0 0
  %1541 = vmatprep.subr.bf16.mxu0 0
  %1542 = vmatpush1.bf16.xpose.msra.mxu0 0
  %1543 = vmatprep.subr.bf16.mxu0 0
  %1544 = vmatpush1.bf16.xpose.msra.mxu0 0
  %1545 = vmatprep.mubr.bf16.mxu0 0
  %1546 = vmatmul.mubr.bf16.gmra.mrb[0].mxu0 %v1511
  %v1547 = vpop.f32.mrb[0].mxu0
  %v1548 = vadd.f32 %v1508, %v1547
  %v1549 = vpop.f32.mrb[0].mxu0
  %v1550 = vpop.f32.mrb[0].mxu0
  %v1551 = vpop.f32.mrb[0].mxu0
  %1552 = vdwg.mxu0
  %v1553 = vmax.f32 %v397, 1e-05
  %v1554 = vmin.f32 %v1553, 0.99999
  %v1555 = vsub.f32 1.0, %v1554
  %v1556 = vrcp.pop %v1555
  %v1557 = vmul.f32 %v1554, %v1556
  %v1558 = vlog2.pop %v1557
  %v1559 = vmul.f32 %v1558, 0.6931472
  %v1560 = vadd.f32 %v1559, %v1548
  %v1561 = vxor.u32 %v1560, 2147483648
  %v1562 = vmul.f32 %v1561, 1.442695
  %v1563 = vpow.pop %v1562
  %v1564 = vadd.f32 %v1563, 1.0
  %v1565 = vrcp.pop %v1564
  %v1566 = vmul.f32 1.0, %v1565
  %1567 = vst [vmem:[%s18 + $0x10] sm:$0x1f] %v1498
  %1568 = vst [vmem:[%s18 + $0x18] sm:$0xf] %v1566
  %s1569 = scalar_lea.vmem %s8, 16
  %v1570 = vld [vmem:[%s1569] sm:$0xf]
  %v1571 = vld [vmem:[%s1569 + $0x4] sm:$0xf]
  %v1572 = vld [vmem:[%s1569 + $0x8] sm:$0xf]
  %v1573 = vld [vmem:[%s1569 + $0xc] sm:$0xf]
  %s1574 = scalar_lea.vmem %s9, 1
  %v1575 = vld [vmem:[%s1574] sm:$0x1]
  %v1577 = vlaneseq
  %v1578 = vshrl.u32 %v1577, 7
  %v1579 = vsub.s32 0, %v1578
  %v1580 = vrot.slane %v1575, %v1579
  %v1586 = vunpack.c.l.b16 %v1570
  %v1587 = vunpack.c.l.b16 %v1571
  %v1588 = vunpack.c.l.b16 %v1572
  %v1589 = vunpack.c.l.b16 %v1573
  %v1590 = vpack.c.b16 %v1587, %v1586
  %v1591 = vpack.c.b16 %v1589, %v1588
  %1594 = vmatprep.subr.bf16.mxu0 0
  %1595 = vmatpush1.bf16.msra.mxu0 %v1590
  %1596 = vmatprep.subr.bf16.mxu0 0
  %1597 = vmatpush1.bf16.msra.mxu0 %v1591
  %1598 = vmatprep.subr.bf16.mxu0 0
  %1599 = vmatpush1.bf16.msra.mxu0 0
  %1600 = vmatprep.subr.bf16.mxu0 0
  %1601 = vmatpush1.bf16.msra.mxu0 0
  %1602 = vmatprep.subr.bf16.mxu0 0
  %1603 = vmatpush1.bf16.msra.mxu0 0
  %1604 = vmatprep.subr.bf16.mxu0 0
  %1605 = vmatpush1.bf16.msra.mxu0 0
  %1606 = vmatprep.subr.bf16.mxu0 0
  %1607 = vmatpush1.bf16.msra.mxu0 0
  %1608 = vmatprep.subr.bf16.mxu0 0
  %1609 = vmatpush1.bf16.msra.mxu0 0
  %1610 = vmatprep.subr.bf16.mxu0 0
  %1611 = vmatpush1.bf16.msra.mxu0 0
  %1612 = vmatprep.subr.bf16.mxu0 0
  %1613 = vmatpush1.bf16.msra.mxu0 0
  %1614 = vmatprep.subr.bf16.mxu0 0
  %1615 = vmatpush1.bf16.msra.mxu0 0
  %1616 = vmatprep.subr.bf16.mxu0 0
  %1617 = vmatpush1.bf16.msra.mxu0 0
  %1618 = vmatprep.subr.bf16.mxu0 0
  %1619 = vmatpush1.bf16.msra.mxu0 0
  %1620 = vmatprep.subr.bf16.mxu0 0
  %1621 = vmatpush1.bf16.msra.mxu0 0
  %1622 = vmatprep.subr.bf16.mxu0 0
  %1623 = vmatpush1.bf16.msra.mxu0 0
  %1624 = vmatprep.subr.bf16.mxu0 0
  %1625 = vmatpush1.bf16.msra.mxu0 0
  %1626 = vmatprep.mubr.bf16.mxu0 0
  %1627 = vmatmul.mubr.bf16.gmra.mrb[0].mxu0 %v1440
  %v1628 = vpop.f32.mrb[0].mxu0
  %v1629 = vadd.f32 %v1580, %v1628
  %v1630 = vpop.f32.mrb[0].mxu0
  %v1631 = vpop.f32.mrb[0].mxu0
  %v1632 = vadd.f32 %v1580, %v1631
  %v1633 = vpop.f32.mrb[0].mxu0
  %1634 = vmatprep.mubr.bf16.mxu0 0
  %1635 = vmatmul.mubr.bf16.gmra.mrb[0].mxu0 %v1443
  %v1636 = vpop.f32.mrb[0].mxu0
  %v1637 = vadd.f32 %v1580, %v1636
  %v1638 = vpop.f32.mrb[0].mxu0
  %v1639 = vpop.f32.mrb[0].mxu0
  %v1640 = vadd.f32 %v1580, %v1639
  %v1641 = vpop.f32.mrb[0].mxu0
  %1642 = vmatprep.mubr.bf16.mxu0 0
  %1643 = vmatmul.mubr.bf16.gmra.mrb[0].mxu0 %v1446
  %v1644 = vpop.f32.mrb[0].mxu0
  %v1645 = vadd.f32 %v1580, %v1644
  %v1646 = vpop.f32.mrb[0].mxu0
  %v1647 = vpop.f32.mrb[0].mxu0
  %v1648 = vadd.f32 %v1580, %v1647
  %v1649 = vpop.f32.mrb[0].mxu0
  %1650 = vmatprep.mubr.bf16.mxu0 0
  %1651 = vmatmul.mubr.bf16.gmra.mrb[0].mxu0 %v1449
  %v1652 = vpop.f32.mrb[0].mxu0
  %v1653 = vadd.f32 %v1580, %v1652
  %v1654 = vpop.f32.mrb[0].mxu0
  %v1655 = vpop.f32.mrb[0].mxu0
  %v1656 = vadd.f32 %v1580, %v1655
  %v1657 = vpop.f32.mrb[0].mxu0
  %1658 = vmatprep.mubr.bf16.mxu0 0
  %1659 = vmatmul.mubr.bf16.gmra.mrb[0].mxu0 %v1452
  %v1660 = vpop.f32.mrb[0].mxu0
  %v1661 = vadd.f32 %v1580, %v1660
  %v1662 = vpop.f32.mrb[0].mxu0
  %v1663 = vpop.f32.mrb[0].mxu0
  %v1664 = vadd.f32 %v1580, %v1663
  %v1665 = vpop.f32.mrb[0].mxu0
  %1666 = vmatprep.mubr.bf16.mxu0 0
  %1667 = vmatmul.mubr.bf16.gmra.mrb[0].mxu0 %v1455
  %v1668 = vpop.f32.mrb[0].mxu0
  %v1669 = vadd.f32 %v1580, %v1668
  %v1670 = vpop.f32.mrb[0].mxu0
  %v1671 = vpop.f32.mrb[0].mxu0
  %v1672 = vadd.f32 %v1580, %v1671
  %v1673 = vpop.f32.mrb[0].mxu0
  %1674 = vmatprep.mubr.bf16.mxu0 0
  %1675 = vmatmul.mubr.bf16.gmra.mrb[0].mxu0 %v1458
  %v1676 = vpop.f32.mrb[0].mxu0
  %v1677 = vadd.f32 %v1580, %v1676
  %v1678 = vpop.f32.mrb[0].mxu0
  %v1679 = vpop.f32.mrb[0].mxu0
  %v1680 = vadd.f32 %v1580, %v1679
  %v1681 = vpop.f32.mrb[0].mxu0
  %1682 = vmatprep.mubr.bf16.mxu0 0
  %1683 = vmatmul.mubr.bf16.gmra.mrb[0].mxu0 %v1461
  %v1684 = vpop.f32.mrb[0].mxu0
  %v1685 = vadd.f32 %v1580, %v1684
  %v1686 = vpop.f32.mrb[0].mxu0
  %v1687 = vpop.f32.mrb[0].mxu0
  %v1688 = vadd.f32 %v1580, %v1687
  %v1689 = vpop.f32.mrb[0].mxu0
  %1690 = vdwg.mxu0
  %v1691 = vpack.c.bf16 %v1632, %v1629
  %v1692 = vpack.c.bf16 %v1640, %v1637
  %v1693 = vpack.c.bf16 %v1648, %v1645
  %v1694 = vpack.c.bf16 %v1656, %v1653
  %v1696 = vsel %vm113, %v1691, 0
  %v1699 = vsel %vm113, %v1692, 0
  %v1702 = vsel %vm113, %v1693, 0
  %v1705 = vsel %vm113, %v1694, 0
  %1707 = vmatprep.subr.bf16.mxu0 0
  %1708 = vmatpush1.bf16.xpose.msra.mxu0 %v115
  %1709 = vmatprep.subr.bf16.mxu0 0
  %1710 = vmatpush1.bf16.xpose.msra.mxu0 %v118
  %1711 = vmatprep.subr.bf16.mxu0 0
  %1712 = vmatpush1.bf16.xpose.msra.mxu0 %v121
  %1713 = vmatprep.subr.bf16.mxu0 0
  %1714 = vmatpush1.bf16.xpose.msra.mxu0 %v124
  %1715 = vmatprep.subr.bf16.mxu0 0
  %1716 = vmatpush1.bf16.xpose.msra.mxu0 0
  %1717 = vmatprep.subr.bf16.mxu0 0
  %1718 = vmatpush1.bf16.xpose.msra.mxu0 0
  %1719 = vmatprep.subr.bf16.mxu0 0
  %1720 = vmatpush1.bf16.xpose.msra.mxu0 0
  %1721 = vmatprep.subr.bf16.mxu0 0
  %1722 = vmatpush1.bf16.xpose.msra.mxu0 0
  %1723 = vmatprep.subr.bf16.mxu0 0
  %1724 = vmatpush1.bf16.xpose.msra.mxu0 0
  %1725 = vmatprep.subr.bf16.mxu0 0
  %1726 = vmatpush1.bf16.xpose.msra.mxu0 0
  %1727 = vmatprep.subr.bf16.mxu0 0
  %1728 = vmatpush1.bf16.xpose.msra.mxu0 0
  %1729 = vmatprep.subr.bf16.mxu0 0
  %1730 = vmatpush1.bf16.xpose.msra.mxu0 0
  %1731 = vmatprep.subr.bf16.mxu0 0
  %1732 = vmatpush1.bf16.xpose.msra.mxu0 0
  %1733 = vmatprep.subr.bf16.mxu0 0
  %1734 = vmatpush1.bf16.xpose.msra.mxu0 0
  %1735 = vmatprep.subr.bf16.mxu0 0
  %1736 = vmatpush1.bf16.xpose.msra.mxu0 0
  %1737 = vmatprep.subr.bf16.mxu0 0
  %1738 = vmatpush1.bf16.xpose.msra.mxu0 0
  %1739 = vmatprep.mubr.bf16.mxu0 0
  %1740 = vmatmul.mubr.bf16.gmra.mrb[0].mxu0 %v1696
  %v1741 = vpop.f32.mrb[0].mxu0
  %v1742 = vadd.f32 0.0, %v1741
  %v1743 = vpop.f32.mrb[0].mxu0
  %v1744 = vpop.f32.mrb[0].mxu0
  %v1745 = vadd.f32 0.0, %v1744
  %v1746 = vpop.f32.mrb[0].mxu0
  %1747 = vmatprep.mubr.bf16.mxu0 0
  %1748 = vmatmul.mubr.bf16.gmra.mrb[0].mxu0 %v1699
  %v1749 = vpop.f32.mrb[0].mxu0
  %v1750 = vadd.f32 0.0, %v1749
  %v1751 = vpop.f32.mrb[0].mxu0
  %v1752 = vpop.f32.mrb[0].mxu0
  %v1753 = vadd.f32 0.0, %v1752
  %v1754 = vpop.f32.mrb[0].mxu0
  %1755 = vmatprep.mubr.bf16.mxu0 0
  %1756 = vmatmul.mubr.bf16.gmra.mrb[0].mxu0 %v1702
  %v1757 = vpop.f32.mrb[0].mxu0
  %v1758 = vadd.f32 0.0, %v1757
  %v1759 = vpop.f32.mrb[0].mxu0
  %v1760 = vpop.f32.mrb[0].mxu0
  %v1761 = vadd.f32 0.0, %v1760
  %v1762 = vpop.f32.mrb[0].mxu0
  %1763 = vmatprep.mubr.bf16.mxu0 0
  %1764 = vmatmul.mubr.bf16.gmra.mrb[0].mxu0 %v1705
  %v1765 = vpop.f32.mrb[0].mxu0
  %v1766 = vadd.f32 0.0, %v1765
  %v1767 = vpop.f32.mrb[0].mxu0
  %v1768 = vpop.f32.mrb[0].mxu0
  %v1769 = vadd.f32 0.0, %v1768
  %v1770 = vpop.f32.mrb[0].mxu0
  %1771 = vdwg.mxu0
  %v1772 = vsel %vm601, %v1742, -inf
  %1773 = vmax.xlane.f32.xlu0 %v1772
  %v1774 = vpop.xlane.xlu0 %1773
  %v1775 = vsel %vm601, %v1745, -inf
  %1776 = vmax.xlane.f32.xlu0 %v1775
  %v1777 = vpop.xlane.xlu0 %1776
  %v1778 = vsel %vm601, %v1750, -inf
  %1779 = vmax.xlane.f32.xlu0 %v1778
  %v1780 = vpop.xlane.xlu0 %1779
  %v1781 = vsel %vm601, %v1753, -inf
  %1782 = vmax.xlane.f32.xlu0 %v1781
  %v1783 = vpop.xlane.xlu0 %1782
  %v1784 = vsel %vm601, %v1758, -inf
  %1785 = vmax.xlane.f32.xlu0 %v1784
  %v1786 = vpop.xlane.xlu0 %1785
  %v1787 = vsel %vm601, %v1761, -inf
  %1788 = vmax.xlane.f32.xlu0 %v1787
  %v1789 = vpop.xlane.xlu0 %1788
  %v1790 = vsel %vm601, %v1766, -inf
  %1791 = vmax.xlane.f32.xlu0 %v1790
  %v1792 = vpop.xlane.xlu0 %1791
  %v1793 = vsel %vm601, %v1769, -inf
  %1794 = vmax.xlane.f32.xlu0 %v1793
  %v1795 = vpop.xlane.xlu0 %1794
  %v1796 = vsub.f32 %v1742, %v1774
  %v1797 = vsub.f32 %v1745, %v1777
  %v1798 = vsub.f32 %v1750, %v1780
  %v1799 = vsub.f32 %v1753, %v1783
  %v1800 = vsub.f32 %v1758, %v1786
  %v1801 = vsub.f32 %v1761, %v1789
  %v1802 = vsub.f32 %v1766, %v1792
  %v1803 = vsub.f32 %v1769, %v1795
  %v1804 = vmul.f32 %v1796, 1.442695
  %v1805 = vpow.pop %v1804
  %v1806 = vmul.f32 %v1797, 1.442695
  %v1807 = vpow.pop %v1806
  %v1808 = vmul.f32 %v1798, 1.442695
  %v1809 = vpow.pop %v1808
  %v1810 = vmul.f32 %v1799, 1.442695
  %v1811 = vpow.pop %v1810
  %v1812 = vmul.f32 %v1800, 1.442695
  %v1813 = vpow.pop %v1812
  %v1814 = vmul.f32 %v1801, 1.442695
  %v1815 = vpow.pop %v1814
  %v1816 = vmul.f32 %v1802, 1.442695
  %v1817 = vpow.pop %v1816
  %v1818 = vmul.f32 %v1803, 1.442695
  %v1819 = vpow.pop %v1818
  %v1820 = vsel %vm601, %v1805, 0.0
  %1821 = vadd.xlane.f32.xlu0 %v1820
  %v1822 = vpop.xlane.xlu0 %1821
  %v1823 = vsel %vm601, %v1807, 0.0
  %1824 = vadd.xlane.f32.xlu0 %v1823
  %v1825 = vpop.xlane.xlu0 %1824
  %v1826 = vsel %vm601, %v1809, 0.0
  %1827 = vadd.xlane.f32.xlu0 %v1826
  %v1828 = vpop.xlane.xlu0 %1827
  %v1829 = vsel %vm601, %v1811, 0.0
  %1830 = vadd.xlane.f32.xlu0 %v1829
  %v1831 = vpop.xlane.xlu0 %1830
  %v1832 = vsel %vm601, %v1813, 0.0
  %1833 = vadd.xlane.f32.xlu0 %v1832
  %v1834 = vpop.xlane.xlu0 %1833
  %v1835 = vsel %vm601, %v1815, 0.0
  %1836 = vadd.xlane.f32.xlu0 %v1835
  %v1837 = vpop.xlane.xlu0 %1836
  %v1838 = vsel %vm601, %v1817, 0.0
  %1839 = vadd.xlane.f32.xlu0 %v1838
  %v1840 = vpop.xlane.xlu0 %1839
  %v1841 = vsel %vm601, %v1819, 0.0
  %1842 = vadd.xlane.f32.xlu0 %v1841
  %v1843 = vpop.xlane.xlu0 %1842
  %v1844 = vrcp.pop %v1822
  %v1845 = vrcp.pop %v1825
  %v1846 = vrcp.pop %v1828
  %v1847 = vrcp.pop %v1831
  %v1848 = vrcp.pop %v1834
  %v1849 = vrcp.pop %v1837
  %v1850 = vrcp.pop %v1840
  %v1851 = vrcp.pop %v1843
  %v1852 = vmul.f32 %v1805, %v1844
  %v1853 = vmul.f32 %v1807, %v1845
  %v1854 = vmul.f32 %v1809, %v1846
  %v1855 = vmul.f32 %v1811, %v1847
  %v1856 = vmul.f32 %v1813, %v1848
  %v1857 = vmul.f32 %v1815, %v1849
  %v1858 = vmul.f32 %v1817, %v1850
  %v1859 = vmul.f32 %v1819, %v1851
  %v1860 = vpack.c.bf16 %v1853, %v1852
  %v1861 = vpack.c.bf16 %v1855, %v1854
  %v1862 = vpack.c.bf16 %v1857, %v1856
  %v1863 = vpack.c.bf16 %v1859, %v1858
  %v1865 = vsel %vm601, %v1860, 0
  %v1868 = vsel %vm601, %v1861, 0
  %v1871 = vsel %vm601, %v1862, 0
  %v1874 = vsel %vm601, %v1863, 0
  %1876 = vmatprep.subr.bf16.mxu0 0
  %1877 = vmatpush1.bf16.msra.mxu0 %v82
  %1878 = vmatprep.subr.bf16.mxu0 0
  %1879 = vmatpush1.bf16.msra.mxu0 %v83
  %1880 = vmatprep.subr.bf16.mxu0 0
  %1881 = vmatpush1.bf16.msra.mxu0 %v84
  %1882 = vmatprep.subr.bf16.mxu0 0
  %1883 = vmatpush1.bf16.msra.mxu0 %v85
  %1884 = vmatprep.subr.bf16.mxu0 0
  %1885 = vmatpush1.bf16.msra.mxu0 0
  %1886 = vmatprep.subr.bf16.mxu0 0
  %1887 = vmatpush1.bf16.msra.mxu0 0
  %1888 = vmatprep.subr.bf16.mxu0 0
  %1889 = vmatpush1.bf16.msra.mxu0 0
  %1890 = vmatprep.subr.bf16.mxu0 0
  %1891 = vmatpush1.bf16.msra.mxu0 0
  %1892 = vmatprep.subr.bf16.mxu0 0
  %1893 = vmatpush1.bf16.msra.mxu0 0
  %1894 = vmatprep.subr.bf16.mxu0 0
  %1895 = vmatpush1.bf16.msra.mxu0 0
  %1896 = vmatprep.subr.bf16.mxu0 0
  %1897 = vmatpush1.bf16.msra.mxu0 0
  %1898 = vmatprep.subr.bf16.mxu0 0
  %1899 = vmatpush1.bf16.msra.mxu0 0
  %1900 = vmatprep.subr.bf16.mxu0 0
  %1901 = vmatpush1.bf16.msra.mxu0 0
  %1902 = vmatprep.subr.bf16.mxu0 0
  %1903 = vmatpush1.bf16.msra.mxu0 0
  %1904 = vmatprep.subr.bf16.mxu0 0
  %1905 = vmatpush1.bf16.msra.mxu0 0
  %1906 = vmatprep.subr.bf16.mxu0 0
  %1907 = vmatpush1.bf16.msra.mxu0 0
  %1908 = vmatprep.mubr.bf16.mxu0 0
  %1909 = vmatmul.mubr.bf16.gmra.mrb[0].mxu0 %v1865
  %v1910 = vpop.f32.mrb[0].mxu0
  %v1911 = vadd.f32 0.0, %v1910
  %v1912 = vpop.f32.mrb[0].mxu0
  %v1913 = vpop.f32.mrb[0].mxu0
  %v1914 = vadd.f32 0.0, %v1913
  %v1915 = vpop.f32.mrb[0].mxu0
  %1916 = vmatprep.mubr.bf16.mxu0 0
  %1917 = vmatmul.mubr.bf16.gmra.mrb[0].mxu0 %v1868
  %v1918 = vpop.f32.mrb[0].mxu0
  %v1919 = vadd.f32 0.0, %v1918
  %v1920 = vpop.f32.mrb[0].mxu0
  %v1921 = vpop.f32.mrb[0].mxu0
  %v1922 = vadd.f32 0.0, %v1921
  %v1923 = vpop.f32.mrb[0].mxu0
  %1924 = vmatprep.mubr.bf16.mxu0 0
  %1925 = vmatmul.mubr.bf16.gmra.mrb[0].mxu0 %v1871
  %v1926 = vpop.f32.mrb[0].mxu0
  %v1927 = vadd.f32 0.0, %v1926
  %v1928 = vpop.f32.mrb[0].mxu0
  %v1929 = vpop.f32.mrb[0].mxu0
  %v1930 = vadd.f32 0.0, %v1929
  %v1931 = vpop.f32.mrb[0].mxu0
  %1932 = vmatprep.mubr.bf16.mxu0 0
  %1933 = vmatmul.mubr.bf16.gmra.mrb[0].mxu0 %v1874
  %v1934 = vpop.f32.mrb[0].mxu0
  %v1935 = vadd.f32 0.0, %v1934
  %v1936 = vpop.f32.mrb[0].mxu0
  %v1937 = vpop.f32.mrb[0].mxu0
  %v1938 = vadd.f32 0.0, %v1937
  %v1939 = vpop.f32.mrb[0].mxu0
  %1940 = vdwg.mxu0
  %1941 = vst.msk [vmem:[#allocation2] sm:$0xff] %vm113, %v1911
  %1942 = vst.msk [vmem:[#allocation2 + $0x8] sm:$0xff] %vm113, %v1914
  %1943 = vst.msk [vmem:[#allocation2 + $0x10] sm:$0xff] %vm113, %v1919
  %1944 = vst.msk [vmem:[#allocation2 + $0x18] sm:$0xff] %vm113, %v1922
  %1945 = vst.msk [vmem:[#allocation2 + $0x20] sm:$0xff] %vm113, %v1927
  %1946 = vst.msk [vmem:[#allocation2 + $0x28] sm:$0xff] %vm113, %v1930
  %1947 = vst.msk [vmem:[#allocation2 + $0x30] sm:$0xff] %vm113, %v1935
  %1948 = vst.msk [vmem:[#allocation2 + $0x38] sm:$0xff] %vm113, %v1938
  %v1949 = vpack.c.bf16 %v1664, %v1661
  %v1950 = vpack.c.bf16 %v1672, %v1669
  %v1951 = vpack.c.bf16 %v1680, %v1677
  %v1952 = vpack.c.bf16 %v1688, %v1685
  %v1954 = vsel %vm113, %v1949, 0
  %v1957 = vsel %vm113, %v1950, 0
  %v1960 = vsel %vm113, %v1951, 0
  %v1963 = vsel %vm113, %v1952, 0
  %1965 = vmatprep.subr.bf16.mxu0 0
  %1966 = vmatpush1.bf16.xpose.msra.mxu0 %v127
  %1967 = vmatprep.subr.bf16.mxu0 0
  %1968 = vmatpush1.bf16.xpose.msra.mxu0 %v130
  %1969 = vmatprep.subr.bf16.mxu0 0
  %1970 = vmatpush1.bf16.xpose.msra.mxu0 %v133
  %1971 = vmatprep.subr.bf16.mxu0 0
  %1972 = vmatpush1.bf16.xpose.msra.mxu0 %v136
  %1973 = vmatprep.subr.bf16.mxu0 0
  %1974 = vmatpush1.bf16.xpose.msra.mxu0 0
  %1975 = vmatprep.subr.bf16.mxu0 0
  %1976 = vmatpush1.bf16.xpose.msra.mxu0 0
  %1977 = vmatprep.subr.bf16.mxu0 0
  %1978 = vmatpush1.bf16.xpose.msra.mxu0 0
  %1979 = vmatprep.subr.bf16.mxu0 0
  %1980 = vmatpush1.bf16.xpose.msra.mxu0 0
  %1981 = vmatprep.subr.bf16.mxu0 0
  %1982 = vmatpush1.bf16.xpose.msra.mxu0 0
  %1983 = vmatprep.subr.bf16.mxu0 0
  %1984 = vmatpush1.bf16.xpose.msra.mxu0 0
  %1985 = vmatprep.subr.bf16.mxu0 0
  %1986 = vmatpush1.bf16.xpose.msra.mxu0 0
  %1987 = vmatprep.subr.bf16.mxu0 0
  %1988 = vmatpush1.bf16.xpose.msra.mxu0 0
  %1989 = vmatprep.subr.bf16.mxu0 0
  %1990 = vmatpush1.bf16.xpose.msra.mxu0 0
  %1991 = vmatprep.subr.bf16.mxu0 0
  %1992 = vmatpush1.bf16.xpose.msra.mxu0 0
  %1993 = vmatprep.subr.bf16.mxu0 0
  %1994 = vmatpush1.bf16.xpose.msra.mxu0 0
  %1995 = vmatprep.subr.bf16.mxu0 0
  %1996 = vmatpush1.bf16.xpose.msra.mxu0 0
  %1997 = vmatprep.mubr.bf16.mxu0 0
  %1998 = vmatmul.mubr.bf16.gmra.mrb[0].mxu0 %v1954
  %v1999 = vpop.f32.mrb[0].mxu0
  %v2000 = vadd.f32 0.0, %v1999
  %v2001 = vpop.f32.mrb[0].mxu0
  %v2002 = vpop.f32.mrb[0].mxu0
  %v2003 = vadd.f32 0.0, %v2002
  %v2004 = vpop.f32.mrb[0].mxu0
  %2005 = vmatprep.mubr.bf16.mxu0 0
  %2006 = vmatmul.mubr.bf16.gmra.mrb[0].mxu0 %v1957
  %v2007 = vpop.f32.mrb[0].mxu0
  %v2008 = vadd.f32 0.0, %v2007
  %v2009 = vpop.f32.mrb[0].mxu0
  %v2010 = vpop.f32.mrb[0].mxu0
  %v2011 = vadd.f32 0.0, %v2010
  %v2012 = vpop.f32.mrb[0].mxu0
  %2013 = vmatprep.mubr.bf16.mxu0 0
  %2014 = vmatmul.mubr.bf16.gmra.mrb[0].mxu0 %v1960
  %v2015 = vpop.f32.mrb[0].mxu0
  %v2016 = vadd.f32 0.0, %v2015
  %v2017 = vpop.f32.mrb[0].mxu0
  %v2018 = vpop.f32.mrb[0].mxu0
  %v2019 = vadd.f32 0.0, %v2018
  %v2020 = vpop.f32.mrb[0].mxu0
  %2021 = vmatprep.mubr.bf16.mxu0 0
  %2022 = vmatmul.mubr.bf16.gmra.mrb[0].mxu0 %v1963
  %v2023 = vpop.f32.mrb[0].mxu0
  %v2024 = vadd.f32 0.0, %v2023
  %v2025 = vpop.f32.mrb[0].mxu0
  %v2026 = vpop.f32.mrb[0].mxu0
  %v2027 = vadd.f32 0.0, %v2026
  %v2028 = vpop.f32.mrb[0].mxu0
  %2029 = vdwg.mxu0
  %v2030 = vsel %vm601, %v2000, -inf
  %2031 = vmax.xlane.f32.xlu0 %v2030
  %v2032 = vpop.xlane.xlu0 %2031
  %v2033 = vsel %vm601, %v2003, -inf
  %2034 = vmax.xlane.f32.xlu0 %v2033
  %v2035 = vpop.xlane.xlu0 %2034
  %v2036 = vsel %vm601, %v2008, -inf
  %2037 = vmax.xlane.f32.xlu0 %v2036
  %v2038 = vpop.xlane.xlu0 %2037
  %v2039 = vsel %vm601, %v2011, -inf
  %2040 = vmax.xlane.f32.xlu0 %v2039
  %v2041 = vpop.xlane.xlu0 %2040
  %v2042 = vsel %vm601, %v2016, -inf
  %2043 = vmax.xlane.f32.xlu0 %v2042
  %v2044 = vpop.xlane.xlu0 %2043
  %v2045 = vsel %vm601, %v2019, -inf
  %2046 = vmax.xlane.f32.xlu0 %v2045
  %v2047 = vpop.xlane.xlu0 %2046
  %v2048 = vsel %vm601, %v2024, -inf
  %2049 = vmax.xlane.f32.xlu0 %v2048
  %v2050 = vpop.xlane.xlu0 %2049
  %v2051 = vsel %vm601, %v2027, -inf
  %2052 = vmax.xlane.f32.xlu0 %v2051
  %v2053 = vpop.xlane.xlu0 %2052
  %v2054 = vsub.f32 %v2000, %v2032
  %v2055 = vsub.f32 %v2003, %v2035
  %v2056 = vsub.f32 %v2008, %v2038
  %v2057 = vsub.f32 %v2011, %v2041
  %v2058 = vsub.f32 %v2016, %v2044
  %v2059 = vsub.f32 %v2019, %v2047
  %v2060 = vsub.f32 %v2024, %v2050
  %v2061 = vsub.f32 %v2027, %v2053
  %v2062 = vmul.f32 %v2054, 1.442695
  %v2063 = vpow.pop %v2062
  %v2064 = vmul.f32 %v2055, 1.442695
  %v2065 = vpow.pop %v2064
  %v2066 = vmul.f32 %v2056, 1.442695
  %v2067 = vpow.pop %v2066
  %v2068 = vmul.f32 %v2057, 1.442695
  %v2069 = vpow.pop %v2068
  %v2070 = vmul.f32 %v2058, 1.442695
  %v2071 = vpow.pop %v2070
  %v2072 = vmul.f32 %v2059, 1.442695
  %v2073 = vpow.pop %v2072
  %v2074 = vmul.f32 %v2060, 1.442695
  %v2075 = vpow.pop %v2074
  %v2076 = vmul.f32 %v2061, 1.442695
  %v2077 = vpow.pop %v2076
  %v2078 = vsel %vm601, %v2063, 0.0
  %2079 = vadd.xlane.f32.xlu0 %v2078
  %v2080 = vpop.xlane.xlu0 %2079
  %v2081 = vsel %vm601, %v2065, 0.0
  %2082 = vadd.xlane.f32.xlu0 %v2081
  %v2083 = vpop.xlane.xlu0 %2082
  %v2084 = vsel %vm601, %v2067, 0.0
  %2085 = vadd.xlane.f32.xlu0 %v2084
  %v2086 = vpop.xlane.xlu0 %2085
  %v2087 = vsel %vm601, %v2069, 0.0
  %2088 = vadd.xlane.f32.xlu0 %v2087
  %v2089 = vpop.xlane.xlu0 %2088
  %v2090 = vsel %vm601, %v2071, 0.0
  %2091 = vadd.xlane.f32.xlu0 %v2090
  %v2092 = vpop.xlane.xlu0 %2091
  %v2093 = vsel %vm601, %v2073, 0.0
  %2094 = vadd.xlane.f32.xlu0 %v2093
  %v2095 = vpop.xlane.xlu0 %2094
  %v2096 = vsel %vm601, %v2075, 0.0
  %2097 = vadd.xlane.f32.xlu0 %v2096
  %v2098 = vpop.xlane.xlu0 %2097
  %v2099 = vsel %vm601, %v2077, 0.0
  %2100 = vadd.xlane.f32.xlu0 %v2099
  %v2101 = vpop.xlane.xlu0 %2100
  %v2102 = vrcp.pop %v2080
  %v2103 = vrcp.pop %v2083
  %v2104 = vrcp.pop %v2086
  %v2105 = vrcp.pop %v2089
  %v2106 = vrcp.pop %v2092
  %v2107 = vrcp.pop %v2095
  %v2108 = vrcp.pop %v2098
  %v2109 = vrcp.pop %v2101
  %v2110 = vmul.f32 %v2063, %v2102
  %v2111 = vmul.f32 %v2065, %v2103
  %v2112 = vmul.f32 %v2067, %v2104
  %v2113 = vmul.f32 %v2069, %v2105
  %v2114 = vmul.f32 %v2071, %v2106
  %v2115 = vmul.f32 %v2073, %v2107
  %v2116 = vmul.f32 %v2075, %v2108
  %v2117 = vmul.f32 %v2077, %v2109
  %v2118 = vpack.c.bf16 %v2111, %v2110
  %v2119 = vpack.c.bf16 %v2113, %v2112
  %v2120 = vpack.c.bf16 %v2115, %v2114
  %v2121 = vpack.c.bf16 %v2117, %v2116
  %v2123 = vsel %vm601, %v2118, 0
  %v2126 = vsel %vm601, %v2119, 0
  %v2129 = vsel %vm601, %v2120, 0
  %v2132 = vsel %vm601, %v2121, 0
  %2134 = vmatprep.subr.bf16.mxu0 0
  %2135 = vmatpush1.bf16.msra.mxu0 %v86
  %2136 = vmatprep.subr.bf16.mxu0 0
  %2137 = vmatpush1.bf16.msra.mxu0 %v87
  %2138 = vmatprep.subr.bf16.mxu0 0
  %2139 = vmatpush1.bf16.msra.mxu0 %v88
  %2140 = vmatprep.subr.bf16.mxu0 0
  %2141 = vmatpush1.bf16.msra.mxu0 %v89
  %2142 = vmatprep.subr.bf16.mxu0 0
  %2143 = vmatpush1.bf16.msra.mxu0 0
  %2144 = vmatprep.subr.bf16.mxu0 0
  %2145 = vmatpush1.bf16.msra.mxu0 0
  %2146 = vmatprep.subr.bf16.mxu0 0
  %2147 = vmatpush1.bf16.msra.mxu0 0
  %2148 = vmatprep.subr.bf16.mxu0 0
  %2149 = vmatpush1.bf16.msra.mxu0 0
  %2150 = vmatprep.subr.bf16.mxu0 0
  %2151 = vmatpush1.bf16.msra.mxu0 0
  %2152 = vmatprep.subr.bf16.mxu0 0
  %2153 = vmatpush1.bf16.msra.mxu0 0
  %2154 = vmatprep.subr.bf16.mxu0 0
  %2155 = vmatpush1.bf16.msra.mxu0 0
  %2156 = vmatprep.subr.bf16.mxu0 0
  %2157 = vmatpush1.bf16.msra.mxu0 0
  %2158 = vmatprep.subr.bf16.mxu0 0
  %2159 = vmatpush1.bf16.msra.mxu0 0
  %2160 = vmatprep.subr.bf16.mxu0 0
  %2161 = vmatpush1.bf16.msra.mxu0 0
  %2162 = vmatprep.subr.bf16.mxu0 0
  %2163 = vmatpush1.bf16.msra.mxu0 0
  %2164 = vmatprep.subr.bf16.mxu0 0
  %2165 = vmatpush1.bf16.msra.mxu0 0
  %2166 = vmatprep.mubr.bf16.mxu0 0
  %2167 = vmatmul.mubr.bf16.gmra.mrb[0].mxu0 %v2123
  %v2168 = vpop.f32.mrb[0].mxu0
  %v2169 = vadd.f32 0.0, %v2168
  %v2170 = vpop.f32.mrb[0].mxu0
  %v2171 = vpop.f32.mrb[0].mxu0
  %v2172 = vadd.f32 0.0, %v2171
  %v2173 = vpop.f32.mrb[0].mxu0
  %2174 = vmatprep.mubr.bf16.mxu0 0
  %2175 = vmatmul.mubr.bf16.gmra.mrb[0].mxu0 %v2126
  %v2176 = vpop.f32.mrb[0].mxu0
  %v2177 = vadd.f32 0.0, %v2176
  %v2178 = vpop.f32.mrb[0].mxu0
  %v2179 = vpop.f32.mrb[0].mxu0
  %v2180 = vadd.f32 0.0, %v2179
  %v2181 = vpop.f32.mrb[0].mxu0
  %2182 = vmatprep.mubr.bf16.mxu0 0
  %2183 = vmatmul.mubr.bf16.gmra.mrb[0].mxu0 %v2129
  %v2184 = vpop.f32.mrb[0].mxu0
  %v2185 = vadd.f32 0.0, %v2184
  %v2186 = vpop.f32.mrb[0].mxu0
  %v2187 = vpop.f32.mrb[0].mxu0
  %v2188 = vadd.f32 0.0, %v2187
  %v2189 = vpop.f32.mrb[0].mxu0
  %2190 = vmatprep.mubr.bf16.mxu0 0
  %2191 = vmatmul.mubr.bf16.gmra.mrb[0].mxu0 %v2132
  %v2192 = vpop.f32.mrb[0].mxu0
  %v2193 = vadd.f32 0.0, %v2192
  %v2194 = vpop.f32.mrb[0].mxu0
  %v2195 = vpop.f32.mrb[0].mxu0
  %v2196 = vadd.f32 0.0, %v2195
  %v2197 = vpop.f32.mrb[0].mxu0
  %2198 = vdwg.mxu0
  %2199 = vst.msk [vmem:[#allocation2 + $0x40] sm:$0xff] %vm113, %v2169
  %2200 = vst.msk [vmem:[#allocation2 + $0x48] sm:$0xff] %vm113, %v2172
  %2201 = vst.msk [vmem:[#allocation2 + $0x50] sm:$0xff] %vm113, %v2177
  %2202 = vst.msk [vmem:[#allocation2 + $0x58] sm:$0xff] %vm113, %v2180
  %2203 = vst.msk [vmem:[#allocation2 + $0x60] sm:$0xff] %vm113, %v2185
  %2204 = vst.msk [vmem:[#allocation2 + $0x68] sm:$0xff] %vm113, %v2188
  %2205 = vst.msk [vmem:[#allocation2 + $0x70] sm:$0xff] %vm113, %v2193
  %2206 = vst.msk [vmem:[#allocation2 + $0x78] sm:$0xff] %vm113, %v2196
  %v2207 = vld [vmem:[#allocation2] sm:$0xff]
  %v2208 = vld [vmem:[#allocation2 + $0x8] sm:$0xff]
  %v2209 = vld [vmem:[#allocation2 + $0x10] sm:$0xff]
  %v2210 = vld [vmem:[#allocation2 + $0x18] sm:$0xff]
  %v2211 = vld [vmem:[#allocation2 + $0x20] sm:$0xff]
  %v2212 = vld [vmem:[#allocation2 + $0x28] sm:$0xff]
  %v2213 = vld [vmem:[#allocation2 + $0x30] sm:$0xff]
  %v2214 = vld [vmem:[#allocation2 + $0x38] sm:$0xff]
  %v2215 = vld [vmem:[#allocation2 + $0x40] sm:$0xff]
  %v2216 = vld [vmem:[#allocation2 + $0x48] sm:$0xff]
  %v2217 = vld [vmem:[#allocation2 + $0x50] sm:$0xff]
  %v2218 = vld [vmem:[#allocation2 + $0x58] sm:$0xff]
  %v2219 = vld [vmem:[#allocation2 + $0x60] sm:$0xff]
  %v2220 = vld [vmem:[#allocation2 + $0x68] sm:$0xff]
  %v2221 = vld [vmem:[#allocation2 + $0x70] sm:$0xff]
  %v2222 = vld [vmem:[#allocation2 + $0x78] sm:$0xff]
  %v2223 = vadd.f32 %v1405, %v2207
  %v2224 = vadd.f32 %v1406, %v2208
  %v2225 = vadd.f32 %v1407, %v2209
  %v2226 = vadd.f32 %v1408, %v2210
  %v2227 = vadd.f32 %v1409, %v2211
  %v2228 = vadd.f32 %v1410, %v2212
  %v2229 = vadd.f32 %v1411, %v2213
  %v2230 = vadd.f32 %v1412, %v2214
  %v2231 = vadd.f32 %v1413, %v2215
  %v2232 = vadd.f32 %v1414, %v2216
  %v2233 = vadd.f32 %v1415, %v2217
  %v2234 = vadd.f32 %v1416, %v2218
  %v2235 = vadd.f32 %v1417, %v2219
  %v2236 = vadd.f32 %v1418, %v2220
  %v2237 = vadd.f32 %v1419, %v2221
  %v2238 = vadd.f32 %v1420, %v2222
  %v2239 = vpack.c.bf16 %v2224, %v2223
  %v2240 = vpack.c.bf16 %v2226, %v2225
  %v2241 = vpack.c.bf16 %v2228, %v2227
  %v2242 = vpack.c.bf16 %v2230, %v2229
  %v2243 = vpack.c.bf16 %v2232, %v2231
  %v2244 = vpack.c.bf16 %v2234, %v2233
  %v2245 = vpack.c.bf16 %v2236, %v2235
  %v2246 = vpack.c.bf16 %v2238, %v2237
  %s2247 = scalar_lea.vmem %s10, 16
  %v2248 = vld [vmem:[%s2247] sm:$0xf]
  %v2249 = vld [vmem:[%s2247 + $0x4] sm:$0xf]
  %v2250 = vld [vmem:[%s2247 + $0x8] sm:$0xf]
  %v2251 = vld [vmem:[%s2247 + $0xc] sm:$0xf]
  %s2252 = scalar_lea.vmem %s11, 1
  %v2253 = vld [vmem:[%s2252] sm:$0x1]
  %v2255 = vlaneseq
  %v2256 = vshrl.u32 %v2255, 7
  %v2257 = vsub.s32 0, %v2256
  %v2258 = vrot.slane %v2253, %v2257
  %v2264 = vunpack.c.l.b16 %v2248
  %v2265 = vunpack.c.l.b16 %v2249
  %v2266 = vunpack.c.l.b16 %v2250
  %v2267 = vunpack.c.l.b16 %v2251
  %v2268 = vpack.c.b16 %v2265, %v2264
  %v2269 = vpack.c.b16 %v2267, %v2266
  %v2273 = vsel %vm113, %v2239, 0
  %v2276 = vsel %vm113, %v2240, 0
  %v2279 = vsel %vm113, %v2241, 0
  %v2282 = vsel %vm113, %v2242, 0
  %v2285 = vsel %vm113, %v2243, 0
  %v2288 = vsel %vm113, %v2244, 0
  %v2291 = vsel %vm113, %v2245, 0
  %v2294 = vsel %vm113, %v2246, 0
  %2296 = vmatprep.subr.bf16.mxu0 0
  %2297 = vmatpush1.bf16.msra.mxu0 %v2268
  %2298 = vmatprep.subr.bf16.mxu0 0
  %2299 = vmatpush1.bf16.msra.mxu0 %v2269
  %2300 = vmatprep.subr.bf16.mxu0 0
  %2301 = vmatpush1.bf16.msra.mxu0 0
  %2302 = vmatprep.subr.bf16.mxu0 0
  %2303 = vmatpush1.bf16.msra.mxu0 0
  %2304 = vmatprep.subr.bf16.mxu0 0
  %2305 = vmatpush1.bf16.msra.mxu0 0
  %2306 = vmatprep.subr.bf16.mxu0 0
  %2307 = vmatpush1.bf16.msra.mxu0 0
  %2308 = vmatprep.subr.bf16.mxu0 0
  %2309 = vmatpush1.bf16.msra.mxu0 0
  %2310 = vmatprep.subr.bf16.mxu0 0
  %2311 = vmatpush1.bf16.msra.mxu0 0
  %2312 = vmatprep.subr.bf16.mxu0 0
  %2313 = vmatpush1.bf16.msra.mxu0 0
  %2314 = vmatprep.subr.bf16.mxu0 0
  %2315 = vmatpush1.bf16.msra.mxu0 0
  %2316 = vmatprep.subr.bf16.mxu0 0
  %2317 = vmatpush1.bf16.msra.mxu0 0
  %2318 = vmatprep.subr.bf16.mxu0 0
  %2319 = vmatpush1.bf16.msra.mxu0 0
  %2320 = vmatprep.subr.bf16.mxu0 0
  %2321 = vmatpush1.bf16.msra.mxu0 0
  %2322 = vmatprep.subr.bf16.mxu0 0
  %2323 = vmatpush1.bf16.msra.mxu0 0
  %2324 = vmatprep.subr.bf16.mxu0 0
  %2325 = vmatpush1.bf16.msra.mxu0 0
  %2326 = vmatprep.subr.bf16.mxu0 0
  %2327 = vmatpush1.bf16.msra.mxu0 0
  %2328 = vmatprep.mubr.bf16.mxu0 0
  %2329 = vmatmul.mubr.bf16.gmra.mrb[0].mxu0 %v2273
  %v2330 = vpop.f32.mrb[0].mxu0
  %v2331 = vadd.f32 %v2258, %v2330
  %v2332 = vpop.f32.mrb[0].mxu0
  %v2333 = vpop.f32.mrb[0].mxu0
  %v2334 = vadd.f32 %v2258, %v2333
  %v2335 = vpop.f32.mrb[0].mxu0
  %2336 = vmatprep.mubr.bf16.mxu0 0
  %2337 = vmatmul.mubr.bf16.gmra.mrb[0].mxu0 %v2276
  %v2338 = vpop.f32.mrb[0].mxu0
  %v2339 = vadd.f32 %v2258, %v2338
  %v2340 = vpop.f32.mrb[0].mxu0
  %v2341 = vpop.f32.mrb[0].mxu0
  %v2342 = vadd.f32 %v2258, %v2341
  %v2343 = vpop.f32.mrb[0].mxu0
  %2344 = vmatprep.mubr.bf16.mxu0 0
  %2345 = vmatmul.mubr.bf16.gmra.mrb[0].mxu0 %v2279
  %v2346 = vpop.f32.mrb[0].mxu0
  %v2347 = vadd.f32 %v2258, %v2346
  %v2348 = vpop.f32.mrb[0].mxu0
  %v2349 = vpop.f32.mrb[0].mxu0
  %v2350 = vadd.f32 %v2258, %v2349
  %v2351 = vpop.f32.mrb[0].mxu0
  %2352 = vmatprep.mubr.bf16.mxu0 0
  %2353 = vmatmul.mubr.bf16.gmra.mrb[0].mxu0 %v2282
  %v2354 = vpop.f32.mrb[0].mxu0
  %v2355 = vadd.f32 %v2258, %v2354
  %v2356 = vpop.f32.mrb[0].mxu0
  %v2357 = vpop.f32.mrb[0].mxu0
  %v2358 = vadd.f32 %v2258, %v2357
  %v2359 = vpop.f32.mrb[0].mxu0
  %2360 = vmatprep.mubr.bf16.mxu0 0
  %2361 = vmatmul.mubr.bf16.gmra.mrb[0].mxu0 %v2285
  %v2362 = vpop.f32.mrb[0].mxu0
  %v2363 = vadd.f32 %v2258, %v2362
  %v2364 = vpop.f32.mrb[0].mxu0
  %v2365 = vpop.f32.mrb[0].mxu0
  %v2366 = vadd.f32 %v2258, %v2365
  %v2367 = vpop.f32.mrb[0].mxu0
  %2368 = vmatprep.mubr.bf16.mxu0 0
  %2369 = vmatmul.mubr.bf16.gmra.mrb[0].mxu0 %v2288
  %v2370 = vpop.f32.mrb[0].mxu0
  %v2371 = vadd.f32 %v2258, %v2370
  %v2372 = vpop.f32.mrb[0].mxu0
  %v2373 = vpop.f32.mrb[0].mxu0
  %v2374 = vadd.f32 %v2258, %v2373
  %v2375 = vpop.f32.mrb[0].mxu0
  %2376 = vmatprep.mubr.bf16.mxu0 0
  %2377 = vmatmul.mubr.bf16.gmra.mrb[0].mxu0 %v2291
  %v2378 = vpop.f32.mrb[0].mxu0
  %v2379 = vadd.f32 %v2258, %v2378
  %v2380 = vpop.f32.mrb[0].mxu0
  %v2381 = vpop.f32.mrb[0].mxu0
  %v2382 = vadd.f32 %v2258, %v2381
  %v2383 = vpop.f32.mrb[0].mxu0
  %2384 = vmatprep.mubr.bf16.mxu0 0
  %2385 = vmatmul.mubr.bf16.gmra.mrb[0].mxu0 %v2294
  %v2386 = vpop.f32.mrb[0].mxu0
  %v2387 = vadd.f32 %v2258, %v2386
  %v2388 = vpop.f32.mrb[0].mxu0
  %v2389 = vpop.f32.mrb[0].mxu0
  %v2390 = vadd.f32 %v2258, %v2389
  %v2391 = vpop.f32.mrb[0].mxu0
  %2392 = vdwg.mxu0
  %v2393 = vmax.f32 %v2331, 0.0
  %v2394 = vmax.f32 %v2334, 0.0
  %v2395 = vmax.f32 %v2339, 0.0
  %v2396 = vmax.f32 %v2342, 0.0
  %v2397 = vmax.f32 %v2347, 0.0
  %v2398 = vmax.f32 %v2350, 0.0
  %v2399 = vmax.f32 %v2355, 0.0
  %v2400 = vmax.f32 %v2358, 0.0
  %v2401 = vmax.f32 %v2363, 0.0
  %v2402 = vmax.f32 %v2366, 0.0
  %v2403 = vmax.f32 %v2371, 0.0
  %v2404 = vmax.f32 %v2374, 0.0
  %v2405 = vmax.f32 %v2379, 0.0
  %v2406 = vmax.f32 %v2382, 0.0
  %v2407 = vmax.f32 %v2387, 0.0
  %v2408 = vmax.f32 %v2390, 0.0
  %v2409 = vpack.c.bf16 %v2394, %v2393
  %v2410 = vpack.c.bf16 %v2396, %v2395
  %v2411 = vpack.c.bf16 %v2398, %v2397
  %v2412 = vpack.c.bf16 %v2400, %v2399
  %v2413 = vpack.c.bf16 %v2402, %v2401
  %v2414 = vpack.c.bf16 %v2404, %v2403
  %v2415 = vpack.c.bf16 %v2406, %v2405
  %v2416 = vpack.c.bf16 %v2408, %v2407
  %s2417 = scalar_lea.vmem %s12, 16
  %v2418 = vld [vmem:[%s2417] sm:$0xf]
  %v2419 = vld [vmem:[%s2417 + $0x4] sm:$0xf]
  %v2420 = vld [vmem:[%s2417 + $0x8] sm:$0xf]
  %v2421 = vld [vmem:[%s2417 + $0xc] sm:$0xf]
  %v2426 = vunpack.c.l.b16 %v2418
  %v2427 = vunpack.c.l.b16 %v2419
  %v2428 = vunpack.c.l.b16 %v2420
  %v2429 = vunpack.c.l.b16 %v2421
  %v2430 = vpack.c.b16 %v2427, %v2426
  %v2431 = vpack.c.b16 %v2429, %v2428
  %v2435 = vsel %vm113, %v2409, 0
  %v2438 = vsel %vm113, %v2410, 0
  %v2441 = vsel %vm113, %v2411, 0
  %v2444 = vsel %vm113, %v2412, 0
  %v2447 = vsel %vm113, %v2413, 0
  %v2450 = vsel %vm113, %v2414, 0
  %v2453 = vsel %vm113, %v2415, 0
  %v2456 = vsel %vm113, %v2416, 0
  %2458 = vmatprep.subr.bf16.mxu0 0
  %2459 = vmatpush1.bf16.msra.mxu0 %v2430
  %2460 = vmatprep.subr.bf16.mxu0 0
  %2461 = vmatpush1.bf16.msra.mxu0 %v2431
  %2462 = vmatprep.subr.bf16.mxu0 0
  %2463 = vmatpush1.bf16.msra.mxu0 0
  %2464 = vmatprep.subr.bf16.mxu0 0
  %2465 = vmatpush1.bf16.msra.mxu0 0
  %2466 = vmatprep.subr.bf16.mxu0 0
  %2467 = vmatpush1.bf16.msra.mxu0 0
  %2468 = vmatprep.subr.bf16.mxu0 0
  %2469 = vmatpush1.bf16.msra.mxu0 0
  %2470 = vmatprep.subr.bf16.mxu0 0
  %2471 = vmatpush1.bf16.msra.mxu0 0
  %2472 = vmatprep.subr.bf16.mxu0 0
  %2473 = vmatpush1.bf16.msra.mxu0 0
  %2474 = vmatprep.subr.bf16.mxu0 0
  %2475 = vmatpush1.bf16.msra.mxu0 0
  %2476 = vmatprep.subr.bf16.mxu0 0
  %2477 = vmatpush1.bf16.msra.mxu0 0
  %2478 = vmatprep.subr.bf16.mxu0 0
  %2479 = vmatpush1.bf16.msra.mxu0 0
  %2480 = vmatprep.subr.bf16.mxu0 0
  %2481 = vmatpush1.bf16.msra.mxu0 0
  %2482 = vmatprep.subr.bf16.mxu0 0
  %2483 = vmatpush1.bf16.msra.mxu0 0
  %2484 = vmatprep.subr.bf16.mxu0 0
  %2485 = vmatpush1.bf16.msra.mxu0 0
  %2486 = vmatprep.subr.bf16.mxu0 0
  %2487 = vmatpush1.bf16.msra.mxu0 0
  %2488 = vmatprep.subr.bf16.mxu0 0
  %2489 = vmatpush1.bf16.msra.mxu0 0
  %2490 = vmatprep.mubr.bf16.mxu0 0
  %2491 = vmatmul.mubr.bf16.gmra.mrb[0].mxu0 %v2435
  %v2492 = vpop.f32.mrb[0].mxu0
  %v2493 = vadd.f32 0.0, %v2492
  %v2494 = vpop.f32.mrb[0].mxu0
  %v2495 = vpop.f32.mrb[0].mxu0
  %v2496 = vadd.f32 0.0, %v2495
  %v2497 = vpop.f32.mrb[0].mxu0
  %2498 = vmatprep.mubr.bf16.mxu0 0
  %2499 = vmatmul.mubr.bf16.gmra.mrb[0].mxu0 %v2438
  %v2500 = vpop.f32.mrb[0].mxu0
  %v2501 = vadd.f32 0.0, %v2500
  %v2502 = vpop.f32.mrb[0].mxu0
  %v2503 = vpop.f32.mrb[0].mxu0
  %v2504 = vadd.f32 0.0, %v2503
  %v2505 = vpop.f32.mrb[0].mxu0
  %2506 = vmatprep.mubr.bf16.mxu0 0
  %2507 = vmatmul.mubr.bf16.gmra.mrb[0].mxu0 %v2441
  %v2508 = vpop.f32.mrb[0].mxu0
  %v2509 = vadd.f32 0.0, %v2508
  %v2510 = vpop.f32.mrb[0].mxu0
  %v2511 = vpop.f32.mrb[0].mxu0
  %v2512 = vadd.f32 0.0, %v2511
  %v2513 = vpop.f32.mrb[0].mxu0
  %2514 = vmatprep.mubr.bf16.mxu0 0
  %2515 = vmatmul.mubr.bf16.gmra.mrb[0].mxu0 %v2444
  %v2516 = vpop.f32.mrb[0].mxu0
  %v2517 = vadd.f32 0.0, %v2516
  %v2518 = vpop.f32.mrb[0].mxu0
  %v2519 = vpop.f32.mrb[0].mxu0
  %v2520 = vadd.f32 0.0, %v2519
  %v2521 = vpop.f32.mrb[0].mxu0
  %2522 = vmatprep.mubr.bf16.mxu0 0
  %2523 = vmatmul.mubr.bf16.gmra.mrb[0].mxu0 %v2447
  %v2524 = vpop.f32.mrb[0].mxu0
  %v2525 = vadd.f32 0.0, %v2524
  %v2526 = vpop.f32.mrb[0].mxu0
  %v2527 = vpop.f32.mrb[0].mxu0
  %v2528 = vadd.f32 0.0, %v2527
  %v2529 = vpop.f32.mrb[0].mxu0
  %2530 = vmatprep.mubr.bf16.mxu0 0
  %2531 = vmatmul.mubr.bf16.gmra.mrb[0].mxu0 %v2450
  %v2532 = vpop.f32.mrb[0].mxu0
  %v2533 = vadd.f32 0.0, %v2532
  %v2534 = vpop.f32.mrb[0].mxu0
  %v2535 = vpop.f32.mrb[0].mxu0
  %v2536 = vadd.f32 0.0, %v2535
  %v2537 = vpop.f32.mrb[0].mxu0
  %2538 = vmatprep.mubr.bf16.mxu0 0
  %2539 = vmatmul.mubr.bf16.gmra.mrb[0].mxu0 %v2453
  %v2540 = vpop.f32.mrb[0].mxu0
  %v2541 = vadd.f32 0.0, %v2540
  %v2542 = vpop.f32.mrb[0].mxu0
  %v2543 = vpop.f32.mrb[0].mxu0
  %v2544 = vadd.f32 0.0, %v2543
  %v2545 = vpop.f32.mrb[0].mxu0
  %2546 = vmatprep.mubr.bf16.mxu0 0
  %2547 = vmatmul.mubr.bf16.gmra.mrb[0].mxu0 %v2456
  %v2548 = vpop.f32.mrb[0].mxu0
  %v2549 = vadd.f32 0.0, %v2548
  %v2550 = vpop.f32.mrb[0].mxu0
  %v2551 = vpop.f32.mrb[0].mxu0
  %v2552 = vadd.f32 0.0, %v2551
  %v2553 = vpop.f32.mrb[0].mxu0
  %2554 = vdwg.mxu0
  %v2555 = vadd.f32 %v2223, %v2493
  %v2556 = vadd.f32 %v2224, %v2496
  %v2557 = vadd.f32 %v2225, %v2501
  %v2558 = vadd.f32 %v2226, %v2504
  %v2559 = vadd.f32 %v2227, %v2509
  %v2560 = vadd.f32 %v2228, %v2512
  %v2561 = vadd.f32 %v2229, %v2517
  %v2562 = vadd.f32 %v2230, %v2520
  %v2563 = vadd.f32 %v2231, %v2525
  %v2564 = vadd.f32 %v2232, %v2528
  %v2565 = vadd.f32 %v2233, %v2533
  %v2566 = vadd.f32 %v2234, %v2536
  %v2567 = vadd.f32 %v2235, %v2541
  %v2568 = vadd.f32 %v2236, %v2544
  %v2569 = vadd.f32 %v2237, %v2549
  %v2570 = vadd.f32 %v2238, %v2552
  %s2571 = scalar_lea.vmem %s13, 1
  %v2572 = vld [vmem:[%s2571] sm:$0x1]
  %v2574 = vlaneseq
  %v2575 = vshrl.u32 %v2574, 7
  %v2576 = vsub.s32 0, %v2575
  %v2577 = vrot.slane %v2572, %v2576
  %v2579 = vadd.f32 %v2555, %v2577
  %v2580 = vadd.f32 %v2556, %v2577
  %v2581 = vadd.f32 %v2557, %v2577
  %v2582 = vadd.f32 %v2558, %v2577
  %v2583 = vadd.f32 %v2559, %v2577
  %v2584 = vadd.f32 %v2560, %v2577
  %v2585 = vadd.f32 %v2561, %v2577
  %v2586 = vadd.f32 %v2562, %v2577
  %v2587 = vadd.f32 %v2563, %v2577
  %v2588 = vadd.f32 %v2564, %v2577
  %v2589 = vadd.f32 %v2565, %v2577
  %v2590 = vadd.f32 %v2566, %v2577
  %v2591 = vadd.f32 %v2567, %v2577
  %v2592 = vadd.f32 %v2568, %v2577
  %v2593 = vadd.f32 %v2569, %v2577
  %v2594 = vadd.f32 %v2570, %v2577
  %v2595 = vpack.c.bf16 %v2580, %v2579
  %v2596 = vpack.c.bf16 %v2582, %v2581
  %v2597 = vpack.c.bf16 %v2584, %v2583
  %v2598 = vpack.c.bf16 %v2586, %v2585
  %v2599 = vpack.c.bf16 %v2588, %v2587
  %v2600 = vpack.c.bf16 %v2590, %v2589
  %v2601 = vpack.c.bf16 %v2592, %v2591
  %v2602 = vpack.c.bf16 %v2594, %v2593
  %s2603 = scalar_lea.vmem %s14, 4
  %v2604 = vld [vmem:[%s2603] sm:$0x7]
  %s2605 = scalar_lea.vmem %s15, 8
  %v2606 = vld [vmem:[%s2605] sm:$0x1f]
  %2608 = vset.pattern.permute.xlu0 0
  %2609 = vperm.xlu0 %2608, %v2606
  %v2610 = vpop.permute.xlu0 %2609
  %v2613 = vsel %vm113, %v2604, 0
  %v2616 = vsel %vm113, %v2595, 0
  %v2619 = vsel %vm113, %v2596, 0
  %v2622 = vsel %vm113, %v2597, 0
  %v2625 = vsel %vm113, %v2598, 0
  %v2628 = vsel %vm113, %v2599, 0
  %v2631 = vsel %vm113, %v2600, 0
  %v2634 = vsel %vm113, %v2601, 0
  %v2637 = vsel %vm113, %v2602, 0
  %2639 = vmatprep.subr.bf16.mxu0 0
  %2640 = vmatpush1.bf16.xpose.msra.mxu0 %v2616
  %2641 = vmatprep.subr.bf16.mxu0 0
  %2642 = vmatpush1.bf16.xpose.msra.mxu0 %v2619
  %2643 = vmatprep.subr.bf16.mxu0 0
  %2644 = vmatpush1.bf16.xpose.msra.mxu0 %v2622
  %2645 = vmatprep.subr.bf16.mxu0 0
  %2646 = vmatpush1.bf16.xpose.msra.mxu0 %v2625
  %2647 = vmatprep.subr.bf16.mxu0 0
  %2648 = vmatpush1.bf16.xpose.msra.mxu0 %v2628
  %2649 = vmatprep.subr.bf16.mxu0 0
  %2650 = vmatpush1.bf16.xpose.msra.mxu0 %v2631
  %2651 = vmatprep.subr.bf16.mxu0 0
  %2652 = vmatpush1.bf16.xpose.msra.mxu0 %v2634
  %2653 = vmatprep.subr.bf16.mxu0 0
  %2654 = vmatpush1.bf16.xpose.msra.mxu0 %v2637
  %2655 = vmatprep.subr.bf16.mxu0 0
  %2656 = vmatpush1.bf16.xpose.msra.mxu0 0
  %2657 = vmatprep.subr.bf16.mxu0 0
  %2658 = vmatpush1.bf16.xpose.msra.mxu0 0
  %2659 = vmatprep.subr.bf16.mxu0 0
  %2660 = vmatpush1.bf16.xpose.msra.mxu0 0
  %2661 = vmatprep.subr.bf16.mxu0 0
  %2662 = vmatpush1.bf16.xpose.msra.mxu0 0
  %2663 = vmatprep.subr.bf16.mxu0 0
  %2664 = vmatpush1.bf16.xpose.msra.mxu0 0
  %2665 = vmatprep.subr.bf16.mxu0 0
  %2666 = vmatpush1.bf16.xpose.msra.mxu0 0
  %2667 = vmatprep.subr.bf16.mxu0 0
  %2668 = vmatpush1.bf16.xpose.msra.mxu0 0
  %2669 = vmatprep.subr.bf16.mxu0 0
  %2670 = vmatpush1.bf16.xpose.msra.mxu0 0
  %2671 = vmatprep.mubr.bf16.mxu0 0
  %2672 = vmatmul.mubr.bf16.gmra.mrb[0].mxu0 %v2613
  %v2673 = vpop.f32.mrb[0].mxu0
  %v2674 = vadd.f32 %v2610, %v2673
  %v2675 = vpop.f32.mrb[0].mxu0
  %v2676 = vpop.f32.mrb[0].mxu0
  %v2677 = vpop.f32.mrb[0].mxu0
  %2678 = vdwg.mxu0
  %s2679 = scalar_lea.vmem %s16, 2
  %v2680 = vld [vmem:[%s2679] sm:$0x3]
  %s2681 = scalar_lea.vmem %s17, 4
  %v2682 = vld [vmem:[%s2681] sm:$0xf]
  %2684 = vset.pattern.permute.xlu0 0
  %2685 = vperm.xlu0 %2684, %v2682
  %v2686 = vpop.permute.xlu0 %2685
  %v2689 = vsel %vm113, %v2680, 0
  %2691 = vmatprep.subr.bf16.mxu0 0
  %2692 = vmatpush1.bf16.xpose.msra.mxu0 %v2616
  %2693 = vmatprep.subr.bf16.mxu0 0
  %2694 = vmatpush1.bf16.xpose.msra.mxu0 %v2619
  %2695 = vmatprep.subr.bf16.mxu0 0
  %2696 = vmatpush1.bf16.xpose.msra.mxu0 %v2622
  %2697 = vmatprep.subr.bf16.mxu0 0
  %2698 = vmatpush1.bf16.xpose.msra.mxu0 %v2625
  %2699 = vmatprep.subr.bf16.mxu0 0
  %2700 = vmatpush1.bf16.xpose.msra.mxu0 %v2628
  %2701 = vmatprep.subr.bf16.mxu0 0
  %2702 = vmatpush1.bf16.xpose.msra.mxu0 %v2631
  %2703 = vmatprep.subr.bf16.mxu0 0
  %2704 = vmatpush1.bf16.xpose.msra.mxu0 %v2634
  %2705 = vmatprep.subr.bf16.mxu0 0
  %2706 = vmatpush1.bf16.xpose.msra.mxu0 %v2637
  %2707 = vmatprep.subr.bf16.mxu0 0
  %2708 = vmatpush1.bf16.xpose.msra.mxu0 0
  %2709 = vmatprep.subr.bf16.mxu0 0
  %2710 = vmatpush1.bf16.xpose.msra.mxu0 0
  %2711 = vmatprep.subr.bf16.mxu0 0
  %2712 = vmatpush1.bf16.xpose.msra.mxu0 0
  %2713 = vmatprep.subr.bf16.mxu0 0
  %2714 = vmatpush1.bf16.xpose.msra.mxu0 0
  %2715 = vmatprep.subr.bf16.mxu0 0
  %2716 = vmatpush1.bf16.xpose.msra.mxu0 0
  %2717 = vmatprep.subr.bf16.mxu0 0
  %2718 = vmatpush1.bf16.xpose.msra.mxu0 0
  %2719 = vmatprep.subr.bf16.mxu0 0
  %2720 = vmatpush1.bf16.xpose.msra.mxu0 0
  %2721 = vmatprep.subr.bf16.mxu0 0
  %2722 = vmatpush1.bf16.xpose.msra.mxu0 0
  %2723 = vmatprep.mubr.bf16.mxu0 0
  %2724 = vmatmul.mubr.bf16.gmra.mrb[0].mxu0 %v2689
  %v2725 = vpop.f32.mrb[0].mxu0
  %v2726 = vadd.f32 %v2686, %v2725
  %v2727 = vpop.f32.mrb[0].mxu0
  %v2728 = vpop.f32.mrb[0].mxu0
  %v2729 = vpop.f32.mrb[0].mxu0
  %2730 = vdwg.mxu0
  %v2731 = vmax.f32 %v1566, 1e-05
  %v2732 = vmin.f32 %v2731, 0.99999
  %v2733 = vsub.f32 1.0, %v2732
  %v2734 = vrcp.pop %v2733
  %v2735 = vmul.f32 %v2732, %v2734
  %v2736 = vlog2.pop %v2735
  %v2737 = vmul.f32 %v2736, 0.6931472
  %v2738 = vadd.f32 %v2737, %v2726
  %v2739 = vxor.u32 %v2738, 2147483648
  %v2740 = vmul.f32 %v2739, 1.442695
  %v2741 = vpow.pop %v2740
  %v2742 = vadd.f32 %v2741, 1.0
  %v2743 = vrcp.pop %v2742
  %v2744 = vmul.f32 1.0, %v2743
  %2745 = vst [vmem:[%s18 + $0x20] sm:$0x1f] %v2674
  %2746 = vst [vmem:[%s18 + $0x28] sm:$0xf] %v2744
  // Predicated region
  $region74: #{asag_forward.5} parent=0 // pred_check
    _
  $region75: #{asag_forward.5} parent=0 // pred_check_branch
    %2748 = sbr.rel (0) target = $region77
  $region76: #{asag_forward.5} parent=0 // pred_region
    _
  $region77: #{asag_forward.5} parent=0 // pred_fallthru
    _
  // Predicated region
  $region78: #{asag_forward.5} parent=0 // pred_check
    _
  $region79: #{asag_forward.5} parent=0 // pred_check_branch
    %2750 = sbr.rel (0) target = $region81
  $region80: #{asag_forward.5} parent=0 // pred_region
    _
  $region81: #{asag_forward.5} parent=0 // pred_fallthru
    _

</llo_original>
